<compile_context>
chip_gen: v7x
topology: tpu7x:2x2x1
jax: 0.10.0
libtpu: 0.0.40
codegen_flags: <defaults>
</compile_context>

<pallas_src>
import functools

import jax
import jax.numpy as jnp
from jax.experimental import pallas as pl
from jax.experimental.pallas import tpu as pltpu


def _disc_kernel(x_ref, w1_ref, b1_ref, w2_ref, b2_ref, wh_ref, bh_ref,
                 wp1_ref, bp1_ref, wp2_ref, bp2_ref, t_ref,
                 wo_f_ref, wo_t_ref, bo_ref, out_ref,
                 *, n_hidden_layers, dim_B, dim_C):
    f32 = jnp.float32
    bf16 = jnp.bfloat16

    def dense_relu(a, w, b):
        # bf16 MXU inputs, f32 accumulation; bias + ReLU in f32 on the VPU.
        y = jnp.dot(a.astype(bf16), w, preferred_element_type=f32) + b
        return jnp.maximum(y, 0.0)

    x = x_ref[...]

    # priori MLP
    h = dense_relu(x, w1_ref[...], b1_ref[...])
    h = dense_relu(h, w2_ref[...], b2_ref[...])

    # hidden layers (dropout is identity in eval/inference mode)
    # TODO(synk): dropout masking (pltpu PRNG) would be needed for training-mode parity.
    for l in range(n_hidden_layers):
        h = dense_relu(h, wh_ref[l], bh_ref[l])

    # posterior MLP
    h = dense_relu(h, wp1_ref[...], bp1_ref[...])
    feature = dense_relu(h, wp2_ref[...], bp2_ref[...])       # (N, 128-padded hidden_size)

    n = feature.shape[0]

    # Ms in (N, dim_C*dim_B) with columns ordered (c-major, b-minor) via the wrapper's
    # T permutation: ms[i, c*dim_B + b] == torch Ms[i, b, c].
    ms = jnp.dot(feature.astype(bf16), t_ref[...], preferred_element_type=f32)

    # Minibatch discrimination, chunked over C: per-step working set ~2 vregs, accumulator
    # N*N*dim_B f32 (8 vregs at N=8).  d[i, j, b] = sum_c |Ms[i, b, c] - Ms[j, b, c]|.
    acc = jnp.zeros((n, n, dim_B), f32)
    for c in range(dim_C):
        chunk = ms[:, c * dim_B:(c + 1) * dim_B]               # lane-aligned static slice
        acc = acc + jnp.abs(chunk[:, None, :] - chunk[None, :, :])
    # out_T[i, b] = sum_j exp(-d[i, j, b])  (includes the self pair exp(0)=1, as in torch).
    out_T = jnp.sum(jnp.exp(-acc), axis=1)                     # (N, dim_B)

    # Output linear on cat((feature, out_T), 1) == split-weight products, then sigmoid.
    # Broadcast-multiply + lane reduce (VPU/XLU) — no 1-column MXU matmul on the tail.
    logit = (jnp.sum(feature * wo_f_ref[...], axis=-1, keepdims=True)
             + jnp.sum(out_T * wo_t_ref[...], axis=-1, keepdims=True)
             + bo_ref[0])                                      # (N, 1)

    # Lane-dense store (unmasked vst): broadcast the single logit column across 128 lanes;
    # wrapper slices column 0.
    out_ref[...] = jnp.broadcast_to(jax.nn.sigmoid(logit), out_ref.shape)


@functools.partial(jax.jit, static_argnames=("n_hidden_layers", "dim_B", "dim_C"))
def discriminator_forward(params, x, *, n_hidden_layers, dim_B, dim_C):
    n, h_in = x.shape
    p_in = ((h_in + 127) // 128) * 128
    x_p = jnp.pad(x, ((0, 0), (0, p_in - h_in)))               # lane-dense input

    kernel = functools.partial(_disc_kernel,
                               n_hidden_layers=n_hidden_layers,
                               dim_B=dim_B, dim_C=dim_C)
    args = (x_p,
            params["w1"], params["b1"],
            params["w2"], params["b2"],
            params["wh"], params["bh"],
            params["wp1"], params["bp1"],
            params["wp2"], params["bp2"],
            params["T"],
            params["wo_f"], params["wo_t"], params["bo"])

    vmem = pl.BlockSpec(memory_space=pltpu.MemorySpace.VMEM)
    smem = pl.BlockSpec(memory_space=pltpu.MemorySpace.SMEM)
    in_specs = [vmem] * (len(args) - 1) + [smem]               # scalar output bias in SMEM

    # Advisory cost estimate so XLA schedules the custom call sensibly in larger graphs.
    flops = (2 * n * 128 * 128 * (4 + n_hidden_layers)         # MLP dots (padded widths)
             + 2 * n * 128 * dim_B * dim_C                     # T matmul
             + 4 * n * n * dim_B * dim_C)                      # pairwise |.| accumulation
    transcendentals = n * n * dim_B + n                        # exp + sigmoid
    bytes_accessed = (sum(int(a.size) * a.dtype.itemsize for a in args)
                      + n * 128 * 4)

    out = pl.pallas_call(
        kernel,
        out_shape=jax.ShapeDtypeStruct((n, 128), jnp.float32),
        in_specs=in_specs,
        out_specs=vmem,
        cost_estimate=pl.CostEstimate(flops=flops,
                                      transcendentals=transcendentals,
                                      bytes_accessed=bytes_accessed),
    )(*args)
    return out[:, 0]  # == .view(-1)


def _round128(v):
    return ((v + 127) // 128) * 128


def _pad2(a, rows, cols):
    return jnp.pad(a, ((0, rows - a.shape[0]), (0, cols - a.shape[1])))


def init_params(key, hidden_size, dim_B, dim_C, n_hidden_layers):
    """Returns (kernel-ready params, raw torch-layout f32 params)."""
    h = hidden_size
    ks = jax.random.split(key, 7)
    u = lambda k, shape: jax.random.uniform(k, shape, jnp.float32, -0.1, 0.1)

    # Raw torch-layout params: nn.Linear weight (out, in), bias (out,); T_tensor ~ N(0, 1).
    raw = {
        "fc1_w": u(ks[0], (2 * h, h)),      "fc1_b": jnp.zeros((2 * h,), jnp.float32),
        "fc2_w": u(ks[1], (3 * h, 2 * h)),  "fc2_b": jnp.zeros((3 * h,), jnp.float32),
        "hid_w": u(ks[2], (n_hidden_layers, 3 * h, 3 * h)),
        "hid_b": jnp.zeros((n_hidden_layers, 3 * h), jnp.float32),
        "fc3_w": u(ks[3], (2 * h, 3 * h)),  "fc3_b": jnp.zeros((2 * h,), jnp.float32),
        "fc4_w": u(ks[4], (h, 2 * h)),      "fc4_b": jnp.zeros((h,), jnp.float32),
        "T":     jax.random.normal(ks[5], (h, dim_B * dim_C), jnp.float32),
        "out_w": u(ks[6], (1, h + dim_B)),  "out_b": jnp.zeros((1,), jnp.float32),
    }

    # Kernel-ready params: (in, out) orientation, zero-padded to 128-multiples (zero weight
    # rows/cols + zero bias keep the math identical since ReLU(0)=0), matmul operands bf16.
    P0, P1, P2 = _round128(h), _round128(2 * h), _round128(3 * h)
    bf16 = jnp.bfloat16

    def lin(w, b, p_in, p_out):
        return (_pad2(w.T, p_in, p_out).astype(bf16),
                jnp.pad(b[None, :], ((0, 0), (0, p_out - b.shape[0]))))

    params = {}
    params["w1"], params["b1"] = lin(raw["fc1_w"], raw["fc1_b"], P0, P1)
    params["w2"], params["b2"] = lin(raw["fc2_w"], raw["fc2_b"], P1, P2)
    wh_t = jnp.swapaxes(raw["hid_w"], 1, 2)                    # (L, in, out)
    params["wh"] = jnp.pad(wh_t, ((0, 0), (0, P2 - 3 * h), (0, P2 - 3 * h))).astype(bf16)
    params["bh"] = jnp.pad(raw["hid_b"][:, None, :], ((0, 0), (0, 0), (0, P2 - 3 * h)))
    params["wp1"], params["bp1"] = lin(raw["fc3_w"], raw["fc3_b"], P2, P1)
    params["wp2"], params["bp2"] = lin(raw["fc4_w"], raw["fc4_b"], P1, P0)

    # T columns permuted so kernel chunk c = ms[:, c*dim_B:(c+1)*dim_B] equals Ms[:, :, c].
    T_perm = (raw["T"].reshape(h, dim_B, dim_C)
                      .transpose(0, 2, 1)
                      .reshape(h, dim_C * dim_B))
    params["T"] = jnp.pad(T_perm, ((0, P0 - h), (0, 0))).astype(bf16)

    wo = raw["out_w"]                                          # (1, h + dim_B)
    params["wo_f"] = jnp.pad(wo[:, :h], ((0, 0), (0, P0 - h)))  # (1, P0) f32
    params["wo_t"] = wo[:, h:]                                  # (1, dim_B) f32
    params["bo"] = raw["out_b"]                                 # (1,) f32 -> SMEM
    return params, raw


def reference_forward(raw, x, *, n_hidden_layers, dim_B, dim_C):
    """Pure-JAX f32 reference with the original torch semantics (eval mode)."""
    relu = jax.nn.relu
    h = relu(x @ raw["fc1_w"].T + raw["fc1_b"])
    h = relu(h @ raw["fc2_w"].T + raw["fc2_b"])
    for l in range(n_hidden_layers):
        h = relu(h @ raw["hid_w"][l].T + raw["hid_b"][l])
    h = relu(h @ raw["fc3_w"].T + raw["fc3_b"])
    feature = relu(h @ raw["fc4_w"].T + raw["fc4_b"])
    Ms = (feature @ raw["T"]).reshape(-1, dim_B, dim_C)
    d = jnp.sum(jnp.abs(Ms[:, None] - Ms[None, :]), axis=-1)   # (N, N, dim_B)
    out_T = jnp.sum(jnp.exp(-d), axis=1)                       # (N, dim_B)
    cat = jnp.concatenate([feature, out_T], axis=1)
    logit = cat @ raw["out_w"].T + raw["out_b"]
    return jax.nn.sigmoid(logit).reshape(-1)


if __name__ == "__main__":
    hidden_size = 32
    dim_B = 128
    dim_C = 16
    n_hidden_layers = 1
    dropout_rate = 0.1   # dropout is identity at inference; not applied in the kernel
    N = 8                # batch size

    key = jax.random.PRNGKey(0)
    kp, kx = jax.random.split(key)
    params, raw = init_params(kp, hidden_size, dim_B, dim_C, n_hidden_layers)
    x = jax.random.normal(kx, (N, hidden_size), jnp.float32)

    out = discriminator_forward(params, x,
                                n_hidden_layers=n_hidden_layers,
                                dim_B=dim_B, dim_C=dim_C)
    jax.block_until_ready(out)

    ref = reference_forward(raw, x, n_hidden_layers=n_hidden_layers,
                            dim_B=dim_B, dim_C=dim_C)

    assert out.shape == (N,)
    assert bool(jnp.all(jnp.isfinite(out)))
    assert bool(jnp.all((out >= 0.0) & (out <= 1.0)))
    max_err = float(jnp.max(jnp.abs(out - ref)))
    assert max_err < 5e-2, f"kernel vs f32 reference max |diff| = {max_err}"
    print("KERNEL_OK")
</pallas_src>

<mosaic_0001>
module attributes {stable_mosaic.version = 11 : i64} {
  func.func @_disc_kernel(%arg0: memref<8x128xf32, #tpu.memory_space<vmem>>, %arg1: memref<128x128xbf16, #tpu.memory_space<vmem>>, %arg2: memref<1x128xf32, #tpu.memory_space<vmem>>, %arg3: memref<128x128xbf16, #tpu.memory_space<vmem>>, %arg4: memref<1x128xf32, #tpu.memory_space<vmem>>, %arg5: memref<1x128x128xbf16, #tpu.memory_space<vmem>>, %arg6: memref<1x1x128xf32, #tpu.memory_space<vmem>>, %arg7: memref<128x128xbf16, #tpu.memory_space<vmem>>, %arg8: memref<1x128xf32, #tpu.memory_space<vmem>>, %arg9: memref<128x128xbf16, #tpu.memory_space<vmem>>, %arg10: memref<1x128xf32, #tpu.memory_space<vmem>>, %arg11: memref<128x2048xbf16, #tpu.memory_space<vmem>>, %arg12: memref<1x128xf32, #tpu.memory_space<vmem>>, %arg13: memref<1x128xf32, #tpu.memory_space<vmem>>, %arg14: memref<1xf32, #tpu.memory_space<smem>>, %arg15: memref<8x128xf32, #tpu.memory_space<vmem>>) attributes {dimension_semantics = [], scalar_prefetch = 0 : i64, scratch_operands = 0 : i64, tpu.core_type = #tpu.core_type<tc>} {
    %c0 = arith.constant 0 : index
    %c0_0 = arith.constant 0 : index
    %0 = vector.load %arg0[%c0, %c0_0] : memref<8x128xf32, #tpu.memory_space<vmem>>, vector<8x128xf32>
    %c0_1 = arith.constant 0 : index
    %c0_2 = arith.constant 0 : index
    %1 = vector.load %arg1[%c0_1, %c0_2] : memref<128x128xbf16, #tpu.memory_space<vmem>>, vector<128x128xbf16>
    %c0_3 = arith.constant 0 : index
    %c0_4 = arith.constant 0 : index
    %2 = vector.load %arg2[%c0_3, %c0_4] : memref<1x128xf32, #tpu.memory_space<vmem>>, vector<1x128xf32>
    %3 = arith.truncf %0 : vector<8x128xf32> to vector<8x128xbf16>
    %cst = arith.constant dense<0.000000e+00> : vector<8x128xf32>
    %4 = tpu.matmul %3, %1, %cst {dimension_numbers = #tpu.dot_dimension_numbers<[1], [0], [0], [1], [0, 0, 1, 1], [], []>} : vector<8x128xbf16>, vector<128x128xbf16>, vector<8x128xf32> -> vector<8x128xf32>
    %5 = vector.broadcast %2 : vector<1x128xf32> to vector<8x128xf32>
    %6 = arith.addf %4, %5 : vector<8x128xf32>
    %cst_5 = arith.constant 0.000000e+00 : f32
    %7 = vector.broadcast %cst_5 : f32 to vector<8x128xf32>
    %8 = arith.maximumf %6, %7 : vector<8x128xf32>
    %c0_6 = arith.constant 0 : index
    %c0_7 = arith.constant 0 : index
    %9 = vector.load %arg3[%c0_6, %c0_7] : memref<128x128xbf16, #tpu.memory_space<vmem>>, vector<128x128xbf16>
    %c0_8 = arith.constant 0 : index
    %c0_9 = arith.constant 0 : index
    %10 = vector.load %arg4[%c0_8, %c0_9] : memref<1x128xf32, #tpu.memory_space<vmem>>, vector<1x128xf32>
    %11 = arith.truncf %8 : vector<8x128xf32> to vector<8x128xbf16>
    %cst_10 = arith.constant dense<0.000000e+00> : vector<8x128xf32>
    %12 = tpu.matmul %11, %9, %cst_10 {dimension_numbers = #tpu.dot_dimension_numbers<[1], [0], [0], [1], [0, 0, 1, 1], [], []>} : vector<8x128xbf16>, vector<128x128xbf16>, vector<8x128xf32> -> vector<8x128xf32>
    %13 = vector.broadcast %10 : vector<1x128xf32> to vector<8x128xf32>
    %14 = arith.addf %12, %13 : vector<8x128xf32>
    %cst_11 = arith.constant 0.000000e+00 : f32
    %15 = vector.broadcast %cst_11 : f32 to vector<8x128xf32>
    %16 = arith.maximumf %14, %15 : vector<8x128xf32>
    %c0_12 = arith.constant 0 : index
    %c0_13 = arith.constant 0 : index
    %c0_14 = arith.constant 0 : index
    %17 = vector.load %arg5[%c0_12, %c0_13, %c0_14] : memref<1x128x128xbf16, #tpu.memory_space<vmem>>, vector<1x128x128xbf16>
    %18 = vector.shape_cast %17 : vector<1x128x128xbf16> to vector<128x128xbf16>
    %c0_15 = arith.constant 0 : index
    %c0_16 = arith.constant 0 : index
    %c0_17 = arith.constant 0 : index
    %19 = vector.load %arg6[%c0_15, %c0_16, %c0_17] : memref<1x1x128xf32, #tpu.memory_space<vmem>>, vector<1x1x128xf32>
    %20 = vector.shape_cast %19 : vector<1x1x128xf32> to vector<1x128xf32>
    %21 = arith.truncf %16 : vector<8x128xf32> to vector<8x128xbf16>
    %cst_18 = arith.constant dense<0.000000e+00> : vector<8x128xf32>
    %22 = tpu.matmul %21, %18, %cst_18 {dimension_numbers = #tpu.dot_dimension_numbers<[1], [0], [0], [1], [0, 0, 1, 1], [], []>} : vector<8x128xbf16>, vector<128x128xbf16>, vector<8x128xf32> -> vector<8x128xf32>
    %23 = vector.broadcast %20 : vector<1x128xf32> to vector<8x128xf32>
    %24 = arith.addf %22, %23 : vector<8x128xf32>
    %cst_19 = arith.constant 0.000000e+00 : f32
    %25 = vector.broadcast %cst_19 : f32 to vector<8x128xf32>
    %26 = arith.maximumf %24, %25 : vector<8x128xf32>
    %c0_20 = arith.constant 0 : index
    %c0_21 = arith.constant 0 : index
    %27 = vector.load %arg7[%c0_20, %c0_21] : memref<128x128xbf16, #tpu.memory_space<vmem>>, vector<128x128xbf16>
    %c0_22 = arith.constant 0 : index
    %c0_23 = arith.constant 0 : index
    %28 = vector.load %arg8[%c0_22, %c0_23] : memref<1x128xf32, #tpu.memory_space<vmem>>, vector<1x128xf32>
    %29 = arith.truncf %26 : vector<8x128xf32> to vector<8x128xbf16>
    %cst_24 = arith.constant dense<0.000000e+00> : vector<8x128xf32>
    %30 = tpu.matmul %29, %27, %cst_24 {dimension_numbers = #tpu.dot_dimension_numbers<[1], [0], [0], [1], [0, 0, 1, 1], [], []>} : vector<8x128xbf16>, vector<128x128xbf16>, vector<8x128xf32> -> vector<8x128xf32>
    %31 = vector.broadcast %28 : vector<1x128xf32> to vector<8x128xf32>
    %32 = arith.addf %30, %31 : vector<8x128xf32>
    %cst_25 = arith.constant 0.000000e+00 : f32
    %33 = vector.broadcast %cst_25 : f32 to vector<8x128xf32>
    %34 = arith.maximumf %32, %33 : vector<8x128xf32>
    %c0_26 = arith.constant 0 : index
    %c0_27 = arith.constant 0 : index
    %35 = vector.load %arg9[%c0_26, %c0_27] : memref<128x128xbf16, #tpu.memory_space<vmem>>, vector<128x128xbf16>
    %c0_28 = arith.constant 0 : index
    %c0_29 = arith.constant 0 : index
    %36 = vector.load %arg10[%c0_28, %c0_29] : memref<1x128xf32, #tpu.memory_space<vmem>>, vector<1x128xf32>
    %37 = arith.truncf %34 : vector<8x128xf32> to vector<8x128xbf16>
    %cst_30 = arith.constant dense<0.000000e+00> : vector<8x128xf32>
    %38 = tpu.matmul %37, %35, %cst_30 {dimension_numbers = #tpu.dot_dimension_numbers<[1], [0], [0], [1], [0, 0, 1, 1], [], []>} : vector<8x128xbf16>, vector<128x128xbf16>, vector<8x128xf32> -> vector<8x128xf32>
    %39 = vector.broadcast %36 : vector<1x128xf32> to vector<8x128xf32>
    %40 = arith.addf %38, %39 : vector<8x128xf32>
    %cst_31 = arith.constant 0.000000e+00 : f32
    %41 = vector.broadcast %cst_31 : f32 to vector<8x128xf32>
    %42 = arith.maximumf %40, %41 : vector<8x128xf32>
    %43 = arith.truncf %42 : vector<8x128xf32> to vector<8x128xbf16>
    %c0_32 = arith.constant 0 : index
    %c0_33 = arith.constant 0 : index
    %44 = vector.load %arg11[%c0_32, %c0_33] : memref<128x2048xbf16, #tpu.memory_space<vmem>>, vector<128x2048xbf16>
    %cst_34 = arith.constant dense<0.000000e+00> : vector<8x2048xf32>
    %45 = tpu.matmul %43, %44, %cst_34 {dimension_numbers = #tpu.dot_dimension_numbers<[1], [0], [0], [1], [0, 0, 1, 1], [], []>} : vector<8x128xbf16>, vector<128x2048xbf16>, vector<8x2048xf32> -> vector<8x2048xf32>
    %cst_35 = arith.constant 0.000000e+00 : f32
    %46 = vector.broadcast %cst_35 : f32 to vector<8x8x128xf32>
    %47 = vector.extract_strided_slice %45 {offsets = [0, 0], sizes = [8, 128], strides = [1, 1]} : vector<8x2048xf32> to vector<8x128xf32>
    %48 = vector.shape_cast %47 : vector<8x128xf32> to vector<8x1x128xf32>
    %49 = vector.shape_cast %47 : vector<8x128xf32> to vector<1x8x128xf32>
    %50 = vector.broadcast %48 : vector<8x1x128xf32> to vector<8x8x128xf32>
    %51 = vector.broadcast %49 : vector<1x8x128xf32> to vector<8x8x128xf32>
    %52 = arith.subf %50, %51 : vector<8x8x128xf32>
    %53 = math.absf %52 : vector<8x8x128xf32>
    %54 = arith.addf %46, %53 : vector<8x8x128xf32>
    %55 = vector.extract_strided_slice %45 {offsets = [0, 128], sizes = [8, 128], strides = [1, 1]} : vector<8x2048xf32> to vector<8x128xf32>
    %56 = vector.shape_cast %55 : vector<8x128xf32> to vector<8x1x128xf32>
    %57 = vector.shape_cast %55 : vector<8x128xf32> to vector<1x8x128xf32>
    %58 = vector.broadcast %56 : vector<8x1x128xf32> to vector<8x8x128xf32>
    %59 = vector.broadcast %57 : vector<1x8x128xf32> to vector<8x8x128xf32>
    %60 = arith.subf %58, %59 : vector<8x8x128xf32>
    %61 = math.absf %60 : vector<8x8x128xf32>
    %62 = arith.addf %54, %61 : vector<8x8x128xf32>
    %63 = vector.extract_strided_slice %45 {offsets = [0, 256], sizes = [8, 128], strides = [1, 1]} : vector<8x2048xf32> to vector<8x128xf32>
    %64 = vector.shape_cast %63 : vector<8x128xf32> to vector<8x1x128xf32>
    %65 = vector.shape_cast %63 : vector<8x128xf32> to vector<1x8x128xf32>
    %66 = vector.broadcast %64 : vector<8x1x128xf32> to vector<8x8x128xf32>
    %67 = vector.broadcast %65 : vector<1x8x128xf32> to vector<8x8x128xf32>
    %68 = arith.subf %66, %67 : vector<8x8x128xf32>
    %69 = math.absf %68 : vector<8x8x128xf32>
    %70 = arith.addf %62, %69 : vector<8x8x128xf32>
    %71 = vector.extract_strided_slice %45 {offsets = [0, 384], sizes = [8, 128], strides = [1, 1]} : vector<8x2048xf32> to vector<8x128xf32>
    %72 = vector.shape_cast %71 : vector<8x128xf32> to vector<8x1x128xf32>
    %73 = vector.shape_cast %71 : vector<8x128xf32> to vector<1x8x128xf32>
    %74 = vector.broadcast %72 : vector<8x1x128xf32> to vector<8x8x128xf32>
    %75 = vector.broadcast %73 : vector<1x8x128xf32> to vector<8x8x128xf32>
    %76 = arith.subf %74, %75 : vector<8x8x128xf32>
    %77 = math.absf %76 : vector<8x8x128xf32>
    %78 = arith.addf %70, %77 : vector<8x8x128xf32>
    %79 = vector.extract_strided_slice %45 {offsets = [0, 512], sizes = [8, 128], strides = [1, 1]} : vector<8x2048xf32> to vector<8x128xf32>
    %80 = vector.shape_cast %79 : vector<8x128xf32> to vector<8x1x128xf32>
    %81 = vector.shape_cast %79 : vector<8x128xf32> to vector<1x8x128xf32>
    %82 = vector.broadcast %80 : vector<8x1x128xf32> to vector<8x8x128xf32>
    %83 = vector.broadcast %81 : vector<1x8x128xf32> to vector<8x8x128xf32>
    %84 = arith.subf %82, %83 : vector<8x8x128xf32>
    %85 = math.absf %84 : vector<8x8x128xf32>
    %86 = arith.addf %78, %85 : vector<8x8x128xf32>
    %87 = vector.extract_strided_slice %45 {offsets = [0, 640], sizes = [8, 128], strides = [1, 1]} : vector<8x2048xf32> to vector<8x128xf32>
    %88 = vector.shape_cast %87 : vector<8x128xf32> to vector<8x1x128xf32>
    %89 = vector.shape_cast %87 : vector<8x128xf32> to vector<1x8x128xf32>
    %90 = vector.broadcast %88 : vector<8x1x128xf32> to vector<8x8x128xf32>
    %91 = vector.broadcast %89 : vector<1x8x128xf32> to vector<8x8x128xf32>
    %92 = arith.subf %90, %91 : vector<8x8x128xf32>
    %93 = math.absf %92 : vector<8x8x128xf32>
    %94 = arith.addf %86, %93 : vector<8x8x128xf32>
    %95 = vector.extract_strided_slice %45 {offsets = [0, 768], sizes = [8, 128], strides = [1, 1]} : vector<8x2048xf32> to vector<8x128xf32>
    %96 = vector.shape_cast %95 : vector<8x128xf32> to vector<8x1x128xf32>
    %97 = vector.shape_cast %95 : vector<8x128xf32> to vector<1x8x128xf32>
    %98 = vector.broadcast %96 : vector<8x1x128xf32> to vector<8x8x128xf32>
    %99 = vector.broadcast %97 : vector<1x8x128xf32> to vector<8x8x128xf32>
    %100 = arith.subf %98, %99 : vector<8x8x128xf32>
    %101 = math.absf %100 : vector<8x8x128xf32>
    %102 = arith.addf %94, %101 : vector<8x8x128xf32>
    %103 = vector.extract_strided_slice %45 {offsets = [0, 896], sizes = [8, 128], strides = [1, 1]} : vector<8x2048xf32> to vector<8x128xf32>
    %104 = vector.shape_cast %103 : vector<8x128xf32> to vector<8x1x128xf32>
    %105 = vector.shape_cast %103 : vector<8x128xf32> to vector<1x8x128xf32>
    %106 = vector.broadcast %104 : vector<8x1x128xf32> to vector<8x8x128xf32>
    %107 = vector.broadcast %105 : vector<1x8x128xf32> to vector<8x8x128xf32>
    %108 = arith.subf %106, %107 : vector<8x8x128xf32>
    %109 = math.absf %108 : vector<8x8x128xf32>
    %110 = arith.addf %102, %109 : vector<8x8x128xf32>
    %111 = vector.extract_strided_slice %45 {offsets = [0, 1024], sizes = [8, 128], strides = [1, 1]} : vector<8x2048xf32> to vector<8x128xf32>
    %112 = vector.shape_cast %111 : vector<8x128xf32> to vector<8x1x128xf32>
    %113 = vector.shape_cast %111 : vector<8x128xf32> to vector<1x8x128xf32>
    %114 = vector.broadcast %112 : vector<8x1x128xf32> to vector<8x8x128xf32>
    %115 = vector.broadcast %113 : vector<1x8x128xf32> to vector<8x8x128xf32>
    %116 = arith.subf %114, %115 : vector<8x8x128xf32>
    %117 = math.absf %116 : vector<8x8x128xf32>
    %118 = arith.addf %110, %117 : vector<8x8x128xf32>
    %119 = vector.extract_strided_slice %45 {offsets = [0, 1152], sizes = [8, 128], strides = [1, 1]} : vector<8x2048xf32> to vector<8x128xf32>
    %120 = vector.shape_cast %119 : vector<8x128xf32> to vector<8x1x128xf32>
    %121 = vector.shape_cast %119 : vector<8x128xf32> to vector<1x8x128xf32>
    %122 = vector.broadcast %120 : vector<8x1x128xf32> to vector<8x8x128xf32>
    %123 = vector.broadcast %121 : vector<1x8x128xf32> to vector<8x8x128xf32>
    %124 = arith.subf %122, %123 : vector<8x8x128xf32>
    %125 = math.absf %124 : vector<8x8x128xf32>
    %126 = arith.addf %118, %125 : vector<8x8x128xf32>
    %127 = vector.extract_strided_slice %45 {offsets = [0, 1280], sizes = [8, 128], strides = [1, 1]} : vector<8x2048xf32> to vector<8x128xf32>
    %128 = vector.shape_cast %127 : vector<8x128xf32> to vector<8x1x128xf32>
    %129 = vector.shape_cast %127 : vector<8x128xf32> to vector<1x8x128xf32>
    %130 = vector.broadcast %128 : vector<8x1x128xf32> to vector<8x8x128xf32>
    %131 = vector.broadcast %129 : vector<1x8x128xf32> to vector<8x8x128xf32>
    %132 = arith.subf %130, %131 : vector<8x8x128xf32>
    %133 = math.absf %132 : vector<8x8x128xf32>
    %134 = arith.addf %126, %133 : vector<8x8x128xf32>
    %135 = vector.extract_strided_slice %45 {offsets = [0, 1408], sizes = [8, 128], strides = [1, 1]} : vector<8x2048xf32> to vector<8x128xf32>
    %136 = vector.shape_cast %135 : vector<8x128xf32> to vector<8x1x128xf32>
    %137 = vector.shape_cast %135 : vector<8x128xf32> to vector<1x8x128xf32>
    %138 = vector.broadcast %136 : vector<8x1x128xf32> to vector<8x8x128xf32>
    %139 = vector.broadcast %137 : vector<1x8x128xf32> to vector<8x8x128xf32>
    %140 = arith.subf %138, %139 : vector<8x8x128xf32>
    %141 = math.absf %140 : vector<8x8x128xf32>
    %142 = arith.addf %134, %141 : vector<8x8x128xf32>
    %143 = vector.extract_strided_slice %45 {offsets = [0, 1536], sizes = [8, 128], strides = [1, 1]} : vector<8x2048xf32> to vector<8x128xf32>
    %144 = vector.shape_cast %143 : vector<8x128xf32> to vector<8x1x128xf32>
    %145 = vector.shape_cast %143 : vector<8x128xf32> to vector<1x8x128xf32>
    %146 = vector.broadcast %144 : vector<8x1x128xf32> to vector<8x8x128xf32>
    %147 = vector.broadcast %145 : vector<1x8x128xf32> to vector<8x8x128xf32>
    %148 = arith.subf %146, %147 : vector<8x8x128xf32>
    %149 = math.absf %148 : vector<8x8x128xf32>
    %150 = arith.addf %142, %149 : vector<8x8x128xf32>
    %151 = vector.extract_strided_slice %45 {offsets = [0, 1664], sizes = [8, 128], strides = [1, 1]} : vector<8x2048xf32> to vector<8x128xf32>
    %152 = vector.shape_cast %151 : vector<8x128xf32> to vector<8x1x128xf32>
    %153 = vector.shape_cast %151 : vector<8x128xf32> to vector<1x8x128xf32>
    %154 = vector.broadcast %152 : vector<8x1x128xf32> to vector<8x8x128xf32>
    %155 = vector.broadcast %153 : vector<1x8x128xf32> to vector<8x8x128xf32>
    %156 = arith.subf %154, %155 : vector<8x8x128xf32>
    %157 = math.absf %156 : vector<8x8x128xf32>
    %158 = arith.addf %150, %157 : vector<8x8x128xf32>
    %159 = vector.extract_strided_slice %45 {offsets = [0, 1792], sizes = [8, 128], strides = [1, 1]} : vector<8x2048xf32> to vector<8x128xf32>
    %160 = vector.shape_cast %159 : vector<8x128xf32> to vector<8x1x128xf32>
    %161 = vector.shape_cast %159 : vector<8x128xf32> to vector<1x8x128xf32>
    %162 = vector.broadcast %160 : vector<8x1x128xf32> to vector<8x8x128xf32>
    %163 = vector.broadcast %161 : vector<1x8x128xf32> to vector<8x8x128xf32>
    %164 = arith.subf %162, %163 : vector<8x8x128xf32>
    %165 = math.absf %164 : vector<8x8x128xf32>
    %166 = arith.addf %158, %165 : vector<8x8x128xf32>
    %167 = vector.extract_strided_slice %45 {offsets = [0, 1920], sizes = [8, 128], strides = [1, 1]} : vector<8x2048xf32> to vector<8x128xf32>
    %168 = vector.shape_cast %167 : vector<8x128xf32> to vector<8x1x128xf32>
    %169 = vector.shape_cast %167 : vector<8x128xf32> to vector<1x8x128xf32>
    %170 = vector.broadcast %168 : vector<8x1x128xf32> to vector<8x8x128xf32>
    %171 = vector.broadcast %169 : vector<1x8x128xf32> to vector<8x8x128xf32>
    %172 = arith.subf %170, %171 : vector<8x8x128xf32>
    %173 = math.absf %172 : vector<8x8x128xf32>
    %174 = arith.addf %166, %173 : vector<8x8x128xf32>
    %cst_36 = arith.constant 0.000000e+00 : f32
    %175 = vector.broadcast %cst_36 : f32 to vector<8x8x128xf32>
    %176 = arith.subf %175, %174 : vector<8x8x128xf32>
    %177 = math.exp %176 : vector<8x8x128xf32>
    %cst_37 = arith.constant dense<0.000000e+00> : vector<8x128xf32>
    %178 = vector.multi_reduction <add>, %177, %cst_37 [1] : vector<8x8x128xf32> to vector<8x128xf32>
    %c0_38 = arith.constant 0 : index
    %c0_39 = arith.constant 0 : index
    %179 = vector.load %arg12[%c0_38, %c0_39] : memref<1x128xf32, #tpu.memory_space<vmem>>, vector<1x128xf32>
    %180 = vector.broadcast %179 : vector<1x128xf32> to vector<8x128xf32>
    %181 = arith.mulf %42, %180 : vector<8x128xf32>
    %cst_40 = arith.constant dense<0.000000e+00> : vector<8xf32>
    %182 = vector.multi_reduction <add>, %181, %cst_40 [1] : vector<8x128xf32> to vector<8xf32>
    %183 = vector.shape_cast %182 : vector<8xf32> to vector<8x1xf32>
    %c0_41 = arith.constant 0 : index
    %c0_42 = arith.constant 0 : index
    %184 = vector.load %arg13[%c0_41, %c0_42] : memref<1x128xf32, #tpu.memory_space<vmem>>, vector<1x128xf32>
    %185 = vector.broadcast %184 : vector<1x128xf32> to vector<8x128xf32>
    %186 = arith.mulf %178, %185 : vector<8x128xf32>
    %cst_43 = arith.constant dense<0.000000e+00> : vector<8xf32>
    %187 = vector.multi_reduction <add>, %186, %cst_43 [1] : vector<8x128xf32> to vector<8xf32>
    %188 = vector.shape_cast %187 : vector<8xf32> to vector<8x1xf32>
    %189 = arith.addf %183, %188 : vector<8x1xf32>
    %c0_44 = arith.constant 0 : index
    %190 = memref.load %arg14[%c0_44] : memref<1xf32, #tpu.memory_space<smem>>
    %191 = vector.broadcast %190 : f32 to vector<8x1xf32>
    %192 = arith.addf %189, %191 : vector<8x1xf32>
    %193 = arith.negf %192 : vector<8x1xf32>
    %194 = math.exp %193 : vector<8x1xf32>
    %cst_45 = arith.constant 1.000000e+00 : f32
    %195 = vector.broadcast %cst_45 : f32 to vector<8x1xf32>
    %196 = arith.addf %195, %194 : vector<8x1xf32>
    %197 = arith.divf %195, %196 : vector<8x1xf32>
    %198 = vector.shape_cast %197 : vector<8x1xf32> to vector<8x1xf32>
    %199 = vector.broadcast %198 : vector<8x1xf32> to vector<8x128xf32>
    %c0_46 = arith.constant 0 : index
    %c0_47 = arith.constant 0 : index
    %200 = vector.load %arg15[%c0_46, %c0_47] : memref<8x128xf32, #tpu.memory_space<vmem>>, vector<8x128xf32>
    tpu.vector_store %arg15[%c0_46, %c0_47], %199 {strides = array<i32>} : memref<8x128xf32, #tpu.memory_space<vmem>>, vector<8x128xf32>,
    return
  }
}

</mosaic_0001>

<llo_original>
// kernel: discriminator_forward.1
$region0: #{discriminator_forward.1}
  #allocation0 [shape = 'u32[]', space=smem, size = 0x4, offset = 0x4, fixed_abs, tag = 'smem constant byte address 0x4 - core index']
  #allocation1 [shape = 'u32[144,128]{1,0:T(1,128)}', space=vmem, size = 0x12000, scoped, tag = 'internal scratch']
  #allocation2 [shape = 'f32[1]{0:T(128)S(6)}', space=smem, size = 0x200, scoped, tag = 'scoped memory for discriminator_forward.1']
  %s0 = inlined_call_operand.vmem [shape: f32[8,128], index: 0, kind: input, shape index: {}]
  %s1 = inlined_call_operand.hbm [shape: bf16[128,128], index: 1, kind: input, shape index: {}]
  %s2 = inlined_call_operand.vmem [shape: f32[1,128], index: 2, kind: input, shape index: {}]
  %s3 = inlined_call_operand.hbm [shape: bf16[128,128], index: 3, kind: input, shape index: {}]
  %s4 = inlined_call_operand.vmem [shape: f32[1,128], index: 4, kind: input, shape index: {}]
  %s5 = inlined_call_operand.hbm [shape: bf16[1,128,128], index: 5, kind: input, shape index: {}]
  %s6 = inlined_call_operand.hbm [shape: f32[1,1,128], index: 6, kind: input, shape index: {}]
  %s7 = inlined_call_operand.hbm [shape: bf16[128,128], index: 7, kind: input, shape index: {}]
  %s8 = inlined_call_operand.hbm [shape: f32[1,128], index: 8, kind: input, shape index: {}]
  %s9 = inlined_call_operand.vmem [shape: bf16[128,128], index: 9, kind: input, shape index: {}]
  %s10 = inlined_call_operand.hbm [shape: f32[1,128], index: 10, kind: input, shape index: {}]
  %s11 = inlined_call_operand.hbm [shape: bf16[128,2048], index: 11, kind: input, shape index: {}]
  %s12 = inlined_call_operand.hbm [shape: f32[1,128], index: 12, kind: input, shape index: {}]
  %s13 = inlined_call_operand.hbm [shape: f32[1,128], index: 13, kind: input, shape index: {}]
  %s14 = inlined_call_operand.<no memory space> [shape: f32[1], index: 14, kind: input, shape index: {}]
  %s15 = inlined_call_operand.vmem [shape: f32[8,128], index: 15, kind: output, shape index: {}]
  %s16 = sld [smem:[#allocation0]]
  $region110: #{discriminator_forward.1} parent=0
    _
  %s18 = ssub.s32 1, %s16
  %s19 = scalar_select 0, %s18, %s16
  %20 = sst [smem:[#allocation2]] %s14
  $region1: #{discriminator_forward.1} parent=0
    #allocation3 [shape = 'u8[32768]{0}', space=vmem, size = 0x8000, scoped, tag = 'input window, operand 1, single buffered']
    #allocation4 [shape = 's32[1]{0}', space=sflag, size = 0x4, scoped, tag = 'scoped memory for discriminator_forward.1']
    #allocation5 [shape = 'u8[32768]{0}', space=vmem, size = 0x8000, scoped, tag = 'input window, operand 3, single buffered']
    #allocation6 [shape = 's32[1]{0}', space=sflag, size = 0x4, scoped, tag = 'scoped memory for discriminator_forward.1']
    #allocation7 [shape = 'u8[32768]{0}', space=vmem, size = 0x8000, scoped, tag = 'input window, operand 5, single buffered']
    #allocation8 [shape = 'u8[512]{0}', space=vmem, size = 0x400, scoped, tag = 'input window, operand 6, single buffered']
    #allocation9 [shape = 's32[1]{0}', space=sflag, size = 0x4, scoped, tag = 'scoped memory for discriminator_forward.1']
    #allocation10 [shape = 'u8[32768]{0}', space=vmem, size = 0x8000, scoped, tag = 'input window, operand 7, single buffered']
    #allocation11 [shape = 'u8[512]{0}', space=vmem, size = 0x400, scoped, tag = 'input window, operand 8, single buffered']
    #allocation12 [shape = 's32[1]{0}', space=sflag, size = 0x4, scoped, tag = 'scoped memory for discriminator_forward.1']
    #allocation13 [shape = 'u8[512]{0}', space=vmem, size = 0x400, scoped, tag = 'input window, operand 10, single buffered']
    #allocation14 [shape = 'u8[524288]{0}', space=vmem, size = 0x80000, scoped, tag = 'input window, operand 11, single buffered']
    #allocation15 [shape = 's32[1]{0}', space=sflag, size = 0x4, scoped, tag = 'scoped memory for discriminator_forward.1']
    #allocation16 [shape = 'u8[512]{0}', space=vmem, size = 0x400, scoped, tag = 'input window, operand 12, single buffered']
    #allocation17 [shape = 'u8[512]{0}', space=vmem, size = 0x400, scoped, tag = 'input window, operand 13, single buffered']
    #allocation18 [shape = 's32[1]{0}', space=sflag, size = 0x4, scoped, tag = 'scoped memory for discriminator_forward.1']
    %21 = vsyncpa [#allocation4], 0
    %22 = vsyncpa [#allocation6], 0
    %23 = vsyncpa [#allocation9], 0
    %24 = vsyncpa [#allocation12], 0
    %25 = vsyncpa [#allocation15], 0
    %26 = vsyncpa [#allocation18], 0
    // Predicated region
    $region2: #{discriminator_forward.1} parent=1 // pred_check
      _
    $region3: #{discriminator_forward.1} parent=1 // pred_check_branch
      %28 = sbr.rel (0) target = $region5
    $region4: #{discriminator_forward.1} parent=1 // pred_region
      _
    $region5: #{discriminator_forward.1} parent=1 // pred_fallthru
      _
    // Predicated region
    $region6: #{discriminator_forward.1} parent=1 // pred_check
      _
    $region7: #{discriminator_forward.1} parent=1 // pred_check_branch
      %30 = sbr.rel (0) target = $region9
    $region8: #{discriminator_forward.1} parent=1 // pred_region
      %s32 = ssub.s32 1024, 1024
      %33 = vsyncadd [#allocation4], %s32
      %s34 = sshll.u32 [#allocation3], 4
      %s35 = int_to_ptr.vmem [resolvable:$true] %s34
      %40 = dma.hbm_to_vmem [thread:$0]  %s1, 1024, %s35, [#allocation4], 64, 64, 4
    $region9: #{discriminator_forward.1} parent=1 // pred_fallthru
      _
    // Predicated region
    $region10: #{discriminator_forward.1} parent=1 // pred_check
      _
    $region11: #{discriminator_forward.1} parent=1 // pred_check_branch
      %42 = sbr.rel (0) target = $region13
    $region12: #{discriminator_forward.1} parent=1 // pred_region
      _
    $region13: #{discriminator_forward.1} parent=1 // pred_fallthru
      _
    // Predicated region
    $region14: #{discriminator_forward.1} parent=1 // pred_check
      _
    $region15: #{discriminator_forward.1} parent=1 // pred_check_branch
      %44 = sbr.rel (0) target = $region17
    $region16: #{discriminator_forward.1} parent=1 // pred_region
      %s46 = ssub.s32 1024, 1024
      %47 = vsyncadd [#allocation6], %s46
      %s48 = sshll.u32 [#allocation5], 4
      %s49 = int_to_ptr.vmem [resolvable:$true] %s48
      %54 = dma.hbm_to_vmem [thread:$0]  %s3, 1024, %s49, [#allocation6], 64, 64, 4
    $region17: #{discriminator_forward.1} parent=1 // pred_fallthru
      _
    // Predicated region
    $region18: #{discriminator_forward.1} parent=1 // pred_check
      _
    $region19: #{discriminator_forward.1} parent=1 // pred_check_branch
      %56 = sbr.rel (0) target = $region21
    $region20: #{discriminator_forward.1} parent=1 // pred_region
      _
    $region21: #{discriminator_forward.1} parent=1 // pred_fallthru
      _
    // Predicated region
    $region22: #{discriminator_forward.1} parent=1 // pred_check
      _
    $region23: #{discriminator_forward.1} parent=1 // pred_check_branch
      %58 = sbr.rel (0) target = $region25
    $region24: #{discriminator_forward.1} parent=1 // pred_region
      %s60 = ssub.s32 1024, 1024
      %61 = vsyncadd [#allocation6], %s60
      %s62 = sshll.u32 [#allocation7], 4
      %s63 = int_to_ptr.vmem [resolvable:$true] %s62
      %68 = dma.hbm_to_vmem [thread:$0]  %s5, 1024, %s63, [#allocation6], 64, 64, 4
    $region25: #{discriminator_forward.1} parent=1 // pred_fallthru
      _
    // Predicated region
    $region26: #{discriminator_forward.1} parent=1 // pred_check
      _
    $region27: #{discriminator_forward.1} parent=1 // pred_check_branch
      %70 = sbr.rel (0) target = $region29
    $region28: #{discriminator_forward.1} parent=1 // pred_region
      %s72 = ssub.s32 16, 16
      %73 = vsyncadd [#allocation9], %s72
      %s75 = sshll.u32 [#allocation8], 4
      %s76 = int_to_ptr.vmem [resolvable:$true] %s75
      %78 = dma.hbm_to_vmem [thread:$0]  %s6, 16, %s76, [#allocation9]
    $region29: #{discriminator_forward.1} parent=1 // pred_fallthru
      _
    // Predicated region
    $region30: #{discriminator_forward.1} parent=1 // pred_check
      _
    $region31: #{discriminator_forward.1} parent=1 // pred_check_branch
      %80 = sbr.rel (0) target = $region33
    $region32: #{discriminator_forward.1} parent=1 // pred_region
      %s82 = ssub.s32 1024, 1024
      %83 = vsyncadd [#allocation9], %s82
      %s84 = sshll.u32 [#allocation10], 4
      %s85 = int_to_ptr.vmem [resolvable:$true] %s84
      %90 = dma.hbm_to_vmem [thread:$0]  %s7, 1024, %s85, [#allocation9], 64, 64, 4
    $region33: #{discriminator_forward.1} parent=1 // pred_fallthru
      _
    // Predicated region
    $region34: #{discriminator_forward.1} parent=1 // pred_check
      _
    $region35: #{discriminator_forward.1} parent=1 // pred_check_branch
      %92 = sbr.rel (0) target = $region37
    $region36: #{discriminator_forward.1} parent=1 // pred_region
      %s94 = ssub.s32 16, 16
      %95 = vsyncadd [#allocation12], %s94
      %s97 = sshll.u32 [#allocation11], 4
      %s98 = int_to_ptr.vmem [resolvable:$true] %s97
      %100 = dma.hbm_to_vmem [thread:$0]  %s8, 16, %s98, [#allocation12]
    $region37: #{discriminator_forward.1} parent=1 // pred_fallthru
      _
    // Predicated region
    $region38: #{discriminator_forward.1} parent=1 // pred_check
      _
    $region39: #{discriminator_forward.1} parent=1 // pred_check_branch
      %102 = sbr.rel (0) target = $region41
    $region40: #{discriminator_forward.1} parent=1 // pred_region
      _
    $region41: #{discriminator_forward.1} parent=1 // pred_fallthru
      _
    // Predicated region
    $region42: #{discriminator_forward.1} parent=1 // pred_check
      _
    $region43: #{discriminator_forward.1} parent=1 // pred_check_branch
      %104 = sbr.rel (0) target = $region45
    $region44: #{discriminator_forward.1} parent=1 // pred_region
      %s106 = ssub.s32 16, 16
      %107 = vsyncadd [#allocation12], %s106
      %s109 = sshll.u32 [#allocation13], 4
      %s110 = int_to_ptr.vmem [resolvable:$true] %s109
      %112 = dma.hbm_to_vmem [thread:$0]  %s10, 16, %s110, [#allocation12]
    $region45: #{discriminator_forward.1} parent=1 // pred_fallthru
      _
    // Predicated region
    $region46: #{discriminator_forward.1} parent=1 // pred_check
      _
    $region47: #{discriminator_forward.1} parent=1 // pred_check_branch
      %114 = sbr.rel (0) target = $region49
    $region48: #{discriminator_forward.1} parent=1 // pred_region
      %s116 = ssub.s32 16384, 16384
      %117 = vsyncadd [#allocation15], %s116
      %s118 = sshll.u32 [#allocation14], 4
      %s119 = int_to_ptr.vmem [resolvable:$true] %s118
      %124 = dma.hbm_to_vmem [thread:$0]  %s11, 16384, %s119, [#allocation15], 1024, 1024, 64
    $region49: #{discriminator_forward.1} parent=1 // pred_fallthru
      _
    // Predicated region
    $region50: #{discriminator_forward.1} parent=1 // pred_check
      _
    $region51: #{discriminator_forward.1} parent=1 // pred_check_branch
      %126 = sbr.rel (0) target = $region53
    $region52: #{discriminator_forward.1} parent=1 // pred_region
      %s128 = ssub.s32 16, 16
      %129 = vsyncadd [#allocation15], %s128
      %s131 = sshll.u32 [#allocation16], 4
      %s132 = int_to_ptr.vmem [resolvable:$true] %s131
      %134 = dma.hbm_to_vmem [thread:$0]  %s12, 16, %s132, [#allocation15]
    $region53: #{discriminator_forward.1} parent=1 // pred_fallthru
      _
    // Predicated region
    $region54: #{discriminator_forward.1} parent=1 // pred_check
      _
    $region55: #{discriminator_forward.1} parent=1 // pred_check_branch
      %136 = sbr.rel (0) target = $region57
    $region56: #{discriminator_forward.1} parent=1 // pred_region
      %s138 = ssub.s32 16, 16
      %139 = vsyncadd [#allocation18], %s138
      %s141 = sshll.u32 [#allocation17], 4
      %s142 = int_to_ptr.vmem [resolvable:$true] %s141
      %144 = dma.hbm_to_vmem [thread:$0]  %s13, 16, %s142, [#allocation18]
    $region57: #{discriminator_forward.1} parent=1 // pred_fallthru
      _
    // Predicated region
    $region58: #{discriminator_forward.1} parent=1 // pred_check
      _
    $region59: #{discriminator_forward.1} parent=1 // pred_check_branch
      %146 = sbr.rel (0) target = $region61
    $region60: #{discriminator_forward.1} parent=1 // pred_region
      _
    $region61: #{discriminator_forward.1} parent=1 // pred_fallthru
      _
    // Predicated region
    $region62: #{discriminator_forward.1} parent=1 // pred_check
      _
    $region63: #{discriminator_forward.1} parent=1 // pred_check_branch
      %148 = sbr.rel (0) target = $region65
    $region64: #{discriminator_forward.1} parent=1 // pred_region
      %149 = dma.done [#allocation4], 1024
    $region65: #{discriminator_forward.1} parent=1 // pred_fallthru
      _
    // Predicated region
    $region66: #{discriminator_forward.1} parent=1 // pred_check
      _
    $region67: #{discriminator_forward.1} parent=1 // pred_check_branch
      %151 = sbr.rel (0) target = $region69
    $region68: #{discriminator_forward.1} parent=1 // pred_region
      %152 = dma.done [#allocation6], 1024
    $region69: #{discriminator_forward.1} parent=1 // pred_fallthru
      _
    // Predicated region
    $region70: #{discriminator_forward.1} parent=1 // pred_check
      _
    $region71: #{discriminator_forward.1} parent=1 // pred_check_branch
      %154 = sbr.rel (0) target = $region73
    $region72: #{discriminator_forward.1} parent=1 // pred_region
      %155 = dma.done [#allocation6], 1024
    $region73: #{discriminator_forward.1} parent=1 // pred_fallthru
      _
    // Predicated region
    $region74: #{discriminator_forward.1} parent=1 // pred_check
      _
    $region75: #{discriminator_forward.1} parent=1 // pred_check_branch
      %157 = sbr.rel (0) target = $region77
    $region76: #{discriminator_forward.1} parent=1 // pred_region
      %158 = dma.done [#allocation9], 16
    $region77: #{discriminator_forward.1} parent=1 // pred_fallthru
      _
    // Predicated region
    $region78: #{discriminator_forward.1} parent=1 // pred_check
      _
    $region79: #{discriminator_forward.1} parent=1 // pred_check_branch
      %160 = sbr.rel (0) target = $region81
    $region80: #{discriminator_forward.1} parent=1 // pred_region
      %161 = dma.done [#allocation9], 1024
    $region81: #{discriminator_forward.1} parent=1 // pred_fallthru
      _
    // Predicated region
    $region82: #{discriminator_forward.1} parent=1 // pred_check
      _
    $region83: #{discriminator_forward.1} parent=1 // pred_check_branch
      %163 = sbr.rel (0) target = $region85
    $region84: #{discriminator_forward.1} parent=1 // pred_region
      %164 = dma.done [#allocation12], 16
    $region85: #{discriminator_forward.1} parent=1 // pred_fallthru
      _
    // Predicated region
    $region86: #{discriminator_forward.1} parent=1 // pred_check
      _
    $region87: #{discriminator_forward.1} parent=1 // pred_check_branch
      %166 = sbr.rel (0) target = $region89
    $region88: #{discriminator_forward.1} parent=1 // pred_region
      %167 = dma.done [#allocation12], 16
    $region89: #{discriminator_forward.1} parent=1 // pred_fallthru
      _
    // Predicated region
    $region90: #{discriminator_forward.1} parent=1 // pred_check
      _
    $region91: #{discriminator_forward.1} parent=1 // pred_check_branch
      %169 = sbr.rel (0) target = $region93
    $region92: #{discriminator_forward.1} parent=1 // pred_region
      %170 = dma.done [#allocation15], 16384
    $region93: #{discriminator_forward.1} parent=1 // pred_fallthru
      _
    // Predicated region
    $region94: #{discriminator_forward.1} parent=1 // pred_check
      _
    $region95: #{discriminator_forward.1} parent=1 // pred_check_branch
      %172 = sbr.rel (0) target = $region97
    $region96: #{discriminator_forward.1} parent=1 // pred_region
      %173 = dma.done [#allocation15], 16
    $region97: #{discriminator_forward.1} parent=1 // pred_fallthru
      _
    // Predicated region
    $region98: #{discriminator_forward.1} parent=1 // pred_check
      _
    $region99: #{discriminator_forward.1} parent=1 // pred_check_branch
      %175 = sbr.rel (0) target = $region101
    $region100: #{discriminator_forward.1} parent=1 // pred_region
      %176 = dma.done [#allocation18], 16
    $region101: #{discriminator_forward.1} parent=1 // pred_fallthru
      _
    %v178 = vld [vmem:[%s0] sm:$0xff]
    %v179 = vld [vmem:[#allocation3] sm:$0xf]
    %v180 = vld [vmem:[#allocation3 + $0x4] sm:$0xf]
    %v181 = vld [vmem:[#allocation3 + $0x8] sm:$0xf]
    %v182 = vld [vmem:[#allocation3 + $0xc] sm:$0xf]
    %v183 = vld [vmem:[#allocation3 + $0x10] sm:$0xf]
    %v184 = vld [vmem:[#allocation3 + $0x14] sm:$0xf]
    %v185 = vld [vmem:[#allocation3 + $0x18] sm:$0xf]
    %v186 = vld [vmem:[#allocation3 + $0x1c] sm:$0xf]
    %v187 = vld [vmem:[#allocation3 + $0x20] sm:$0xf]
    %v188 = vld [vmem:[#allocation3 + $0x24] sm:$0xf]
    %v189 = vld [vmem:[#allocation3 + $0x28] sm:$0xf]
    %v190 = vld [vmem:[#allocation3 + $0x2c] sm:$0xf]
    %v191 = vld [vmem:[#allocation3 + $0x30] sm:$0xf]
    %v192 = vld [vmem:[#allocation3 + $0x34] sm:$0xf]
    %v193 = vld [vmem:[#allocation3 + $0x38] sm:$0xf]
    %v194 = vld [vmem:[#allocation3 + $0x3c] sm:$0xf]
    %v195 = vld [vmem:[%s2] sm:$0x1]
    %v196 = vpack.c.bf16 %v178, %v178
    %v198 = vlaneseq
    %v199 = vshrl.u32 %v198, 7
    %v200 = vsub.s32 0, %v199
    %v201 = vrot.slane %v195, %v200
    %v219 = vunpack.c.l.b16 %v179
    %v220 = vunpack.c.l.b16 %v180
    %v221 = vunpack.c.l.b16 %v181
    %v222 = vunpack.c.l.b16 %v182
    %v223 = vunpack.c.l.b16 %v183
    %v224 = vunpack.c.l.b16 %v184
    %v225 = vunpack.c.l.b16 %v185
    %v226 = vunpack.c.l.b16 %v186
    %v227 = vunpack.c.l.b16 %v187
    %v228 = vunpack.c.l.b16 %v188
    %v229 = vunpack.c.l.b16 %v189
    %v230 = vunpack.c.l.b16 %v190
    %v231 = vunpack.c.l.b16 %v191
    %v232 = vunpack.c.l.b16 %v192
    %v233 = vunpack.c.l.b16 %v193
    %v234 = vunpack.c.l.b16 %v194
    %v235 = vpack.c.b16 %v220, %v219
    %v236 = vpack.c.b16 %v222, %v221
    %v237 = vpack.c.b16 %v224, %v223
    %v238 = vpack.c.b16 %v226, %v225
    %v239 = vpack.c.b16 %v228, %v227
    %v240 = vpack.c.b16 %v230, %v229
    %v241 = vpack.c.b16 %v232, %v231
    %v242 = vpack.c.b16 %v234, %v233
    %251 = vmatprep.subr.bf16.mxu0 0
    %252 = vmatpush1.bf16.msra.mxu0 %v235
    %253 = vmatprep.subr.bf16.mxu0 0
    %254 = vmatpush1.bf16.msra.mxu0 %v236
    %255 = vmatprep.subr.bf16.mxu0 0
    %256 = vmatpush1.bf16.msra.mxu0 %v237
    %257 = vmatprep.subr.bf16.mxu0 0
    %258 = vmatpush1.bf16.msra.mxu0 %v238
    %259 = vmatprep.subr.bf16.mxu0 0
    %260 = vmatpush1.bf16.msra.mxu0 %v239
    %261 = vmatprep.subr.bf16.mxu0 0
    %262 = vmatpush1.bf16.msra.mxu0 %v240
    %263 = vmatprep.subr.bf16.mxu0 0
    %264 = vmatpush1.bf16.msra.mxu0 %v241
    %265 = vmatprep.subr.bf16.mxu0 0
    %266 = vmatpush1.bf16.msra.mxu0 %v242
    %267 = vmatprep.subr.bf16.mxu0 0
    %268 = vmatpush1.bf16.msra.mxu0 0
    %269 = vmatprep.subr.bf16.mxu0 0
    %270 = vmatpush1.bf16.msra.mxu0 0
    %271 = vmatprep.subr.bf16.mxu0 0
    %272 = vmatpush1.bf16.msra.mxu0 0
    %273 = vmatprep.subr.bf16.mxu0 0
    %274 = vmatpush1.bf16.msra.mxu0 0
    %275 = vmatprep.subr.bf16.mxu0 0
    %276 = vmatpush1.bf16.msra.mxu0 0
    %277 = vmatprep.subr.bf16.mxu0 0
    %278 = vmatpush1.bf16.msra.mxu0 0
    %279 = vmatprep.subr.bf16.mxu0 0
    %280 = vmatpush1.bf16.msra.mxu0 0
    %281 = vmatprep.subr.bf16.mxu0 0
    %282 = vmatpush1.bf16.msra.mxu0 0
    %283 = vmatprep.mubr.bf16.mxu0 0
    %284 = vmatmul.mubr.bf16.gmra.mrb[0].mxu0 %v196
    %v285 = vpop.f32.mrb[0].mxu0
    %v286 = vadd.f32 %v201, %v285
    %v287 = vpop.f32.mrb[0].mxu0
    %v288 = vpop.f32.mrb[0].mxu0
    %v289 = vpop.f32.mrb[0].mxu0
    %290 = vdwg.mxu0
    %v291 = vmax.f32 %v286, 0.0
    %v292 = vld [vmem:[#allocation5] sm:$0xf]
    %v293 = vld [vmem:[#allocation5 + $0x4] sm:$0xf]
    %v294 = vld [vmem:[#allocation5 + $0x8] sm:$0xf]
    %v295 = vld [vmem:[#allocation5 + $0xc] sm:$0xf]
    %v296 = vld [vmem:[#allocation5 + $0x10] sm:$0xf]
    %v297 = vld [vmem:[#allocation5 + $0x14] sm:$0xf]
    %v298 = vld [vmem:[#allocation5 + $0x18] sm:$0xf]
    %v299 = vld [vmem:[#allocation5 + $0x1c] sm:$0xf]
    %v300 = vld [vmem:[#allocation5 + $0x20] sm:$0xf]
    %v301 = vld [vmem:[#allocation5 + $0x24] sm:$0xf]
    %v302 = vld [vmem:[#allocation5 + $0x28] sm:$0xf]
    %v303 = vld [vmem:[#allocation5 + $0x2c] sm:$0xf]
    %v304 = vld [vmem:[#allocation5 + $0x30] sm:$0xf]
    %v305 = vld [vmem:[#allocation5 + $0x34] sm:$0xf]
    %v306 = vld [vmem:[#allocation5 + $0x38] sm:$0xf]
    %v307 = vld [vmem:[#allocation5 + $0x3c] sm:$0xf]
    %v308 = vld [vmem:[%s4] sm:$0x1]
    %v309 = vpack.c.bf16 %v291, %v291
    %v311 = vlaneseq
    %v312 = vshrl.u32 %v311, 7
    %v313 = vsub.s32 0, %v312
    %v314 = vrot.slane %v308, %v313
    %v332 = vunpack.c.l.b16 %v292
    %v333 = vunpack.c.l.b16 %v293
    %v334 = vunpack.c.l.b16 %v294
    %v335 = vunpack.c.l.b16 %v295
    %v336 = vunpack.c.l.b16 %v296
    %v337 = vunpack.c.l.b16 %v297
    %v338 = vunpack.c.l.b16 %v298
    %v339 = vunpack.c.l.b16 %v299
    %v340 = vunpack.c.l.b16 %v300
    %v341 = vunpack.c.l.b16 %v301
    %v342 = vunpack.c.l.b16 %v302
    %v343 = vunpack.c.l.b16 %v303
    %v344 = vunpack.c.l.b16 %v304
    %v345 = vunpack.c.l.b16 %v305
    %v346 = vunpack.c.l.b16 %v306
    %v347 = vunpack.c.l.b16 %v307
    %v348 = vpack.c.b16 %v333, %v332
    %v349 = vpack.c.b16 %v335, %v334
    %v350 = vpack.c.b16 %v337, %v336
    %v351 = vpack.c.b16 %v339, %v338
    %v352 = vpack.c.b16 %v341, %v340
    %v353 = vpack.c.b16 %v343, %v342
    %v354 = vpack.c.b16 %v345, %v344
    %v355 = vpack.c.b16 %v347, %v346
    %364 = vmatprep.subr.bf16.mxu0 0
    %365 = vmatpush1.bf16.msra.mxu0 %v348
    %366 = vmatprep.subr.bf16.mxu0 0
    %367 = vmatpush1.bf16.msra.mxu0 %v349
    %368 = vmatprep.subr.bf16.mxu0 0
    %369 = vmatpush1.bf16.msra.mxu0 %v350
    %370 = vmatprep.subr.bf16.mxu0 0
    %371 = vmatpush1.bf16.msra.mxu0 %v351
    %372 = vmatprep.subr.bf16.mxu0 0
    %373 = vmatpush1.bf16.msra.mxu0 %v352
    %374 = vmatprep.subr.bf16.mxu0 0
    %375 = vmatpush1.bf16.msra.mxu0 %v353
    %376 = vmatprep.subr.bf16.mxu0 0
    %377 = vmatpush1.bf16.msra.mxu0 %v354
    %378 = vmatprep.subr.bf16.mxu0 0
    %379 = vmatpush1.bf16.msra.mxu0 %v355
    %380 = vmatprep.subr.bf16.mxu0 0
    %381 = vmatpush1.bf16.msra.mxu0 0
    %382 = vmatprep.subr.bf16.mxu0 0
    %383 = vmatpush1.bf16.msra.mxu0 0
    %384 = vmatprep.subr.bf16.mxu0 0
    %385 = vmatpush1.bf16.msra.mxu0 0
    %386 = vmatprep.subr.bf16.mxu0 0
    %387 = vmatpush1.bf16.msra.mxu0 0
    %388 = vmatprep.subr.bf16.mxu0 0
    %389 = vmatpush1.bf16.msra.mxu0 0
    %390 = vmatprep.subr.bf16.mxu0 0
    %391 = vmatpush1.bf16.msra.mxu0 0
    %392 = vmatprep.subr.bf16.mxu0 0
    %393 = vmatpush1.bf16.msra.mxu0 0
    %394 = vmatprep.subr.bf16.mxu0 0
    %395 = vmatpush1.bf16.msra.mxu0 0
    %396 = vmatprep.mubr.bf16.mxu0 0
    %397 = vmatmul.mubr.bf16.gmra.mrb[0].mxu0 %v309
    %v398 = vpop.f32.mrb[0].mxu0
    %v399 = vadd.f32 %v314, %v398
    %v400 = vpop.f32.mrb[0].mxu0
    %v401 = vpop.f32.mrb[0].mxu0
    %v402 = vpop.f32.mrb[0].mxu0
    %403 = vdwg.mxu0
    %v404 = vmax.f32 %v399, 0.0
    %v405 = vld [vmem:[#allocation7] sm:$0xf]
    %v406 = vld [vmem:[#allocation7 + $0x4] sm:$0xf]
    %v407 = vld [vmem:[#allocation7 + $0x8] sm:$0xf]
    %v408 = vld [vmem:[#allocation7 + $0xc] sm:$0xf]
    %v409 = vld [vmem:[#allocation7 + $0x10] sm:$0xf]
    %v410 = vld [vmem:[#allocation7 + $0x14] sm:$0xf]
    %v411 = vld [vmem:[#allocation7 + $0x18] sm:$0xf]
    %v412 = vld [vmem:[#allocation7 + $0x1c] sm:$0xf]
    %v413 = vld [vmem:[#allocation7 + $0x20] sm:$0xf]
    %v414 = vld [vmem:[#allocation7 + $0x24] sm:$0xf]
    %v415 = vld [vmem:[#allocation7 + $0x28] sm:$0xf]
    %v416 = vld [vmem:[#allocation7 + $0x2c] sm:$0xf]
    %v417 = vld [vmem:[#allocation7 + $0x30] sm:$0xf]
    %v418 = vld [vmem:[#allocation7 + $0x34] sm:$0xf]
    %v419 = vld [vmem:[#allocation7 + $0x38] sm:$0xf]
    %v420 = vld [vmem:[#allocation7 + $0x3c] sm:$0xf]
    %v421 = vld [vmem:[#allocation8] sm:$0x1]
    %v422 = vpack.c.bf16 %v404, %v404
    %v424 = vlaneseq
    %v425 = vshrl.u32 %v424, 7
    %v426 = vsub.s32 0, %v425
    %v427 = vrot.slane %v421, %v426
    %v445 = vunpack.c.l.b16 %v405
    %v446 = vunpack.c.l.b16 %v406
    %v447 = vunpack.c.l.b16 %v407
    %v448 = vunpack.c.l.b16 %v408
    %v449 = vunpack.c.l.b16 %v409
    %v450 = vunpack.c.l.b16 %v410
    %v451 = vunpack.c.l.b16 %v411
    %v452 = vunpack.c.l.b16 %v412
    %v453 = vunpack.c.l.b16 %v413
    %v454 = vunpack.c.l.b16 %v414
    %v455 = vunpack.c.l.b16 %v415
    %v456 = vunpack.c.l.b16 %v416
    %v457 = vunpack.c.l.b16 %v417
    %v458 = vunpack.c.l.b16 %v418
    %v459 = vunpack.c.l.b16 %v419
    %v460 = vunpack.c.l.b16 %v420
    %v461 = vpack.c.b16 %v446, %v445
    %v462 = vpack.c.b16 %v448, %v447
    %v463 = vpack.c.b16 %v450, %v449
    %v464 = vpack.c.b16 %v452, %v451
    %v465 = vpack.c.b16 %v454, %v453
    %v466 = vpack.c.b16 %v456, %v455
    %v467 = vpack.c.b16 %v458, %v457
    %v468 = vpack.c.b16 %v460, %v459
    %477 = vmatprep.subr.bf16.mxu0 0
    %478 = vmatpush1.bf16.msra.mxu0 %v461
    %479 = vmatprep.subr.bf16.mxu0 0
    %480 = vmatpush1.bf16.msra.mxu0 %v462
    %481 = vmatprep.subr.bf16.mxu0 0
    %482 = vmatpush1.bf16.msra.mxu0 %v463
    %483 = vmatprep.subr.bf16.mxu0 0
    %484 = vmatpush1.bf16.msra.mxu0 %v464
    %485 = vmatprep.subr.bf16.mxu0 0
    %486 = vmatpush1.bf16.msra.mxu0 %v465
    %487 = vmatprep.subr.bf16.mxu0 0
    %488 = vmatpush1.bf16.msra.mxu0 %v466
    %489 = vmatprep.subr.bf16.mxu0 0
    %490 = vmatpush1.bf16.msra.mxu0 %v467
    %491 = vmatprep.subr.bf16.mxu0 0
    %492 = vmatpush1.bf16.msra.mxu0 %v468
    %493 = vmatprep.subr.bf16.mxu0 0
    %494 = vmatpush1.bf16.msra.mxu0 0
    %495 = vmatprep.subr.bf16.mxu0 0
    %496 = vmatpush1.bf16.msra.mxu0 0
    %497 = vmatprep.subr.bf16.mxu0 0
    %498 = vmatpush1.bf16.msra.mxu0 0
    %499 = vmatprep.subr.bf16.mxu0 0
    %500 = vmatpush1.bf16.msra.mxu0 0
    %501 = vmatprep.subr.bf16.mxu0 0
    %502 = vmatpush1.bf16.msra.mxu0 0
    %503 = vmatprep.subr.bf16.mxu0 0
    %504 = vmatpush1.bf16.msra.mxu0 0
    %505 = vmatprep.subr.bf16.mxu0 0
    %506 = vmatpush1.bf16.msra.mxu0 0
    %507 = vmatprep.subr.bf16.mxu0 0
    %508 = vmatpush1.bf16.msra.mxu0 0
    %509 = vmatprep.mubr.bf16.mxu0 0
    %510 = vmatmul.mubr.bf16.gmra.mrb[0].mxu0 %v422
    %v511 = vpop.f32.mrb[0].mxu0
    %v512 = vadd.f32 %v427, %v511
    %v513 = vpop.f32.mrb[0].mxu0
    %v514 = vpop.f32.mrb[0].mxu0
    %v515 = vpop.f32.mrb[0].mxu0
    %516 = vdwg.mxu0
    %v517 = vmax.f32 %v512, 0.0
    %v518 = vld [vmem:[#allocation10] sm:$0xf]
    %v519 = vld [vmem:[#allocation10 + $0x4] sm:$0xf]
    %v520 = vld [vmem:[#allocation10 + $0x8] sm:$0xf]
    %v521 = vld [vmem:[#allocation10 + $0xc] sm:$0xf]
    %v522 = vld [vmem:[#allocation10 + $0x10] sm:$0xf]
    %v523 = vld [vmem:[#allocation10 + $0x14] sm:$0xf]
    %v524 = vld [vmem:[#allocation10 + $0x18] sm:$0xf]
    %v525 = vld [vmem:[#allocation10 + $0x1c] sm:$0xf]
    %v526 = vld [vmem:[#allocation10 + $0x20] sm:$0xf]
    %v527 = vld [vmem:[#allocation10 + $0x24] sm:$0xf]
    %v528 = vld [vmem:[#allocation10 + $0x28] sm:$0xf]
    %v529 = vld [vmem:[#allocation10 + $0x2c] sm:$0xf]
    %v530 = vld [vmem:[#allocation10 + $0x30] sm:$0xf]
    %v531 = vld [vmem:[#allocation10 + $0x34] sm:$0xf]
    %v532 = vld [vmem:[#allocation10 + $0x38] sm:$0xf]
    %v533 = vld [vmem:[#allocation10 + $0x3c] sm:$0xf]
    %v534 = vld [vmem:[#allocation11] sm:$0x1]
    %v535 = vpack.c.bf16 %v517, %v517
    %v537 = vlaneseq
    %v538 = vshrl.u32 %v537, 7
    %v539 = vsub.s32 0, %v538
    %v540 = vrot.slane %v534, %v539
    %v558 = vunpack.c.l.b16 %v518
    %v559 = vunpack.c.l.b16 %v519
    %v560 = vunpack.c.l.b16 %v520
    %v561 = vunpack.c.l.b16 %v521
    %v562 = vunpack.c.l.b16 %v522
    %v563 = vunpack.c.l.b16 %v523
    %v564 = vunpack.c.l.b16 %v524
    %v565 = vunpack.c.l.b16 %v525
    %v566 = vunpack.c.l.b16 %v526
    %v567 = vunpack.c.l.b16 %v527
    %v568 = vunpack.c.l.b16 %v528
    %v569 = vunpack.c.l.b16 %v529
    %v570 = vunpack.c.l.b16 %v530
    %v571 = vunpack.c.l.b16 %v531
    %v572 = vunpack.c.l.b16 %v532
    %v573 = vunpack.c.l.b16 %v533
    %v574 = vpack.c.b16 %v559, %v558
    %v575 = vpack.c.b16 %v561, %v560
    %v576 = vpack.c.b16 %v563, %v562
    %v577 = vpack.c.b16 %v565, %v564
    %v578 = vpack.c.b16 %v567, %v566
    %v579 = vpack.c.b16 %v569, %v568
    %v580 = vpack.c.b16 %v571, %v570
    %v581 = vpack.c.b16 %v573, %v572
    %590 = vmatprep.subr.bf16.mxu0 0
    %591 = vmatpush1.bf16.msra.mxu0 %v574
    %592 = vmatprep.subr.bf16.mxu0 0
    %593 = vmatpush1.bf16.msra.mxu0 %v575
    %594 = vmatprep.subr.bf16.mxu0 0
    %595 = vmatpush1.bf16.msra.mxu0 %v576
    %596 = vmatprep.subr.bf16.mxu0 0
    %597 = vmatpush1.bf16.msra.mxu0 %v577
    %598 = vmatprep.subr.bf16.mxu0 0
    %599 = vmatpush1.bf16.msra.mxu0 %v578
    %600 = vmatprep.subr.bf16.mxu0 0
    %601 = vmatpush1.bf16.msra.mxu0 %v579
    %602 = vmatprep.subr.bf16.mxu0 0
    %603 = vmatpush1.bf16.msra.mxu0 %v580
    %604 = vmatprep.subr.bf16.mxu0 0
    %605 = vmatpush1.bf16.msra.mxu0 %v581
    %606 = vmatprep.subr.bf16.mxu0 0
    %607 = vmatpush1.bf16.msra.mxu0 0
    %608 = vmatprep.subr.bf16.mxu0 0
    %609 = vmatpush1.bf16.msra.mxu0 0
    %610 = vmatprep.subr.bf16.mxu0 0
    %611 = vmatpush1.bf16.msra.mxu0 0
    %612 = vmatprep.subr.bf16.mxu0 0
    %613 = vmatpush1.bf16.msra.mxu0 0
    %614 = vmatprep.subr.bf16.mxu0 0
    %615 = vmatpush1.bf16.msra.mxu0 0
    %616 = vmatprep.subr.bf16.mxu0 0
    %617 = vmatpush1.bf16.msra.mxu0 0
    %618 = vmatprep.subr.bf16.mxu0 0
    %619 = vmatpush1.bf16.msra.mxu0 0
    %620 = vmatprep.subr.bf16.mxu0 0
    %621 = vmatpush1.bf16.msra.mxu0 0
    %622 = vmatprep.mubr.bf16.mxu0 0
    %623 = vmatmul.mubr.bf16.gmra.mrb[0].mxu0 %v535
    %v624 = vpop.f32.mrb[0].mxu0
    %v625 = vadd.f32 %v540, %v624
    %v626 = vpop.f32.mrb[0].mxu0
    %v627 = vpop.f32.mrb[0].mxu0
    %v628 = vpop.f32.mrb[0].mxu0
    %629 = vdwg.mxu0
    %v630 = vmax.f32 %v625, 0.0
    %v631 = vld [vmem:[%s9] sm:$0xf]
    %v632 = vld [vmem:[%s9 + $0x4] sm:$0xf]
    %v633 = vld [vmem:[%s9 + $0x8] sm:$0xf]
    %v634 = vld [vmem:[%s9 + $0xc] sm:$0xf]
    %v635 = vld [vmem:[%s9 + $0x10] sm:$0xf]
    %v636 = vld [vmem:[%s9 + $0x14] sm:$0xf]
    %v637 = vld [vmem:[%s9 + $0x18] sm:$0xf]
    %v638 = vld [vmem:[%s9 + $0x1c] sm:$0xf]
    %v639 = vld [vmem:[%s9 + $0x20] sm:$0xf]
    %v640 = vld [vmem:[%s9 + $0x24] sm:$0xf]
    %v641 = vld [vmem:[%s9 + $0x28] sm:$0xf]
    %v642 = vld [vmem:[%s9 + $0x2c] sm:$0xf]
    %v643 = vld [vmem:[%s9 + $0x30] sm:$0xf]
    %v644 = vld [vmem:[%s9 + $0x34] sm:$0xf]
    %v645 = vld [vmem:[%s9 + $0x38] sm:$0xf]
    %v646 = vld [vmem:[%s9 + $0x3c] sm:$0xf]
    %v647 = vld [vmem:[#allocation13] sm:$0x1]
    %v648 = vpack.c.bf16 %v630, %v630
    %v650 = vlaneseq
    %v651 = vshrl.u32 %v650, 7
    %v652 = vsub.s32 0, %v651
    %v653 = vrot.slane %v647, %v652
    %v671 = vunpack.c.l.b16 %v631
    %v672 = vunpack.c.l.b16 %v632
    %v673 = vunpack.c.l.b16 %v633
    %v674 = vunpack.c.l.b16 %v634
    %v675 = vunpack.c.l.b16 %v635
    %v676 = vunpack.c.l.b16 %v636
    %v677 = vunpack.c.l.b16 %v637
    %v678 = vunpack.c.l.b16 %v638
    %v679 = vunpack.c.l.b16 %v639
    %v680 = vunpack.c.l.b16 %v640
    %v681 = vunpack.c.l.b16 %v641
    %v682 = vunpack.c.l.b16 %v642
    %v683 = vunpack.c.l.b16 %v643
    %v684 = vunpack.c.l.b16 %v644
    %v685 = vunpack.c.l.b16 %v645
    %v686 = vunpack.c.l.b16 %v646
    %v687 = vpack.c.b16 %v672, %v671
    %v688 = vpack.c.b16 %v674, %v673
    %v689 = vpack.c.b16 %v676, %v675
    %v690 = vpack.c.b16 %v678, %v677
    %v691 = vpack.c.b16 %v680, %v679
    %v692 = vpack.c.b16 %v682, %v681
    %v693 = vpack.c.b16 %v684, %v683
    %v694 = vpack.c.b16 %v686, %v685
    %703 = vmatprep.subr.bf16.mxu0 0
    %704 = vmatpush1.bf16.msra.mxu0 %v687
    %705 = vmatprep.subr.bf16.mxu0 0
    %706 = vmatpush1.bf16.msra.mxu0 %v688
    %707 = vmatprep.subr.bf16.mxu0 0
    %708 = vmatpush1.bf16.msra.mxu0 %v689
    %709 = vmatprep.subr.bf16.mxu0 0
    %710 = vmatpush1.bf16.msra.mxu0 %v690
    %711 = vmatprep.subr.bf16.mxu0 0
    %712 = vmatpush1.bf16.msra.mxu0 %v691
    %713 = vmatprep.subr.bf16.mxu0 0
    %714 = vmatpush1.bf16.msra.mxu0 %v692
    %715 = vmatprep.subr.bf16.mxu0 0
    %716 = vmatpush1.bf16.msra.mxu0 %v693
    %717 = vmatprep.subr.bf16.mxu0 0
    %718 = vmatpush1.bf16.msra.mxu0 %v694
    %719 = vmatprep.subr.bf16.mxu0 0
    %720 = vmatpush1.bf16.msra.mxu0 0
    %721 = vmatprep.subr.bf16.mxu0 0
    %722 = vmatpush1.bf16.msra.mxu0 0
    %723 = vmatprep.subr.bf16.mxu0 0
    %724 = vmatpush1.bf16.msra.mxu0 0
    %725 = vmatprep.subr.bf16.mxu0 0
    %726 = vmatpush1.bf16.msra.mxu0 0
    %727 = vmatprep.subr.bf16.mxu0 0
    %728 = vmatpush1.bf16.msra.mxu0 0
    %729 = vmatprep.subr.bf16.mxu0 0
    %730 = vmatpush1.bf16.msra.mxu0 0
    %731 = vmatprep.subr.bf16.mxu0 0
    %732 = vmatpush1.bf16.msra.mxu0 0
    %733 = vmatprep.subr.bf16.mxu0 0
    %734 = vmatpush1.bf16.msra.mxu0 0
    %735 = vmatprep.mubr.bf16.mxu0 0
    %736 = vmatmul.mubr.bf16.gmra.mrb[0].mxu0 %v648
    %v737 = vpop.f32.mrb[0].mxu0
    %v738 = vadd.f32 %v653, %v737
    %v739 = vpop.f32.mrb[0].mxu0
    %v740 = vpop.f32.mrb[0].mxu0
    %v741 = vpop.f32.mrb[0].mxu0
    %742 = vdwg.mxu0
    %v743 = vmax.f32 %v738, 0.0
    %v744 = vpack.c.bf16 %v743, %v743
    %v745 = vld [vmem:[#allocation14] sm:$0xff]
    %v746 = vld [vmem:[#allocation14 + $0x8] sm:$0xff]
    %v747 = vld [vmem:[#allocation14 + $0x10] sm:$0xff]
    %v748 = vld [vmem:[#allocation14 + $0x18] sm:$0xff]
    %v749 = vld [vmem:[#allocation14 + $0x20] sm:$0xff]
    %v750 = vld [vmem:[#allocation14 + $0x28] sm:$0xff]
    %v751 = vld [vmem:[#allocation14 + $0x30] sm:$0xff]
    %v752 = vld [vmem:[#allocation14 + $0x38] sm:$0xff]
    %v753 = vld [vmem:[#allocation14 + $0x40] sm:$0xff]
    %v754 = vld [vmem:[#allocation14 + $0x48] sm:$0xff]
    %v755 = vld [vmem:[#allocation14 + $0x50] sm:$0xff]
    %v756 = vld [vmem:[#allocation14 + $0x58] sm:$0xff]
    %v757 = vld [vmem:[#allocation14 + $0x60] sm:$0xff]
    %v758 = vld [vmem:[#allocation14 + $0x68] sm:$0xff]
    %v759 = vld [vmem:[#allocation14 + $0x70] sm:$0xff]
    %v760 = vld [vmem:[#allocation14 + $0x78] sm:$0xff]
    %v761 = vld [vmem:[#allocation14 + $0x80] sm:$0xff]
    %v762 = vld [vmem:[#allocation14 + $0x88] sm:$0xff]
    %v763 = vld [vmem:[#allocation14 + $0x90] sm:$0xff]
    %v764 = vld [vmem:[#allocation14 + $0x98] sm:$0xff]
    %v765 = vld [vmem:[#allocation14 + $0xa0] sm:$0xff]
    %v766 = vld [vmem:[#allocation14 + $0xa8] sm:$0xff]
    %v767 = vld [vmem:[#allocation14 + $0xb0] sm:$0xff]
    %v768 = vld [vmem:[#allocation14 + $0xb8] sm:$0xff]
    %v769 = vld [vmem:[#allocation14 + $0xc0] sm:$0xff]
    %v770 = vld [vmem:[#allocation14 + $0xc8] sm:$0xff]
    %v771 = vld [vmem:[#allocation14 + $0xd0] sm:$0xff]
    %v772 = vld [vmem:[#allocation14 + $0xd8] sm:$0xff]
    %v773 = vld [vmem:[#allocation14 + $0xe0] sm:$0xff]
    %v774 = vld [vmem:[#allocation14 + $0xe8] sm:$0xff]
    %v775 = vld [vmem:[#allocation14 + $0xf0] sm:$0xff]
    %v776 = vld [vmem:[#allocation14 + $0xf8] sm:$0xff]
    %v777 = vld [vmem:[#allocation14 + $0x100] sm:$0xff]
    %v778 = vld [vmem:[#allocation14 + $0x108] sm:$0xff]
    %v779 = vld [vmem:[#allocation14 + $0x110] sm:$0xff]
    %v780 = vld [vmem:[#allocation14 + $0x118] sm:$0xff]
    %v781 = vld [vmem:[#allocation14 + $0x120] sm:$0xff]
    %v782 = vld [vmem:[#allocation14 + $0x128] sm:$0xff]
    %v783 = vld [vmem:[#allocation14 + $0x130] sm:$0xff]
    %v784 = vld [vmem:[#allocation14 + $0x138] sm:$0xff]
    %v785 = vld [vmem:[#allocation14 + $0x140] sm:$0xff]
    %v786 = vld [vmem:[#allocation14 + $0x148] sm:$0xff]
    %v787 = vld [vmem:[#allocation14 + $0x150] sm:$0xff]
    %v788 = vld [vmem:[#allocation14 + $0x158] sm:$0xff]
    %v789 = vld [vmem:[#allocation14 + $0x160] sm:$0xff]
    %v790 = vld [vmem:[#allocation14 + $0x168] sm:$0xff]
    %v791 = vld [vmem:[#allocation14 + $0x170] sm:$0xff]
    %v792 = vld [vmem:[#allocation14 + $0x178] sm:$0xff]
    %v793 = vld [vmem:[#allocation14 + $0x180] sm:$0xff]
    %v794 = vld [vmem:[#allocation14 + $0x188] sm:$0xff]
    %v795 = vld [vmem:[#allocation14 + $0x190] sm:$0xff]
    %v796 = vld [vmem:[#allocation14 + $0x198] sm:$0xff]
    %v797 = vld [vmem:[#allocation14 + $0x1a0] sm:$0xff]
    %v798 = vld [vmem:[#allocation14 + $0x1a8] sm:$0xff]
    %v799 = vld [vmem:[#allocation14 + $0x1b0] sm:$0xff]
    %v800 = vld [vmem:[#allocation14 + $0x1b8] sm:$0xff]
    %v801 = vld [vmem:[#allocation14 + $0x1c0] sm:$0xff]
    %v802 = vld [vmem:[#allocation14 + $0x1c8] sm:$0xff]
    %v803 = vld [vmem:[#allocation14 + $0x1d0] sm:$0xff]
    %v804 = vld [vmem:[#allocation14 + $0x1d8] sm:$0xff]
    %v805 = vld [vmem:[#allocation14 + $0x1e0] sm:$0xff]
    %v806 = vld [vmem:[#allocation14 + $0x1e8] sm:$0xff]
    %v807 = vld [vmem:[#allocation14 + $0x1f0] sm:$0xff]
    %v808 = vld [vmem:[#allocation14 + $0x1f8] sm:$0xff]
    %v809 = vld [vmem:[#allocation14 + $0x200] sm:$0xff]
    %v810 = vld [vmem:[#allocation14 + $0x208] sm:$0xff]
    %v811 = vld [vmem:[#allocation14 + $0x210] sm:$0xff]
    %v812 = vld [vmem:[#allocation14 + $0x218] sm:$0xff]
    %v813 = vld [vmem:[#allocation14 + $0x220] sm:$0xff]
    %v814 = vld [vmem:[#allocation14 + $0x228] sm:$0xff]
    %v815 = vld [vmem:[#allocation14 + $0x230] sm:$0xff]
    %v816 = vld [vmem:[#allocation14 + $0x238] sm:$0xff]
    %v817 = vld [vmem:[#allocation14 + $0x240] sm:$0xff]
    %v818 = vld [vmem:[#allocation14 + $0x248] sm:$0xff]
    %v819 = vld [vmem:[#allocation14 + $0x250] sm:$0xff]
    %v820 = vld [vmem:[#allocation14 + $0x258] sm:$0xff]
    %v821 = vld [vmem:[#allocation14 + $0x260] sm:$0xff]
    %v822 = vld [vmem:[#allocation14 + $0x268] sm:$0xff]
    %v823 = vld [vmem:[#allocation14 + $0x270] sm:$0xff]
    %v824 = vld [vmem:[#allocation14 + $0x278] sm:$0xff]
    %v825 = vld [vmem:[#allocation14 + $0x280] sm:$0xff]
    %v826 = vld [vmem:[#allocation14 + $0x288] sm:$0xff]
    %v827 = vld [vmem:[#allocation14 + $0x290] sm:$0xff]
    %v828 = vld [vmem:[#allocation14 + $0x298] sm:$0xff]
    %v829 = vld [vmem:[#allocation14 + $0x2a0] sm:$0xff]
    %v830 = vld [vmem:[#allocation14 + $0x2a8] sm:$0xff]
    %v831 = vld [vmem:[#allocation14 + $0x2b0] sm:$0xff]
    %v832 = vld [vmem:[#allocation14 + $0x2b8] sm:$0xff]
    %v833 = vld [vmem:[#allocation14 + $0x2c0] sm:$0xff]
    %v834 = vld [vmem:[#allocation14 + $0x2c8] sm:$0xff]
    %v835 = vld [vmem:[#allocation14 + $0x2d0] sm:$0xff]
    %v836 = vld [vmem:[#allocation14 + $0x2d8] sm:$0xff]
    %v837 = vld [vmem:[#allocation14 + $0x2e0] sm:$0xff]
    %v838 = vld [vmem:[#allocation14 + $0x2e8] sm:$0xff]
    %v839 = vld [vmem:[#allocation14 + $0x2f0] sm:$0xff]
    %v840 = vld [vmem:[#allocation14 + $0x2f8] sm:$0xff]
    %v841 = vld [vmem:[#allocation14 + $0x300] sm:$0xff]
    %v842 = vld [vmem:[#allocation14 + $0x308] sm:$0xff]
    %v843 = vld [vmem:[#allocation14 + $0x310] sm:$0xff]
    %v844 = vld [vmem:[#allocation14 + $0x318] sm:$0xff]
    %v845 = vld [vmem:[#allocation14 + $0x320] sm:$0xff]
    %v846 = vld [vmem:[#allocation14 + $0x328] sm:$0xff]
    %v847 = vld [vmem:[#allocation14 + $0x330] sm:$0xff]
    %v848 = vld [vmem:[#allocation14 + $0x338] sm:$0xff]
    %v849 = vld [vmem:[#allocation14 + $0x340] sm:$0xff]
    %v850 = vld [vmem:[#allocation14 + $0x348] sm:$0xff]
    %v851 = vld [vmem:[#allocation14 + $0x350] sm:$0xff]
    %v852 = vld [vmem:[#allocation14 + $0x358] sm:$0xff]
    %v853 = vld [vmem:[#allocation14 + $0x360] sm:$0xff]
    %v854 = vld [vmem:[#allocation14 + $0x368] sm:$0xff]
    %v855 = vld [vmem:[#allocation14 + $0x370] sm:$0xff]
    %v856 = vld [vmem:[#allocation14 + $0x378] sm:$0xff]
    %v857 = vld [vmem:[#allocation14 + $0x380] sm:$0xff]
    %v858 = vld [vmem:[#allocation14 + $0x388] sm:$0xff]
    %v859 = vld [vmem:[#allocation14 + $0x390] sm:$0xff]
    %v860 = vld [vmem:[#allocation14 + $0x398] sm:$0xff]
    %v861 = vld [vmem:[#allocation14 + $0x3a0] sm:$0xff]
    %v862 = vld [vmem:[#allocation14 + $0x3a8] sm:$0xff]
    %v863 = vld [vmem:[#allocation14 + $0x3b0] sm:$0xff]
    %v864 = vld [vmem:[#allocation14 + $0x3b8] sm:$0xff]
    %v865 = vld [vmem:[#allocation14 + $0x3c0] sm:$0xff]
    %v866 = vld [vmem:[#allocation14 + $0x3c8] sm:$0xff]
    %v867 = vld [vmem:[#allocation14 + $0x3d0] sm:$0xff]
    %v868 = vld [vmem:[#allocation14 + $0x3d8] sm:$0xff]
    %v869 = vld [vmem:[#allocation14 + $0x3e0] sm:$0xff]
    %v870 = vld [vmem:[#allocation14 + $0x3e8] sm:$0xff]
    %v871 = vld [vmem:[#allocation14 + $0x3f0] sm:$0xff]
    %v872 = vld [vmem:[#allocation14 + $0x3f8] sm:$0xff]
    %v1001 = vunpack.c.l.b16 %v745
    %v1002 = vunpack.c.h.b16 %v745
    %v1003 = vunpack.c.l.b16 %v746
    %v1004 = vunpack.c.h.b16 %v746
    %v1005 = vunpack.c.l.b16 %v747
    %v1006 = vunpack.c.h.b16 %v747
    %v1007 = vunpack.c.l.b16 %v748
    %v1008 = vunpack.c.h.b16 %v748
    %v1009 = vunpack.c.l.b16 %v749
    %v1010 = vunpack.c.h.b16 %v749
    %v1011 = vunpack.c.l.b16 %v750
    %v1012 = vunpack.c.h.b16 %v750
    %v1013 = vunpack.c.l.b16 %v751
    %v1014 = vunpack.c.h.b16 %v751
    %v1015 = vunpack.c.l.b16 %v752
    %v1016 = vunpack.c.h.b16 %v752
    %v1017 = vunpack.c.l.b16 %v753
    %v1018 = vunpack.c.h.b16 %v753
    %v1019 = vunpack.c.l.b16 %v754
    %v1020 = vunpack.c.h.b16 %v754
    %v1021 = vunpack.c.l.b16 %v755
    %v1022 = vunpack.c.h.b16 %v755
    %v1023 = vunpack.c.l.b16 %v756
    %v1024 = vunpack.c.h.b16 %v756
    %v1025 = vunpack.c.l.b16 %v757
    %v1026 = vunpack.c.h.b16 %v757
    %v1027 = vunpack.c.l.b16 %v758
    %v1028 = vunpack.c.h.b16 %v758
    %v1029 = vunpack.c.l.b16 %v759
    %v1030 = vunpack.c.h.b16 %v759
    %v1031 = vunpack.c.l.b16 %v760
    %v1032 = vunpack.c.h.b16 %v760
    %v1033 = vunpack.c.l.b16 %v761
    %v1034 = vunpack.c.h.b16 %v761
    %v1035 = vunpack.c.l.b16 %v762
    %v1036 = vunpack.c.h.b16 %v762
    %v1037 = vunpack.c.l.b16 %v763
    %v1038 = vunpack.c.h.b16 %v763
    %v1039 = vunpack.c.l.b16 %v764
    %v1040 = vunpack.c.h.b16 %v764
    %v1041 = vunpack.c.l.b16 %v765
    %v1042 = vunpack.c.h.b16 %v765
    %v1043 = vunpack.c.l.b16 %v766
    %v1044 = vunpack.c.h.b16 %v766
    %v1045 = vunpack.c.l.b16 %v767
    %v1046 = vunpack.c.h.b16 %v767
    %v1047 = vunpack.c.l.b16 %v768
    %v1048 = vunpack.c.h.b16 %v768
    %v1049 = vunpack.c.l.b16 %v769
    %v1050 = vunpack.c.h.b16 %v769
    %v1051 = vunpack.c.l.b16 %v770
    %v1052 = vunpack.c.h.b16 %v770
    %v1053 = vunpack.c.l.b16 %v771
    %v1054 = vunpack.c.h.b16 %v771
    %v1055 = vunpack.c.l.b16 %v772
    %v1056 = vunpack.c.h.b16 %v772
    %v1057 = vunpack.c.l.b16 %v773
    %v1058 = vunpack.c.h.b16 %v773
    %v1059 = vunpack.c.l.b16 %v774
    %v1060 = vunpack.c.h.b16 %v774
    %v1061 = vunpack.c.l.b16 %v775
    %v1062 = vunpack.c.h.b16 %v775
    %v1063 = vunpack.c.l.b16 %v776
    %v1064 = vunpack.c.h.b16 %v776
    %v1065 = vunpack.c.l.b16 %v777
    %v1066 = vunpack.c.h.b16 %v777
    %v1067 = vunpack.c.l.b16 %v778
    %v1068 = vunpack.c.h.b16 %v778
    %v1069 = vunpack.c.l.b16 %v779
    %v1070 = vunpack.c.h.b16 %v779
    %v1071 = vunpack.c.l.b16 %v780
    %v1072 = vunpack.c.h.b16 %v780
    %v1073 = vunpack.c.l.b16 %v781
    %v1074 = vunpack.c.h.b16 %v781
    %v1075 = vunpack.c.l.b16 %v782
    %v1076 = vunpack.c.h.b16 %v782
    %v1077 = vunpack.c.l.b16 %v783
    %v1078 = vunpack.c.h.b16 %v783
    %v1079 = vunpack.c.l.b16 %v784
    %v1080 = vunpack.c.h.b16 %v784
    %v1081 = vunpack.c.l.b16 %v785
    %v1082 = vunpack.c.h.b16 %v785
    %v1083 = vunpack.c.l.b16 %v786
    %v1084 = vunpack.c.h.b16 %v786
    %v1085 = vunpack.c.l.b16 %v787
    %v1086 = vunpack.c.h.b16 %v787
    %v1087 = vunpack.c.l.b16 %v788
    %v1088 = vunpack.c.h.b16 %v788
    %v1089 = vunpack.c.l.b16 %v789
    %v1090 = vunpack.c.h.b16 %v789
    %v1091 = vunpack.c.l.b16 %v790
    %v1092 = vunpack.c.h.b16 %v790
    %v1093 = vunpack.c.l.b16 %v791
    %v1094 = vunpack.c.h.b16 %v791
    %v1095 = vunpack.c.l.b16 %v792
    %v1096 = vunpack.c.h.b16 %v792
    %v1097 = vunpack.c.l.b16 %v793
    %v1098 = vunpack.c.h.b16 %v793
    %v1099 = vunpack.c.l.b16 %v794
    %v1100 = vunpack.c.h.b16 %v794
    %v1101 = vunpack.c.l.b16 %v795
    %v1102 = vunpack.c.h.b16 %v795
    %v1103 = vunpack.c.l.b16 %v796
    %v1104 = vunpack.c.h.b16 %v796
    %v1105 = vunpack.c.l.b16 %v797
    %v1106 = vunpack.c.h.b16 %v797
    %v1107 = vunpack.c.l.b16 %v798
    %v1108 = vunpack.c.h.b16 %v798
    %v1109 = vunpack.c.l.b16 %v799
    %v1110 = vunpack.c.h.b16 %v799
    %v1111 = vunpack.c.l.b16 %v800
    %v1112 = vunpack.c.h.b16 %v800
    %v1113 = vunpack.c.l.b16 %v801
    %v1114 = vunpack.c.h.b16 %v801
    %v1115 = vunpack.c.l.b16 %v802
    %v1116 = vunpack.c.h.b16 %v802
    %v1117 = vunpack.c.l.b16 %v803
    %v1118 = vunpack.c.h.b16 %v803
    %v1119 = vunpack.c.l.b16 %v804
    %v1120 = vunpack.c.h.b16 %v804
    %v1121 = vunpack.c.l.b16 %v805
    %v1122 = vunpack.c.h.b16 %v805
    %v1123 = vunpack.c.l.b16 %v806
    %v1124 = vunpack.c.h.b16 %v806
    %v1125 = vunpack.c.l.b16 %v807
    %v1126 = vunpack.c.h.b16 %v807
    %v1127 = vunpack.c.l.b16 %v808
    %v1128 = vunpack.c.h.b16 %v808
    %v1129 = vunpack.c.l.b16 %v809
    %v1130 = vunpack.c.h.b16 %v809
    %v1131 = vunpack.c.l.b16 %v810
    %v1132 = vunpack.c.h.b16 %v810
    %v1133 = vunpack.c.l.b16 %v811
    %v1134 = vunpack.c.h.b16 %v811
    %v1135 = vunpack.c.l.b16 %v812
    %v1136 = vunpack.c.h.b16 %v812
    %v1137 = vunpack.c.l.b16 %v813
    %v1138 = vunpack.c.h.b16 %v813
    %v1139 = vunpack.c.l.b16 %v814
    %v1140 = vunpack.c.h.b16 %v814
    %v1141 = vunpack.c.l.b16 %v815
    %v1142 = vunpack.c.h.b16 %v815
    %v1143 = vunpack.c.l.b16 %v816
    %v1144 = vunpack.c.h.b16 %v816
    %v1145 = vunpack.c.l.b16 %v817
    %v1146 = vunpack.c.h.b16 %v817
    %v1147 = vunpack.c.l.b16 %v818
    %v1148 = vunpack.c.h.b16 %v818
    %v1149 = vunpack.c.l.b16 %v819
    %v1150 = vunpack.c.h.b16 %v819
    %v1151 = vunpack.c.l.b16 %v820
    %v1152 = vunpack.c.h.b16 %v820
    %v1153 = vunpack.c.l.b16 %v821
    %v1154 = vunpack.c.h.b16 %v821
    %v1155 = vunpack.c.l.b16 %v822
    %v1156 = vunpack.c.h.b16 %v822
    %v1157 = vunpack.c.l.b16 %v823
    %v1158 = vunpack.c.h.b16 %v823
    %v1159 = vunpack.c.l.b16 %v824
    %v1160 = vunpack.c.h.b16 %v824
    %v1161 = vunpack.c.l.b16 %v825
    %v1162 = vunpack.c.h.b16 %v825
    %v1163 = vunpack.c.l.b16 %v826
    %v1164 = vunpack.c.h.b16 %v826
    %v1165 = vunpack.c.l.b16 %v827
    %v1166 = vunpack.c.h.b16 %v827
    %v1167 = vunpack.c.l.b16 %v828
    %v1168 = vunpack.c.h.b16 %v828
    %v1169 = vunpack.c.l.b16 %v829
    %v1170 = vunpack.c.h.b16 %v829
    %v1171 = vunpack.c.l.b16 %v830
    %v1172 = vunpack.c.h.b16 %v830
    %v1173 = vunpack.c.l.b16 %v831
    %v1174 = vunpack.c.h.b16 %v831
    %v1175 = vunpack.c.l.b16 %v832
    %v1176 = vunpack.c.h.b16 %v832
    %v1177 = vunpack.c.l.b16 %v833
    %v1178 = vunpack.c.h.b16 %v833
    %v1179 = vunpack.c.l.b16 %v834
    %v1180 = vunpack.c.h.b16 %v834
    %v1181 = vunpack.c.l.b16 %v835
    %v1182 = vunpack.c.h.b16 %v835
    %v1183 = vunpack.c.l.b16 %v836
    %v1184 = vunpack.c.h.b16 %v836
    %v1185 = vunpack.c.l.b16 %v837
    %v1186 = vunpack.c.h.b16 %v837
    %v1187 = vunpack.c.l.b16 %v838
    %v1188 = vunpack.c.h.b16 %v838
    %v1189 = vunpack.c.l.b16 %v839
    %v1190 = vunpack.c.h.b16 %v839
    %v1191 = vunpack.c.l.b16 %v840
    %v1192 = vunpack.c.h.b16 %v840
    %v1193 = vunpack.c.l.b16 %v841
    %v1194 = vunpack.c.h.b16 %v841
    %v1195 = vunpack.c.l.b16 %v842
    %v1196 = vunpack.c.h.b16 %v842
    %v1197 = vunpack.c.l.b16 %v843
    %v1198 = vunpack.c.h.b16 %v843
    %v1199 = vunpack.c.l.b16 %v844
    %v1200 = vunpack.c.h.b16 %v844
    %v1201 = vunpack.c.l.b16 %v845
    %v1202 = vunpack.c.h.b16 %v845
    %v1203 = vunpack.c.l.b16 %v846
    %v1204 = vunpack.c.h.b16 %v846
    %v1205 = vunpack.c.l.b16 %v847
    %v1206 = vunpack.c.h.b16 %v847
    %v1207 = vunpack.c.l.b16 %v848
    %v1208 = vunpack.c.h.b16 %v848
    %v1209 = vunpack.c.l.b16 %v849
    %v1210 = vunpack.c.h.b16 %v849
    %v1211 = vunpack.c.l.b16 %v850
    %v1212 = vunpack.c.h.b16 %v850
    %v1213 = vunpack.c.l.b16 %v851
    %v1214 = vunpack.c.h.b16 %v851
    %v1215 = vunpack.c.l.b16 %v852
    %v1216 = vunpack.c.h.b16 %v852
    %v1217 = vunpack.c.l.b16 %v853
    %v1218 = vunpack.c.h.b16 %v853
    %v1219 = vunpack.c.l.b16 %v854
    %v1220 = vunpack.c.h.b16 %v854
    %v1221 = vunpack.c.l.b16 %v855
    %v1222 = vunpack.c.h.b16 %v855
    %v1223 = vunpack.c.l.b16 %v856
    %v1224 = vunpack.c.h.b16 %v856
    %v1225 = vunpack.c.l.b16 %v857
    %v1226 = vunpack.c.h.b16 %v857
    %v1227 = vunpack.c.l.b16 %v858
    %v1228 = vunpack.c.h.b16 %v858
    %v1229 = vunpack.c.l.b16 %v859
    %v1230 = vunpack.c.h.b16 %v859
    %v1231 = vunpack.c.l.b16 %v860
    %v1232 = vunpack.c.h.b16 %v860
    %v1233 = vunpack.c.l.b16 %v861
    %v1234 = vunpack.c.h.b16 %v861
    %v1235 = vunpack.c.l.b16 %v862
    %v1236 = vunpack.c.h.b16 %v862
    %v1237 = vunpack.c.l.b16 %v863
    %v1238 = vunpack.c.h.b16 %v863
    %v1239 = vunpack.c.l.b16 %v864
    %v1240 = vunpack.c.h.b16 %v864
    %v1241 = vunpack.c.l.b16 %v865
    %v1242 = vunpack.c.h.b16 %v865
    %v1243 = vunpack.c.l.b16 %v866
    %v1244 = vunpack.c.h.b16 %v866
    %v1245 = vunpack.c.l.b16 %v867
    %v1246 = vunpack.c.h.b16 %v867
    %v1247 = vunpack.c.l.b16 %v868
    %v1248 = vunpack.c.h.b16 %v868
    %v1249 = vunpack.c.l.b16 %v869
    %v1250 = vunpack.c.h.b16 %v869
    %v1251 = vunpack.c.l.b16 %v870
    %v1252 = vunpack.c.h.b16 %v870
    %v1253 = vunpack.c.l.b16 %v871
    %v1254 = vunpack.c.h.b16 %v871
    %v1255 = vunpack.c.l.b16 %v872
    %v1256 = vunpack.c.h.b16 %v872
    %v1257 = vpack.c.b16 %v1017, %v1001
    %v1258 = vpack.c.b16 %v1018, %v1002
    %v1259 = vpack.c.b16 %v1019, %v1003
    %v1260 = vpack.c.b16 %v1020, %v1004
    %v1261 = vpack.c.b16 %v1021, %v1005
    %v1262 = vpack.c.b16 %v1022, %v1006
    %v1263 = vpack.c.b16 %v1023, %v1007
    %v1264 = vpack.c.b16 %v1024, %v1008
    %v1265 = vpack.c.b16 %v1025, %v1009
    %v1266 = vpack.c.b16 %v1026, %v1010
    %v1267 = vpack.c.b16 %v1027, %v1011
    %v1268 = vpack.c.b16 %v1028, %v1012
    %v1269 = vpack.c.b16 %v1029, %v1013
    %v1270 = vpack.c.b16 %v1030, %v1014
    %v1271 = vpack.c.b16 %v1031, %v1015
    %v1272 = vpack.c.b16 %v1032, %v1016
    %v1273 = vpack.c.b16 %v1049, %v1033
    %v1274 = vpack.c.b16 %v1050, %v1034
    %v1275 = vpack.c.b16 %v1051, %v1035
    %v1276 = vpack.c.b16 %v1052, %v1036
    %v1277 = vpack.c.b16 %v1053, %v1037
    %v1278 = vpack.c.b16 %v1054, %v1038
    %v1279 = vpack.c.b16 %v1055, %v1039
    %v1280 = vpack.c.b16 %v1056, %v1040
    %v1281 = vpack.c.b16 %v1057, %v1041
    %v1282 = vpack.c.b16 %v1058, %v1042
    %v1283 = vpack.c.b16 %v1059, %v1043
    %v1284 = vpack.c.b16 %v1060, %v1044
    %v1285 = vpack.c.b16 %v1061, %v1045
    %v1286 = vpack.c.b16 %v1062, %v1046
    %v1287 = vpack.c.b16 %v1063, %v1047
    %v1288 = vpack.c.b16 %v1064, %v1048
    %v1289 = vpack.c.b16 %v1081, %v1065
    %v1290 = vpack.c.b16 %v1082, %v1066
    %v1291 = vpack.c.b16 %v1083, %v1067
    %v1292 = vpack.c.b16 %v1084, %v1068
    %v1293 = vpack.c.b16 %v1085, %v1069
    %v1294 = vpack.c.b16 %v1086, %v1070
    %v1295 = vpack.c.b16 %v1087, %v1071
    %v1296 = vpack.c.b16 %v1088, %v1072
    %v1297 = vpack.c.b16 %v1089, %v1073
    %v1298 = vpack.c.b16 %v1090, %v1074
    %v1299 = vpack.c.b16 %v1091, %v1075
    %v1300 = vpack.c.b16 %v1092, %v1076
    %v1301 = vpack.c.b16 %v1093, %v1077
    %v1302 = vpack.c.b16 %v1094, %v1078
    %v1303 = vpack.c.b16 %v1095, %v1079
    %v1304 = vpack.c.b16 %v1096, %v1080
    %v1305 = vpack.c.b16 %v1113, %v1097
    %v1306 = vpack.c.b16 %v1114, %v1098
    %v1307 = vpack.c.b16 %v1115, %v1099
    %v1308 = vpack.c.b16 %v1116, %v1100
    %v1309 = vpack.c.b16 %v1117, %v1101
    %v1310 = vpack.c.b16 %v1118, %v1102
    %v1311 = vpack.c.b16 %v1119, %v1103
    %v1312 = vpack.c.b16 %v1120, %v1104
    %v1313 = vpack.c.b16 %v1121, %v1105
    %v1314 = vpack.c.b16 %v1122, %v1106
    %v1315 = vpack.c.b16 %v1123, %v1107
    %v1316 = vpack.c.b16 %v1124, %v1108
    %v1317 = vpack.c.b16 %v1125, %v1109
    %v1318 = vpack.c.b16 %v1126, %v1110
    %v1319 = vpack.c.b16 %v1127, %v1111
    %v1320 = vpack.c.b16 %v1128, %v1112
    %v1321 = vpack.c.b16 %v1145, %v1129
    %v1322 = vpack.c.b16 %v1146, %v1130
    %v1323 = vpack.c.b16 %v1147, %v1131
    %v1324 = vpack.c.b16 %v1148, %v1132
    %v1325 = vpack.c.b16 %v1149, %v1133
    %v1326 = vpack.c.b16 %v1150, %v1134
    %v1327 = vpack.c.b16 %v1151, %v1135
    %v1328 = vpack.c.b16 %v1152, %v1136
    %v1329 = vpack.c.b16 %v1153, %v1137
    %v1330 = vpack.c.b16 %v1154, %v1138
    %v1331 = vpack.c.b16 %v1155, %v1139
    %v1332 = vpack.c.b16 %v1156, %v1140
    %v1333 = vpack.c.b16 %v1157, %v1141
    %v1334 = vpack.c.b16 %v1158, %v1142
    %v1335 = vpack.c.b16 %v1159, %v1143
    %v1336 = vpack.c.b16 %v1160, %v1144
    %v1337 = vpack.c.b16 %v1177, %v1161
    %v1338 = vpack.c.b16 %v1178, %v1162
    %v1339 = vpack.c.b16 %v1179, %v1163
    %v1340 = vpack.c.b16 %v1180, %v1164
    %v1341 = vpack.c.b16 %v1181, %v1165
    %v1342 = vpack.c.b16 %v1182, %v1166
    %v1343 = vpack.c.b16 %v1183, %v1167
    %v1344 = vpack.c.b16 %v1184, %v1168
    %v1345 = vpack.c.b16 %v1185, %v1169
    %v1346 = vpack.c.b16 %v1186, %v1170
    %v1347 = vpack.c.b16 %v1187, %v1171
    %v1348 = vpack.c.b16 %v1188, %v1172
    %v1349 = vpack.c.b16 %v1189, %v1173
    %v1350 = vpack.c.b16 %v1190, %v1174
    %v1351 = vpack.c.b16 %v1191, %v1175
    %v1352 = vpack.c.b16 %v1192, %v1176
    %v1353 = vpack.c.b16 %v1209, %v1193
    %v1354 = vpack.c.b16 %v1210, %v1194
    %v1355 = vpack.c.b16 %v1211, %v1195
    %v1356 = vpack.c.b16 %v1212, %v1196
    %v1357 = vpack.c.b16 %v1213, %v1197
    %v1358 = vpack.c.b16 %v1214, %v1198
    %v1359 = vpack.c.b16 %v1215, %v1199
    %v1360 = vpack.c.b16 %v1216, %v1200
    %v1361 = vpack.c.b16 %v1217, %v1201
    %v1362 = vpack.c.b16 %v1218, %v1202
    %v1363 = vpack.c.b16 %v1219, %v1203
    %v1364 = vpack.c.b16 %v1220, %v1204
    %v1365 = vpack.c.b16 %v1221, %v1205
    %v1366 = vpack.c.b16 %v1222, %v1206
    %v1367 = vpack.c.b16 %v1223, %v1207
    %v1368 = vpack.c.b16 %v1224, %v1208
    %v1369 = vpack.c.b16 %v1241, %v1225
    %v1370 = vpack.c.b16 %v1242, %v1226
    %v1371 = vpack.c.b16 %v1243, %v1227
    %v1372 = vpack.c.b16 %v1244, %v1228
    %v1373 = vpack.c.b16 %v1245, %v1229
    %v1374 = vpack.c.b16 %v1246, %v1230
    %v1375 = vpack.c.b16 %v1247, %v1231
    %v1376 = vpack.c.b16 %v1248, %v1232
    %v1377 = vpack.c.b16 %v1249, %v1233
    %v1378 = vpack.c.b16 %v1250, %v1234
    %v1379 = vpack.c.b16 %v1251, %v1235
    %v1380 = vpack.c.b16 %v1252, %v1236
    %v1381 = vpack.c.b16 %v1253, %v1237
    %v1382 = vpack.c.b16 %v1254, %v1238
    %v1383 = vpack.c.b16 %v1255, %v1239
    %v1384 = vpack.c.b16 %v1256, %v1240
    %1513 = vmatprep.subr.bf16.mxu0 %v1258
    %1514 = vmatpush1.bf16.msra.mxu0 %v1257
    %1515 = vmatprep.subr.bf16.mxu0 %v1274
    %1516 = vmatpush1.bf16.msra.mxu0 %v1273
    %1517 = vmatprep.subr.bf16.mxu0 %v1290
    %1518 = vmatpush1.bf16.msra.mxu0 %v1289
    %1519 = vmatprep.subr.bf16.mxu0 %v1306
    %1520 = vmatpush1.bf16.msra.mxu0 %v1305
    %1521 = vmatprep.subr.bf16.mxu0 %v1322
    %1522 = vmatpush1.bf16.msra.mxu0 %v1321
    %1523 = vmatprep.subr.bf16.mxu0 %v1338
    %1524 = vmatpush1.bf16.msra.mxu0 %v1337
    %1525 = vmatprep.subr.bf16.mxu0 %v1354
    %1526 = vmatpush1.bf16.msra.mxu0 %v1353
    %1527 = vmatprep.subr.bf16.mxu0 %v1370
    %1528 = vmatpush1.bf16.msra.mxu0 %v1369
    %1529 = vmatprep.subr.bf16.mxu0 0
    %1530 = vmatpush1.bf16.msra.mxu0 0
    %1531 = vmatprep.subr.bf16.mxu0 0
    %1532 = vmatpush1.bf16.msra.mxu0 0
    %1533 = vmatprep.subr.bf16.mxu0 0
    %1534 = vmatpush1.bf16.msra.mxu0 0
    %1535 = vmatprep.subr.bf16.mxu0 0
    %1536 = vmatpush1.bf16.msra.mxu0 0
    %1537 = vmatprep.subr.bf16.mxu0 0
    %1538 = vmatpush1.bf16.msra.mxu0 0
    %1539 = vmatprep.subr.bf16.mxu0 0
    %1540 = vmatpush1.bf16.msra.mxu0 0
    %1541 = vmatprep.subr.bf16.mxu0 0
    %1542 = vmatpush1.bf16.msra.mxu0 0
    %1543 = vmatprep.subr.bf16.mxu0 0
    %1544 = vmatpush1.bf16.msra.mxu0 0
    %1545 = vmatprep.mubr.bf16.mxu0 0
    %1546 = vmatmul.mubr.bf16.gmra.mrb[0].mxu0 %v744
    %v1547 = vpop.f32.mrb[0].mxu0
    %v1548 = vadd.f32 0.0, %v1547
    %v1549 = vpop.f32.mrb[0].mxu0
    %v1550 = vadd.f32 0.0, %v1549
    %v1551 = vpop.f32.mrb[0].mxu0
    %v1552 = vpop.f32.mrb[0].mxu0
    %1553 = vdwg.mxu0
    %1554 = vmatprep.subr.bf16.mxu0 %v1260
    %1555 = vmatpush1.bf16.msra.mxu0 %v1259
    %1556 = vmatprep.subr.bf16.mxu0 %v1276
    %1557 = vmatpush1.bf16.msra.mxu0 %v1275
    %1558 = vmatprep.subr.bf16.mxu0 %v1292
    %1559 = vmatpush1.bf16.msra.mxu0 %v1291
    %1560 = vmatprep.subr.bf16.mxu0 %v1308
    %1561 = vmatpush1.bf16.msra.mxu0 %v1307
    %1562 = vmatprep.subr.bf16.mxu0 %v1324
    %1563 = vmatpush1.bf16.msra.mxu0 %v1323
    %1564 = vmatprep.subr.bf16.mxu0 %v1340
    %1565 = vmatpush1.bf16.msra.mxu0 %v1339
    %1566 = vmatprep.subr.bf16.mxu0 %v1356
    %1567 = vmatpush1.bf16.msra.mxu0 %v1355
    %1568 = vmatprep.subr.bf16.mxu0 %v1372
    %1569 = vmatpush1.bf16.msra.mxu0 %v1371
    %1570 = vmatprep.subr.bf16.mxu0 0
    %1571 = vmatpush1.bf16.msra.mxu0 0
    %1572 = vmatprep.subr.bf16.mxu0 0
    %1573 = vmatpush1.bf16.msra.mxu0 0
    %1574 = vmatprep.subr.bf16.mxu0 0
    %1575 = vmatpush1.bf16.msra.mxu0 0
    %1576 = vmatprep.subr.bf16.mxu0 0
    %1577 = vmatpush1.bf16.msra.mxu0 0
    %1578 = vmatprep.subr.bf16.mxu0 0
    %1579 = vmatpush1.bf16.msra.mxu0 0
    %1580 = vmatprep.subr.bf16.mxu0 0
    %1581 = vmatpush1.bf16.msra.mxu0 0
    %1582 = vmatprep.subr.bf16.mxu0 0
    %1583 = vmatpush1.bf16.msra.mxu0 0
    %1584 = vmatprep.subr.bf16.mxu0 0
    %1585 = vmatpush1.bf16.msra.mxu0 0
    %1586 = vmatprep.mubr.bf16.mxu0 0
    %1587 = vmatmul.mubr.bf16.gmra.mrb[0].mxu0 %v744
    %v1588 = vpop.f32.mrb[0].mxu0
    %v1589 = vadd.f32 0.0, %v1588
    %v1590 = vpop.f32.mrb[0].mxu0
    %v1591 = vadd.f32 0.0, %v1590
    %v1592 = vpop.f32.mrb[0].mxu0
    %v1593 = vpop.f32.mrb[0].mxu0
    %1594 = vdwg.mxu0
    %1595 = vmatprep.subr.bf16.mxu0 %v1262
    %1596 = vmatpush1.bf16.msra.mxu0 %v1261
    %1597 = vmatprep.subr.bf16.mxu0 %v1278
    %1598 = vmatpush1.bf16.msra.mxu0 %v1277
    %1599 = vmatprep.subr.bf16.mxu0 %v1294
    %1600 = vmatpush1.bf16.msra.mxu0 %v1293
    %1601 = vmatprep.subr.bf16.mxu0 %v1310
    %1602 = vmatpush1.bf16.msra.mxu0 %v1309
    %1603 = vmatprep.subr.bf16.mxu0 %v1326
    %1604 = vmatpush1.bf16.msra.mxu0 %v1325
    %1605 = vmatprep.subr.bf16.mxu0 %v1342
    %1606 = vmatpush1.bf16.msra.mxu0 %v1341
    %1607 = vmatprep.subr.bf16.mxu0 %v1358
    %1608 = vmatpush1.bf16.msra.mxu0 %v1357
    %1609 = vmatprep.subr.bf16.mxu0 %v1374
    %1610 = vmatpush1.bf16.msra.mxu0 %v1373
    %1611 = vmatprep.subr.bf16.mxu0 0
    %1612 = vmatpush1.bf16.msra.mxu0 0
    %1613 = vmatprep.subr.bf16.mxu0 0
    %1614 = vmatpush1.bf16.msra.mxu0 0
    %1615 = vmatprep.subr.bf16.mxu0 0
    %1616 = vmatpush1.bf16.msra.mxu0 0
    %1617 = vmatprep.subr.bf16.mxu0 0
    %1618 = vmatpush1.bf16.msra.mxu0 0
    %1619 = vmatprep.subr.bf16.mxu0 0
    %1620 = vmatpush1.bf16.msra.mxu0 0
    %1621 = vmatprep.subr.bf16.mxu0 0
    %1622 = vmatpush1.bf16.msra.mxu0 0
    %1623 = vmatprep.subr.bf16.mxu0 0
    %1624 = vmatpush1.bf16.msra.mxu0 0
    %1625 = vmatprep.subr.bf16.mxu0 0
    %1626 = vmatpush1.bf16.msra.mxu0 0
    %1627 = vmatprep.mubr.bf16.mxu0 0
    %1628 = vmatmul.mubr.bf16.gmra.mrb[0].mxu0 %v744
    %v1629 = vpop.f32.mrb[0].mxu0
    %v1630 = vadd.f32 0.0, %v1629
    %v1631 = vpop.f32.mrb[0].mxu0
    %v1632 = vadd.f32 0.0, %v1631
    %v1633 = vpop.f32.mrb[0].mxu0
    %v1634 = vpop.f32.mrb[0].mxu0
    %1635 = vdwg.mxu0
    %1636 = vmatprep.subr.bf16.mxu0 %v1264
    %1637 = vmatpush1.bf16.msra.mxu0 %v1263
    %1638 = vmatprep.subr.bf16.mxu0 %v1280
    %1639 = vmatpush1.bf16.msra.mxu0 %v1279
    %1640 = vmatprep.subr.bf16.mxu0 %v1296
    %1641 = vmatpush1.bf16.msra.mxu0 %v1295
    %1642 = vmatprep.subr.bf16.mxu0 %v1312
    %1643 = vmatpush1.bf16.msra.mxu0 %v1311
    %1644 = vmatprep.subr.bf16.mxu0 %v1328
    %1645 = vmatpush1.bf16.msra.mxu0 %v1327
    %1646 = vmatprep.subr.bf16.mxu0 %v1344
    %1647 = vmatpush1.bf16.msra.mxu0 %v1343
    %1648 = vmatprep.subr.bf16.mxu0 %v1360
    %1649 = vmatpush1.bf16.msra.mxu0 %v1359
    %1650 = vmatprep.subr.bf16.mxu0 %v1376
    %1651 = vmatpush1.bf16.msra.mxu0 %v1375
    %1652 = vmatprep.subr.bf16.mxu0 0
    %1653 = vmatpush1.bf16.msra.mxu0 0
    %1654 = vmatprep.subr.bf16.mxu0 0
    %1655 = vmatpush1.bf16.msra.mxu0 0
    %1656 = vmatprep.subr.bf16.mxu0 0
    %1657 = vmatpush1.bf16.msra.mxu0 0
    %1658 = vmatprep.subr.bf16.mxu0 0
    %1659 = vmatpush1.bf16.msra.mxu0 0
    %1660 = vmatprep.subr.bf16.mxu0 0
    %1661 = vmatpush1.bf16.msra.mxu0 0
    %1662 = vmatprep.subr.bf16.mxu0 0
    %1663 = vmatpush1.bf16.msra.mxu0 0
    %1664 = vmatprep.subr.bf16.mxu0 0
    %1665 = vmatpush1.bf16.msra.mxu0 0
    %1666 = vmatprep.subr.bf16.mxu0 0
    %1667 = vmatpush1.bf16.msra.mxu0 0
    %1668 = vmatprep.mubr.bf16.mxu0 0
    %1669 = vmatmul.mubr.bf16.gmra.mrb[0].mxu0 %v744
    %v1670 = vpop.f32.mrb[0].mxu0
    %v1671 = vadd.f32 0.0, %v1670
    %v1672 = vpop.f32.mrb[0].mxu0
    %v1673 = vadd.f32 0.0, %v1672
    %v1674 = vpop.f32.mrb[0].mxu0
    %v1675 = vpop.f32.mrb[0].mxu0
    %1676 = vdwg.mxu0
    %1677 = vmatprep.subr.bf16.mxu0 %v1266
    %1678 = vmatpush1.bf16.msra.mxu0 %v1265
    %1679 = vmatprep.subr.bf16.mxu0 %v1282
    %1680 = vmatpush1.bf16.msra.mxu0 %v1281
    %1681 = vmatprep.subr.bf16.mxu0 %v1298
    %1682 = vmatpush1.bf16.msra.mxu0 %v1297
    %1683 = vmatprep.subr.bf16.mxu0 %v1314
    %1684 = vmatpush1.bf16.msra.mxu0 %v1313
    %1685 = vmatprep.subr.bf16.mxu0 %v1330
    %1686 = vmatpush1.bf16.msra.mxu0 %v1329
    %1687 = vmatprep.subr.bf16.mxu0 %v1346
    %1688 = vmatpush1.bf16.msra.mxu0 %v1345
    %1689 = vmatprep.subr.bf16.mxu0 %v1362
    %1690 = vmatpush1.bf16.msra.mxu0 %v1361
    %1691 = vmatprep.subr.bf16.mxu0 %v1378
    %1692 = vmatpush1.bf16.msra.mxu0 %v1377
    %1693 = vmatprep.subr.bf16.mxu0 0
    %1694 = vmatpush1.bf16.msra.mxu0 0
    %1695 = vmatprep.subr.bf16.mxu0 0
    %1696 = vmatpush1.bf16.msra.mxu0 0
    %1697 = vmatprep.subr.bf16.mxu0 0
    %1698 = vmatpush1.bf16.msra.mxu0 0
    %1699 = vmatprep.subr.bf16.mxu0 0
    %1700 = vmatpush1.bf16.msra.mxu0 0
    %1701 = vmatprep.subr.bf16.mxu0 0
    %1702 = vmatpush1.bf16.msra.mxu0 0
    %1703 = vmatprep.subr.bf16.mxu0 0
    %1704 = vmatpush1.bf16.msra.mxu0 0
    %1705 = vmatprep.subr.bf16.mxu0 0
    %1706 = vmatpush1.bf16.msra.mxu0 0
    %1707 = vmatprep.subr.bf16.mxu0 0
    %1708 = vmatpush1.bf16.msra.mxu0 0
    %1709 = vmatprep.mubr.bf16.mxu0 0
    %1710 = vmatmul.mubr.bf16.gmra.mrb[0].mxu0 %v744
    %v1711 = vpop.f32.mrb[0].mxu0
    %v1712 = vadd.f32 0.0, %v1711
    %v1713 = vpop.f32.mrb[0].mxu0
    %v1714 = vadd.f32 0.0, %v1713
    %v1715 = vpop.f32.mrb[0].mxu0
    %v1716 = vpop.f32.mrb[0].mxu0
    %1717 = vdwg.mxu0
    %1718 = vmatprep.subr.bf16.mxu0 %v1268
    %1719 = vmatpush1.bf16.msra.mxu0 %v1267
    %1720 = vmatprep.subr.bf16.mxu0 %v1284
    %1721 = vmatpush1.bf16.msra.mxu0 %v1283
    %1722 = vmatprep.subr.bf16.mxu0 %v1300
    %1723 = vmatpush1.bf16.msra.mxu0 %v1299
    %1724 = vmatprep.subr.bf16.mxu0 %v1316
    %1725 = vmatpush1.bf16.msra.mxu0 %v1315
    %1726 = vmatprep.subr.bf16.mxu0 %v1332
    %1727 = vmatpush1.bf16.msra.mxu0 %v1331
    %1728 = vmatprep.subr.bf16.mxu0 %v1348
    %1729 = vmatpush1.bf16.msra.mxu0 %v1347
    %1730 = vmatprep.subr.bf16.mxu0 %v1364
    %1731 = vmatpush1.bf16.msra.mxu0 %v1363
    %1732 = vmatprep.subr.bf16.mxu0 %v1380
    %1733 = vmatpush1.bf16.msra.mxu0 %v1379
    %1734 = vmatprep.subr.bf16.mxu0 0
    %1735 = vmatpush1.bf16.msra.mxu0 0
    %1736 = vmatprep.subr.bf16.mxu0 0
    %1737 = vmatpush1.bf16.msra.mxu0 0
    %1738 = vmatprep.subr.bf16.mxu0 0
    %1739 = vmatpush1.bf16.msra.mxu0 0
    %1740 = vmatprep.subr.bf16.mxu0 0
    %1741 = vmatpush1.bf16.msra.mxu0 0
    %1742 = vmatprep.subr.bf16.mxu0 0
    %1743 = vmatpush1.bf16.msra.mxu0 0
    %1744 = vmatprep.subr.bf16.mxu0 0
    %1745 = vmatpush1.bf16.msra.mxu0 0
    %1746 = vmatprep.subr.bf16.mxu0 0
    %1747 = vmatpush1.bf16.msra.mxu0 0
    %1748 = vmatprep.subr.bf16.mxu0 0
    %1749 = vmatpush1.bf16.msra.mxu0 0
    %1750 = vmatprep.mubr.bf16.mxu0 0
    %1751 = vmatmul.mubr.bf16.gmra.mrb[0].mxu0 %v744
    %v1752 = vpop.f32.mrb[0].mxu0
    %v1753 = vadd.f32 0.0, %v1752
    %v1754 = vpop.f32.mrb[0].mxu0
    %v1755 = vadd.f32 0.0, %v1754
    %v1756 = vpop.f32.mrb[0].mxu0
    %v1757 = vpop.f32.mrb[0].mxu0
    %1758 = vdwg.mxu0
    %1759 = vmatprep.subr.bf16.mxu0 %v1270
    %1760 = vmatpush1.bf16.msra.mxu0 %v1269
    %1761 = vmatprep.subr.bf16.mxu0 %v1286
    %1762 = vmatpush1.bf16.msra.mxu0 %v1285
    %1763 = vmatprep.subr.bf16.mxu0 %v1302
    %1764 = vmatpush1.bf16.msra.mxu0 %v1301
    %1765 = vmatprep.subr.bf16.mxu0 %v1318
    %1766 = vmatpush1.bf16.msra.mxu0 %v1317
    %1767 = vmatprep.subr.bf16.mxu0 %v1334
    %1768 = vmatpush1.bf16.msra.mxu0 %v1333
    %1769 = vmatprep.subr.bf16.mxu0 %v1350
    %1770 = vmatpush1.bf16.msra.mxu0 %v1349
    %1771 = vmatprep.subr.bf16.mxu0 %v1366
    %1772 = vmatpush1.bf16.msra.mxu0 %v1365
    %1773 = vmatprep.subr.bf16.mxu0 %v1382
    %1774 = vmatpush1.bf16.msra.mxu0 %v1381
    %1775 = vmatprep.subr.bf16.mxu0 0
    %1776 = vmatpush1.bf16.msra.mxu0 0
    %1777 = vmatprep.subr.bf16.mxu0 0
    %1778 = vmatpush1.bf16.msra.mxu0 0
    %1779 = vmatprep.subr.bf16.mxu0 0
    %1780 = vmatpush1.bf16.msra.mxu0 0
    %1781 = vmatprep.subr.bf16.mxu0 0
    %1782 = vmatpush1.bf16.msra.mxu0 0
    %1783 = vmatprep.subr.bf16.mxu0 0
    %1784 = vmatpush1.bf16.msra.mxu0 0
    %1785 = vmatprep.subr.bf16.mxu0 0
    %1786 = vmatpush1.bf16.msra.mxu0 0
    %1787 = vmatprep.subr.bf16.mxu0 0
    %1788 = vmatpush1.bf16.msra.mxu0 0
    %1789 = vmatprep.subr.bf16.mxu0 0
    %1790 = vmatpush1.bf16.msra.mxu0 0
    %1791 = vmatprep.mubr.bf16.mxu0 0
    %1792 = vmatmul.mubr.bf16.gmra.mrb[0].mxu0 %v744
    %v1793 = vpop.f32.mrb[0].mxu0
    %v1794 = vadd.f32 0.0, %v1793
    %v1795 = vpop.f32.mrb[0].mxu0
    %v1796 = vadd.f32 0.0, %v1795
    %v1797 = vpop.f32.mrb[0].mxu0
    %v1798 = vpop.f32.mrb[0].mxu0
    %1799 = vdwg.mxu0
    %1800 = vmatprep.subr.bf16.mxu0 %v1272
    %1801 = vmatpush1.bf16.msra.mxu0 %v1271
    %1802 = vmatprep.subr.bf16.mxu0 %v1288
    %1803 = vmatpush1.bf16.msra.mxu0 %v1287
    %1804 = vmatprep.subr.bf16.mxu0 %v1304
    %1805 = vmatpush1.bf16.msra.mxu0 %v1303
    %1806 = vmatprep.subr.bf16.mxu0 %v1320
    %1807 = vmatpush1.bf16.msra.mxu0 %v1319
    %1808 = vmatprep.subr.bf16.mxu0 %v1336
    %1809 = vmatpush1.bf16.msra.mxu0 %v1335
    %1810 = vmatprep.subr.bf16.mxu0 %v1352
    %1811 = vmatpush1.bf16.msra.mxu0 %v1351
    %1812 = vmatprep.subr.bf16.mxu0 %v1368
    %1813 = vmatpush1.bf16.msra.mxu0 %v1367
    %1814 = vmatprep.subr.bf16.mxu0 %v1384
    %1815 = vmatpush1.bf16.msra.mxu0 %v1383
    %1816 = vmatprep.subr.bf16.mxu0 0
    %1817 = vmatpush1.bf16.msra.mxu0 0
    %1818 = vmatprep.subr.bf16.mxu0 0
    %1819 = vmatpush1.bf16.msra.mxu0 0
    %1820 = vmatprep.subr.bf16.mxu0 0
    %1821 = vmatpush1.bf16.msra.mxu0 0
    %1822 = vmatprep.subr.bf16.mxu0 0
    %1823 = vmatpush1.bf16.msra.mxu0 0
    %1824 = vmatprep.subr.bf16.mxu0 0
    %1825 = vmatpush1.bf16.msra.mxu0 0
    %1826 = vmatprep.subr.bf16.mxu0 0
    %1827 = vmatpush1.bf16.msra.mxu0 0
    %1828 = vmatprep.subr.bf16.mxu0 0
    %1829 = vmatpush1.bf16.msra.mxu0 0
    %1830 = vmatprep.subr.bf16.mxu0 0
    %1831 = vmatpush1.bf16.msra.mxu0 0
    %1832 = vmatprep.mubr.bf16.mxu0 0
    %1833 = vmatmul.mubr.bf16.gmra.mrb[0].mxu0 %v744
    %v1834 = vpop.f32.mrb[0].mxu0
    %v1835 = vadd.f32 0.0, %v1834
    %v1836 = vpop.f32.mrb[0].mxu0
    %v1837 = vadd.f32 0.0, %v1836
    %v1838 = vpop.f32.mrb[0].mxu0
    %v1839 = vpop.f32.mrb[0].mxu0
    %1840 = vdwg.mxu0
    %v1842 = vcombine.high %v1548, %v1548
    %v1844 = vunpack.c.l.s4 1966171168
    %v1845 = vunpack.c.0.s8 %v1844
    %v1846 = vlaneseq
    %v1847 = vshrl.u32 %v1846, 7
    %v1848 = vsub.s32 %v1845, %v1847
    %v1849 = vrot.slane %v1548, %v1848
    %v1851 = vunpack.c.l.s4 1966171168
    %v1852 = vunpack.c.0.s8 %v1851
    %v1853 = vlaneseq
    %v1854 = vshrl.u32 %v1853, 7
    %v1855 = vsub.s32 %v1852, %v1854
    %v1856 = vrot.slane %v1842, %v1855
    %v1857 = vcombine.high %v1849, %v1849
    %v1858 = vcombine.high %v1856, %v1856
    %v1860 = vunpack.c.l.s4 1966171168
    %v1861 = vunpack.c.0.s8 %v1860
    %v1862 = vlaneseq
    %v1863 = vshrl.u32 %v1862, 7
    %v1864 = vsub.s32 %v1861, %v1863
    %v1865 = vrot.slane %v1849, %v1864
    %v1867 = vunpack.c.l.s4 1966171168
    %v1868 = vunpack.c.0.s8 %v1867
    %v1869 = vlaneseq
    %v1870 = vshrl.u32 %v1869, 7
    %v1871 = vsub.s32 %v1868, %v1870
    %v1872 = vrot.slane %v1856, %v1871
    %v1874 = vunpack.c.l.s4 1966171168
    %v1875 = vunpack.c.0.s8 %v1874
    %v1876 = vlaneseq
    %v1877 = vshrl.u32 %v1876, 7
    %v1878 = vsub.s32 %v1875, %v1877
    %v1879 = vrot.slane %v1857, %v1878
    %v1881 = vunpack.c.l.s4 1966171168
    %v1882 = vunpack.c.0.s8 %v1881
    %v1883 = vlaneseq
    %v1884 = vshrl.u32 %v1883, 7
    %v1885 = vsub.s32 %v1882, %v1884
    %v1886 = vrot.slane %v1858, %v1885
    %v1887 = vcombine.high %v1865, %v1865
    %v1888 = vcombine.high %v1872, %v1872
    %v1889 = vcombine.high %v1879, %v1879
    %v1890 = vcombine.high %v1886, %v1886
    %v1891 = vlaneseq
    %v1892 = vshrl.u32 %v1891, 7
    %v1893 = vsub.s32 0, %v1892
    %v1894 = vrot.slane %v1865, %v1893
    %v1895 = vlaneseq
    %v1896 = vshrl.u32 %v1895, 7
    %v1897 = vsub.s32 0, %v1896
    %v1898 = vrot.slane %v1879, %v1897
    %v1899 = vlaneseq
    %v1900 = vshrl.u32 %v1899, 7
    %v1901 = vsub.s32 0, %v1900
    %v1902 = vrot.slane %v1887, %v1901
    %v1903 = vlaneseq
    %v1904 = vshrl.u32 %v1903, 7
    %v1905 = vsub.s32 0, %v1904
    %v1906 = vrot.slane %v1889, %v1905
    %v1907 = vlaneseq
    %v1908 = vshrl.u32 %v1907, 7
    %v1909 = vsub.s32 0, %v1908
    %v1910 = vrot.slane %v1872, %v1909
    %v1911 = vlaneseq
    %v1912 = vshrl.u32 %v1911, 7
    %v1913 = vsub.s32 0, %v1912
    %v1914 = vrot.slane %v1886, %v1913
    %v1915 = vlaneseq
    %v1916 = vshrl.u32 %v1915, 7
    %v1917 = vsub.s32 0, %v1916
    %v1918 = vrot.slane %v1888, %v1917
    %v1919 = vlaneseq
    %v1920 = vshrl.u32 %v1919, 7
    %v1921 = vsub.s32 0, %v1920
    %v1922 = vrot.slane %v1890, %v1921
    %v1931 = vsub.f32 %v1894, %v1548
    %v1932 = vsub.f32 %v1898, %v1548
    %v1933 = vsub.f32 %v1902, %v1548
    %v1934 = vsub.f32 %v1906, %v1548
    %v1935 = vsub.f32 %v1910, %v1548
    %v1936 = vsub.f32 %v1914, %v1548
    %v1937 = vsub.f32 %v1918, %v1548
    %v1938 = vsub.f32 %v1922, %v1548
    %v1939 = vand.u32 2147483647, %v1931
    %v1940 = vand.u32 2147483647, %v1932
    %v1941 = vand.u32 2147483647, %v1933
    %v1942 = vand.u32 2147483647, %v1934
    %v1943 = vand.u32 2147483647, %v1935
    %v1944 = vand.u32 2147483647, %v1936
    %v1945 = vand.u32 2147483647, %v1937
    %v1946 = vand.u32 2147483647, %v1938
    %v1947 = vadd.f32 %v1939, 0.0
    %v1948 = vadd.f32 %v1940, 0.0
    %v1949 = vadd.f32 %v1941, 0.0
    %v1950 = vadd.f32 %v1942, 0.0
    %v1951 = vadd.f32 %v1943, 0.0
    %v1952 = vadd.f32 %v1944, 0.0
    %v1953 = vadd.f32 %v1945, 0.0
    %v1954 = vadd.f32 %v1946, 0.0
    %v1956 = vcombine.high %v1550, %v1550
    %v1958 = vunpack.c.l.s4 1966171168
    %v1959 = vunpack.c.0.s8 %v1958
    %v1960 = vlaneseq
    %v1961 = vshrl.u32 %v1960, 7
    %v1962 = vsub.s32 %v1959, %v1961
    %v1963 = vrot.slane %v1550, %v1962
    %v1965 = vunpack.c.l.s4 1966171168
    %v1966 = vunpack.c.0.s8 %v1965
    %v1967 = vlaneseq
    %v1968 = vshrl.u32 %v1967, 7
    %v1969 = vsub.s32 %v1966, %v1968
    %v1970 = vrot.slane %v1956, %v1969
    %v1971 = vcombine.high %v1963, %v1963
    %v1972 = vcombine.high %v1970, %v1970
    %v1974 = vunpack.c.l.s4 1966171168
    %v1975 = vunpack.c.0.s8 %v1974
    %v1976 = vlaneseq
    %v1977 = vshrl.u32 %v1976, 7
    %v1978 = vsub.s32 %v1975, %v1977
    %v1979 = vrot.slane %v1963, %v1978
    %v1981 = vunpack.c.l.s4 1966171168
    %v1982 = vunpack.c.0.s8 %v1981
    %v1983 = vlaneseq
    %v1984 = vshrl.u32 %v1983, 7
    %v1985 = vsub.s32 %v1982, %v1984
    %v1986 = vrot.slane %v1970, %v1985
    %v1988 = vunpack.c.l.s4 1966171168
    %v1989 = vunpack.c.0.s8 %v1988
    %v1990 = vlaneseq
    %v1991 = vshrl.u32 %v1990, 7
    %v1992 = vsub.s32 %v1989, %v1991
    %v1993 = vrot.slane %v1971, %v1992
    %v1995 = vunpack.c.l.s4 1966171168
    %v1996 = vunpack.c.0.s8 %v1995
    %v1997 = vlaneseq
    %v1998 = vshrl.u32 %v1997, 7
    %v1999 = vsub.s32 %v1996, %v1998
    %v2000 = vrot.slane %v1972, %v1999
    %v2001 = vcombine.high %v1979, %v1979
    %v2002 = vcombine.high %v1986, %v1986
    %v2003 = vcombine.high %v1993, %v1993
    %v2004 = vcombine.high %v2000, %v2000
    %v2005 = vlaneseq
    %v2006 = vshrl.u32 %v2005, 7
    %v2007 = vsub.s32 0, %v2006
    %v2008 = vrot.slane %v1979, %v2007
    %v2009 = vlaneseq
    %v2010 = vshrl.u32 %v2009, 7
    %v2011 = vsub.s32 0, %v2010
    %v2012 = vrot.slane %v1993, %v2011
    %v2013 = vlaneseq
    %v2014 = vshrl.u32 %v2013, 7
    %v2015 = vsub.s32 0, %v2014
    %v2016 = vrot.slane %v2001, %v2015
    %v2017 = vlaneseq
    %v2018 = vshrl.u32 %v2017, 7
    %v2019 = vsub.s32 0, %v2018
    %v2020 = vrot.slane %v2003, %v2019
    %v2021 = vlaneseq
    %v2022 = vshrl.u32 %v2021, 7
    %v2023 = vsub.s32 0, %v2022
    %v2024 = vrot.slane %v1986, %v2023
    %v2025 = vlaneseq
    %v2026 = vshrl.u32 %v2025, 7
    %v2027 = vsub.s32 0, %v2026
    %v2028 = vrot.slane %v2000, %v2027
    %v2029 = vlaneseq
    %v2030 = vshrl.u32 %v2029, 7
    %v2031 = vsub.s32 0, %v2030
    %v2032 = vrot.slane %v2002, %v2031
    %v2033 = vlaneseq
    %v2034 = vshrl.u32 %v2033, 7
    %v2035 = vsub.s32 0, %v2034
    %v2036 = vrot.slane %v2004, %v2035
    %v2045 = vsub.f32 %v2008, %v1550
    %v2046 = vsub.f32 %v2012, %v1550
    %v2047 = vsub.f32 %v2016, %v1550
    %v2048 = vsub.f32 %v2020, %v1550
    %v2049 = vsub.f32 %v2024, %v1550
    %v2050 = vsub.f32 %v2028, %v1550
    %v2051 = vsub.f32 %v2032, %v1550
    %v2052 = vsub.f32 %v2036, %v1550
    %v2053 = vand.u32 2147483647, %v2045
    %v2054 = vand.u32 2147483647, %v2046
    %v2055 = vand.u32 2147483647, %v2047
    %v2056 = vand.u32 2147483647, %v2048
    %v2057 = vand.u32 2147483647, %v2049
    %v2058 = vand.u32 2147483647, %v2050
    %v2059 = vand.u32 2147483647, %v2051
    %v2060 = vand.u32 2147483647, %v2052
    %v2061 = vadd.f32 %v1947, %v2053
    %v2062 = vadd.f32 %v1948, %v2054
    %v2063 = vadd.f32 %v1949, %v2055
    %v2064 = vadd.f32 %v1950, %v2056
    %v2065 = vadd.f32 %v1951, %v2057
    %v2066 = vadd.f32 %v1952, %v2058
    %v2067 = vadd.f32 %v1953, %v2059
    %v2068 = vadd.f32 %v1954, %v2060
    %v2070 = vcombine.high %v1589, %v1589
    %v2072 = vunpack.c.l.s4 1966171168
    %v2073 = vunpack.c.0.s8 %v2072
    %v2074 = vlaneseq
    %v2075 = vshrl.u32 %v2074, 7
    %v2076 = vsub.s32 %v2073, %v2075
    %v2077 = vrot.slane %v1589, %v2076
    %v2079 = vunpack.c.l.s4 1966171168
    %v2080 = vunpack.c.0.s8 %v2079
    %v2081 = vlaneseq
    %v2082 = vshrl.u32 %v2081, 7
    %v2083 = vsub.s32 %v2080, %v2082
    %v2084 = vrot.slane %v2070, %v2083
    %v2085 = vcombine.high %v2077, %v2077
    %v2086 = vcombine.high %v2084, %v2084
    %v2088 = vunpack.c.l.s4 1966171168
    %v2089 = vunpack.c.0.s8 %v2088
    %v2090 = vlaneseq
    %v2091 = vshrl.u32 %v2090, 7
    %v2092 = vsub.s32 %v2089, %v2091
    %v2093 = vrot.slane %v2077, %v2092
    %v2095 = vunpack.c.l.s4 1966171168
    %v2096 = vunpack.c.0.s8 %v2095
    %v2097 = vlaneseq
    %v2098 = vshrl.u32 %v2097, 7
    %v2099 = vsub.s32 %v2096, %v2098
    %v2100 = vrot.slane %v2084, %v2099
    %v2102 = vunpack.c.l.s4 1966171168
    %v2103 = vunpack.c.0.s8 %v2102
    %v2104 = vlaneseq
    %v2105 = vshrl.u32 %v2104, 7
    %v2106 = vsub.s32 %v2103, %v2105
    %v2107 = vrot.slane %v2085, %v2106
    %v2109 = vunpack.c.l.s4 1966171168
    %v2110 = vunpack.c.0.s8 %v2109
    %v2111 = vlaneseq
    %v2112 = vshrl.u32 %v2111, 7
    %v2113 = vsub.s32 %v2110, %v2112
    %v2114 = vrot.slane %v2086, %v2113
    %v2115 = vcombine.high %v2093, %v2093
    %v2116 = vcombine.high %v2100, %v2100
    %v2117 = vcombine.high %v2107, %v2107
    %v2118 = vcombine.high %v2114, %v2114
    %v2119 = vlaneseq
    %v2120 = vshrl.u32 %v2119, 7
    %v2121 = vsub.s32 0, %v2120
    %v2122 = vrot.slane %v2093, %v2121
    %v2123 = vlaneseq
    %v2124 = vshrl.u32 %v2123, 7
    %v2125 = vsub.s32 0, %v2124
    %v2126 = vrot.slane %v2107, %v2125
    %v2127 = vlaneseq
    %v2128 = vshrl.u32 %v2127, 7
    %v2129 = vsub.s32 0, %v2128
    %v2130 = vrot.slane %v2115, %v2129
    %v2131 = vlaneseq
    %v2132 = vshrl.u32 %v2131, 7
    %v2133 = vsub.s32 0, %v2132
    %v2134 = vrot.slane %v2117, %v2133
    %v2135 = vlaneseq
    %v2136 = vshrl.u32 %v2135, 7
    %v2137 = vsub.s32 0, %v2136
    %v2138 = vrot.slane %v2100, %v2137
    %v2139 = vlaneseq
    %v2140 = vshrl.u32 %v2139, 7
    %v2141 = vsub.s32 0, %v2140
    %v2142 = vrot.slane %v2114, %v2141
    %v2143 = vlaneseq
    %v2144 = vshrl.u32 %v2143, 7
    %v2145 = vsub.s32 0, %v2144
    %v2146 = vrot.slane %v2116, %v2145
    %v2147 = vlaneseq
    %v2148 = vshrl.u32 %v2147, 7
    %v2149 = vsub.s32 0, %v2148
    %v2150 = vrot.slane %v2118, %v2149
    %v2159 = vsub.f32 %v2122, %v1589
    %v2160 = vsub.f32 %v2126, %v1589
    %v2161 = vsub.f32 %v2130, %v1589
    %v2162 = vsub.f32 %v2134, %v1589
    %v2163 = vsub.f32 %v2138, %v1589
    %v2164 = vsub.f32 %v2142, %v1589
    %v2165 = vsub.f32 %v2146, %v1589
    %v2166 = vsub.f32 %v2150, %v1589
    %v2167 = vand.u32 2147483647, %v2159
    %v2168 = vand.u32 2147483647, %v2160
    %v2169 = vand.u32 2147483647, %v2161
    %v2170 = vand.u32 2147483647, %v2162
    %v2171 = vand.u32 2147483647, %v2163
    %v2172 = vand.u32 2147483647, %v2164
    %v2173 = vand.u32 2147483647, %v2165
    %v2174 = vand.u32 2147483647, %v2166
    %v2175 = vadd.f32 %v2061, %v2167
    %v2176 = vadd.f32 %v2062, %v2168
    %v2177 = vadd.f32 %v2063, %v2169
    %v2178 = vadd.f32 %v2064, %v2170
    %v2179 = vadd.f32 %v2065, %v2171
    %v2180 = vadd.f32 %v2066, %v2172
    %v2181 = vadd.f32 %v2067, %v2173
    %v2182 = vadd.f32 %v2068, %v2174
    %v2184 = vcombine.high %v1591, %v1591
    %v2186 = vunpack.c.l.s4 1966171168
    %v2187 = vunpack.c.0.s8 %v2186
    %v2188 = vlaneseq
    %v2189 = vshrl.u32 %v2188, 7
    %v2190 = vsub.s32 %v2187, %v2189
    %v2191 = vrot.slane %v1591, %v2190
    %v2193 = vunpack.c.l.s4 1966171168
    %v2194 = vunpack.c.0.s8 %v2193
    %v2195 = vlaneseq
    %v2196 = vshrl.u32 %v2195, 7
    %v2197 = vsub.s32 %v2194, %v2196
    %v2198 = vrot.slane %v2184, %v2197
    %v2199 = vcombine.high %v2191, %v2191
    %v2200 = vcombine.high %v2198, %v2198
    %v2202 = vunpack.c.l.s4 1966171168
    %v2203 = vunpack.c.0.s8 %v2202
    %v2204 = vlaneseq
    %v2205 = vshrl.u32 %v2204, 7
    %v2206 = vsub.s32 %v2203, %v2205
    %v2207 = vrot.slane %v2191, %v2206
    %v2209 = vunpack.c.l.s4 1966171168
    %v2210 = vunpack.c.0.s8 %v2209
    %v2211 = vlaneseq
    %v2212 = vshrl.u32 %v2211, 7
    %v2213 = vsub.s32 %v2210, %v2212
    %v2214 = vrot.slane %v2198, %v2213
    %v2216 = vunpack.c.l.s4 1966171168
    %v2217 = vunpack.c.0.s8 %v2216
    %v2218 = vlaneseq
    %v2219 = vshrl.u32 %v2218, 7
    %v2220 = vsub.s32 %v2217, %v2219
    %v2221 = vrot.slane %v2199, %v2220
    %v2223 = vunpack.c.l.s4 1966171168
    %v2224 = vunpack.c.0.s8 %v2223
    %v2225 = vlaneseq
    %v2226 = vshrl.u32 %v2225, 7
    %v2227 = vsub.s32 %v2224, %v2226
    %v2228 = vrot.slane %v2200, %v2227
    %v2229 = vcombine.high %v2207, %v2207
    %v2230 = vcombine.high %v2214, %v2214
    %v2231 = vcombine.high %v2221, %v2221
    %v2232 = vcombine.high %v2228, %v2228
    %v2233 = vlaneseq
    %v2234 = vshrl.u32 %v2233, 7
    %v2235 = vsub.s32 0, %v2234
    %v2236 = vrot.slane %v2207, %v2235
    %v2237 = vlaneseq
    %v2238 = vshrl.u32 %v2237, 7
    %v2239 = vsub.s32 0, %v2238
    %v2240 = vrot.slane %v2221, %v2239
    %v2241 = vlaneseq
    %v2242 = vshrl.u32 %v2241, 7
    %v2243 = vsub.s32 0, %v2242
    %v2244 = vrot.slane %v2229, %v2243
    %v2245 = vlaneseq
    %v2246 = vshrl.u32 %v2245, 7
    %v2247 = vsub.s32 0, %v2246
    %v2248 = vrot.slane %v2231, %v2247
    %v2249 = vlaneseq
    %v2250 = vshrl.u32 %v2249, 7
    %v2251 = vsub.s32 0, %v2250
    %v2252 = vrot.slane %v2214, %v2251
    %v2253 = vlaneseq
    %v2254 = vshrl.u32 %v2253, 7
    %v2255 = vsub.s32 0, %v2254
    %v2256 = vrot.slane %v2228, %v2255
    %v2257 = vlaneseq
    %v2258 = vshrl.u32 %v2257, 7
    %v2259 = vsub.s32 0, %v2258
    %v2260 = vrot.slane %v2230, %v2259
    %v2261 = vlaneseq
    %v2262 = vshrl.u32 %v2261, 7
    %v2263 = vsub.s32 0, %v2262
    %v2264 = vrot.slane %v2232, %v2263
    %v2273 = vsub.f32 %v2236, %v1591
    %v2274 = vsub.f32 %v2240, %v1591
    %v2275 = vsub.f32 %v2244, %v1591
    %v2276 = vsub.f32 %v2248, %v1591
    %v2277 = vsub.f32 %v2252, %v1591
    %v2278 = vsub.f32 %v2256, %v1591
    %v2279 = vsub.f32 %v2260, %v1591
    %v2280 = vsub.f32 %v2264, %v1591
    %v2281 = vand.u32 2147483647, %v2273
    %v2282 = vand.u32 2147483647, %v2274
    %v2283 = vand.u32 2147483647, %v2275
    %v2284 = vand.u32 2147483647, %v2276
    %v2285 = vand.u32 2147483647, %v2277
    %v2286 = vand.u32 2147483647, %v2278
    %v2287 = vand.u32 2147483647, %v2279
    %v2288 = vand.u32 2147483647, %v2280
    %v2289 = vadd.f32 %v2175, %v2281
    %v2290 = vadd.f32 %v2176, %v2282
    %v2291 = vadd.f32 %v2177, %v2283
    %v2292 = vadd.f32 %v2178, %v2284
    %v2293 = vadd.f32 %v2179, %v2285
    %v2294 = vadd.f32 %v2180, %v2286
    %v2295 = vadd.f32 %v2181, %v2287
    %v2296 = vadd.f32 %v2182, %v2288
    %v2298 = vcombine.high %v1630, %v1630
    %v2300 = vunpack.c.l.s4 1966171168
    %v2301 = vunpack.c.0.s8 %v2300
    %v2302 = vlaneseq
    %v2303 = vshrl.u32 %v2302, 7
    %v2304 = vsub.s32 %v2301, %v2303
    %v2305 = vrot.slane %v1630, %v2304
    %v2307 = vunpack.c.l.s4 1966171168
    %v2308 = vunpack.c.0.s8 %v2307
    %v2309 = vlaneseq
    %v2310 = vshrl.u32 %v2309, 7
    %v2311 = vsub.s32 %v2308, %v2310
    %v2312 = vrot.slane %v2298, %v2311
    %v2313 = vcombine.high %v2305, %v2305
    %v2314 = vcombine.high %v2312, %v2312
    %v2316 = vunpack.c.l.s4 1966171168
    %v2317 = vunpack.c.0.s8 %v2316
    %v2318 = vlaneseq
    %v2319 = vshrl.u32 %v2318, 7
    %v2320 = vsub.s32 %v2317, %v2319
    %v2321 = vrot.slane %v2305, %v2320
    %v2323 = vunpack.c.l.s4 1966171168
    %v2324 = vunpack.c.0.s8 %v2323
    %v2325 = vlaneseq
    %v2326 = vshrl.u32 %v2325, 7
    %v2327 = vsub.s32 %v2324, %v2326
    %v2328 = vrot.slane %v2312, %v2327
    %v2330 = vunpack.c.l.s4 1966171168
    %v2331 = vunpack.c.0.s8 %v2330
    %v2332 = vlaneseq
    %v2333 = vshrl.u32 %v2332, 7
    %v2334 = vsub.s32 %v2331, %v2333
    %v2335 = vrot.slane %v2313, %v2334
    %v2337 = vunpack.c.l.s4 1966171168
    %v2338 = vunpack.c.0.s8 %v2337
    %v2339 = vlaneseq
    %v2340 = vshrl.u32 %v2339, 7
    %v2341 = vsub.s32 %v2338, %v2340
    %v2342 = vrot.slane %v2314, %v2341
    %v2343 = vcombine.high %v2321, %v2321
    %v2344 = vcombine.high %v2328, %v2328
    %v2345 = vcombine.high %v2335, %v2335
    %v2346 = vcombine.high %v2342, %v2342
    %v2347 = vlaneseq
    %v2348 = vshrl.u32 %v2347, 7
    %v2349 = vsub.s32 0, %v2348
    %v2350 = vrot.slane %v2321, %v2349
    %v2351 = vlaneseq
    %v2352 = vshrl.u32 %v2351, 7
    %v2353 = vsub.s32 0, %v2352
    %v2354 = vrot.slane %v2335, %v2353
    %v2355 = vlaneseq
    %v2356 = vshrl.u32 %v2355, 7
    %v2357 = vsub.s32 0, %v2356
    %v2358 = vrot.slane %v2343, %v2357
    %v2359 = vlaneseq
    %v2360 = vshrl.u32 %v2359, 7
    %v2361 = vsub.s32 0, %v2360
    %v2362 = vrot.slane %v2345, %v2361
    %v2363 = vlaneseq
    %v2364 = vshrl.u32 %v2363, 7
    %v2365 = vsub.s32 0, %v2364
    %v2366 = vrot.slane %v2328, %v2365
    %v2367 = vlaneseq
    %v2368 = vshrl.u32 %v2367, 7
    %v2369 = vsub.s32 0, %v2368
    %v2370 = vrot.slane %v2342, %v2369
    %v2371 = vlaneseq
    %v2372 = vshrl.u32 %v2371, 7
    %v2373 = vsub.s32 0, %v2372
    %v2374 = vrot.slane %v2344, %v2373
    %v2375 = vlaneseq
    %v2376 = vshrl.u32 %v2375, 7
    %v2377 = vsub.s32 0, %v2376
    %v2378 = vrot.slane %v2346, %v2377
    %v2387 = vsub.f32 %v2350, %v1630
    %v2388 = vsub.f32 %v2354, %v1630
    %v2389 = vsub.f32 %v2358, %v1630
    %v2390 = vsub.f32 %v2362, %v1630
    %v2391 = vsub.f32 %v2366, %v1630
    %v2392 = vsub.f32 %v2370, %v1630
    %v2393 = vsub.f32 %v2374, %v1630
    %v2394 = vsub.f32 %v2378, %v1630
    %v2395 = vand.u32 2147483647, %v2387
    %v2396 = vand.u32 2147483647, %v2388
    %v2397 = vand.u32 2147483647, %v2389
    %v2398 = vand.u32 2147483647, %v2390
    %v2399 = vand.u32 2147483647, %v2391
    %v2400 = vand.u32 2147483647, %v2392
    %v2401 = vand.u32 2147483647, %v2393
    %v2402 = vand.u32 2147483647, %v2394
    %v2403 = vadd.f32 %v2289, %v2395
    %v2404 = vadd.f32 %v2290, %v2396
    %v2405 = vadd.f32 %v2291, %v2397
    %v2406 = vadd.f32 %v2292, %v2398
    %v2407 = vadd.f32 %v2293, %v2399
    %v2408 = vadd.f32 %v2294, %v2400
    %v2409 = vadd.f32 %v2295, %v2401
    %v2410 = vadd.f32 %v2296, %v2402
    %v2412 = vcombine.high %v1632, %v1632
    %v2414 = vunpack.c.l.s4 1966171168
    %v2415 = vunpack.c.0.s8 %v2414
    %v2416 = vlaneseq
    %v2417 = vshrl.u32 %v2416, 7
    %v2418 = vsub.s32 %v2415, %v2417
    %v2419 = vrot.slane %v1632, %v2418
    %v2421 = vunpack.c.l.s4 1966171168
    %v2422 = vunpack.c.0.s8 %v2421
    %v2423 = vlaneseq
    %v2424 = vshrl.u32 %v2423, 7
    %v2425 = vsub.s32 %v2422, %v2424
    %v2426 = vrot.slane %v2412, %v2425
    %v2427 = vcombine.high %v2419, %v2419
    %v2428 = vcombine.high %v2426, %v2426
    %v2430 = vunpack.c.l.s4 1966171168
    %v2431 = vunpack.c.0.s8 %v2430
    %v2432 = vlaneseq
    %v2433 = vshrl.u32 %v2432, 7
    %v2434 = vsub.s32 %v2431, %v2433
    %v2435 = vrot.slane %v2419, %v2434
    %v2437 = vunpack.c.l.s4 1966171168
    %v2438 = vunpack.c.0.s8 %v2437
    %v2439 = vlaneseq
    %v2440 = vshrl.u32 %v2439, 7
    %v2441 = vsub.s32 %v2438, %v2440
    %v2442 = vrot.slane %v2426, %v2441
    %v2444 = vunpack.c.l.s4 1966171168
    %v2445 = vunpack.c.0.s8 %v2444
    %v2446 = vlaneseq
    %v2447 = vshrl.u32 %v2446, 7
    %v2448 = vsub.s32 %v2445, %v2447
    %v2449 = vrot.slane %v2427, %v2448
    %v2451 = vunpack.c.l.s4 1966171168
    %v2452 = vunpack.c.0.s8 %v2451
    %v2453 = vlaneseq
    %v2454 = vshrl.u32 %v2453, 7
    %v2455 = vsub.s32 %v2452, %v2454
    %v2456 = vrot.slane %v2428, %v2455
    %v2457 = vcombine.high %v2435, %v2435
    %v2458 = vcombine.high %v2442, %v2442
    %v2459 = vcombine.high %v2449, %v2449
    %v2460 = vcombine.high %v2456, %v2456
    %v2461 = vlaneseq
    %v2462 = vshrl.u32 %v2461, 7
    %v2463 = vsub.s32 0, %v2462
    %v2464 = vrot.slane %v2435, %v2463
    %v2465 = vlaneseq
    %v2466 = vshrl.u32 %v2465, 7
    %v2467 = vsub.s32 0, %v2466
    %v2468 = vrot.slane %v2449, %v2467
    %v2469 = vlaneseq
    %v2470 = vshrl.u32 %v2469, 7
    %v2471 = vsub.s32 0, %v2470
    %v2472 = vrot.slane %v2457, %v2471
    %v2473 = vlaneseq
    %v2474 = vshrl.u32 %v2473, 7
    %v2475 = vsub.s32 0, %v2474
    %v2476 = vrot.slane %v2459, %v2475
    %v2477 = vlaneseq
    %v2478 = vshrl.u32 %v2477, 7
    %v2479 = vsub.s32 0, %v2478
    %v2480 = vrot.slane %v2442, %v2479
    %v2481 = vlaneseq
    %v2482 = vshrl.u32 %v2481, 7
    %v2483 = vsub.s32 0, %v2482
    %v2484 = vrot.slane %v2456, %v2483
    %v2485 = vlaneseq
    %v2486 = vshrl.u32 %v2485, 7
    %v2487 = vsub.s32 0, %v2486
    %v2488 = vrot.slane %v2458, %v2487
    %v2489 = vlaneseq
    %v2490 = vshrl.u32 %v2489, 7
    %v2491 = vsub.s32 0, %v2490
    %v2492 = vrot.slane %v2460, %v2491
    %v2501 = vsub.f32 %v2464, %v1632
    %v2502 = vsub.f32 %v2468, %v1632
    %v2503 = vsub.f32 %v2472, %v1632
    %v2504 = vsub.f32 %v2476, %v1632
    %v2505 = vsub.f32 %v2480, %v1632
    %v2506 = vsub.f32 %v2484, %v1632
    %v2507 = vsub.f32 %v2488, %v1632
    %v2508 = vsub.f32 %v2492, %v1632
    %v2509 = vand.u32 2147483647, %v2501
    %v2510 = vand.u32 2147483647, %v2502
    %v2511 = vand.u32 2147483647, %v2503
    %v2512 = vand.u32 2147483647, %v2504
    %v2513 = vand.u32 2147483647, %v2505
    %v2514 = vand.u32 2147483647, %v2506
    %v2515 = vand.u32 2147483647, %v2507
    %v2516 = vand.u32 2147483647, %v2508
    %v2517 = vadd.f32 %v2403, %v2509
    %v2518 = vadd.f32 %v2404, %v2510
    %v2519 = vadd.f32 %v2405, %v2511
    %v2520 = vadd.f32 %v2406, %v2512
    %v2521 = vadd.f32 %v2407, %v2513
    %v2522 = vadd.f32 %v2408, %v2514
    %v2523 = vadd.f32 %v2409, %v2515
    %v2524 = vadd.f32 %v2410, %v2516
    %v2526 = vcombine.high %v1671, %v1671
    %v2528 = vunpack.c.l.s4 1966171168
    %v2529 = vunpack.c.0.s8 %v2528
    %v2530 = vlaneseq
    %v2531 = vshrl.u32 %v2530, 7
    %v2532 = vsub.s32 %v2529, %v2531
    %v2533 = vrot.slane %v1671, %v2532
    %v2535 = vunpack.c.l.s4 1966171168
    %v2536 = vunpack.c.0.s8 %v2535
    %v2537 = vlaneseq
    %v2538 = vshrl.u32 %v2537, 7
    %v2539 = vsub.s32 %v2536, %v2538
    %v2540 = vrot.slane %v2526, %v2539
    %v2541 = vcombine.high %v2533, %v2533
    %v2542 = vcombine.high %v2540, %v2540
    %v2544 = vunpack.c.l.s4 1966171168
    %v2545 = vunpack.c.0.s8 %v2544
    %v2546 = vlaneseq
    %v2547 = vshrl.u32 %v2546, 7
    %v2548 = vsub.s32 %v2545, %v2547
    %v2549 = vrot.slane %v2533, %v2548
    %v2551 = vunpack.c.l.s4 1966171168
    %v2552 = vunpack.c.0.s8 %v2551
    %v2553 = vlaneseq
    %v2554 = vshrl.u32 %v2553, 7
    %v2555 = vsub.s32 %v2552, %v2554
    %v2556 = vrot.slane %v2540, %v2555
    %v2558 = vunpack.c.l.s4 1966171168
    %v2559 = vunpack.c.0.s8 %v2558
    %v2560 = vlaneseq
    %v2561 = vshrl.u32 %v2560, 7
    %v2562 = vsub.s32 %v2559, %v2561
    %v2563 = vrot.slane %v2541, %v2562
    %v2565 = vunpack.c.l.s4 1966171168
    %v2566 = vunpack.c.0.s8 %v2565
    %v2567 = vlaneseq
    %v2568 = vshrl.u32 %v2567, 7
    %v2569 = vsub.s32 %v2566, %v2568
    %v2570 = vrot.slane %v2542, %v2569
    %v2571 = vcombine.high %v2549, %v2549
    %v2572 = vcombine.high %v2556, %v2556
    %v2573 = vcombine.high %v2563, %v2563
    %v2574 = vcombine.high %v2570, %v2570
    %v2575 = vlaneseq
    %v2576 = vshrl.u32 %v2575, 7
    %v2577 = vsub.s32 0, %v2576
    %v2578 = vrot.slane %v2549, %v2577
    %v2579 = vlaneseq
    %v2580 = vshrl.u32 %v2579, 7
    %v2581 = vsub.s32 0, %v2580
    %v2582 = vrot.slane %v2563, %v2581
    %v2583 = vlaneseq
    %v2584 = vshrl.u32 %v2583, 7
    %v2585 = vsub.s32 0, %v2584
    %v2586 = vrot.slane %v2571, %v2585
    %v2587 = vlaneseq
    %v2588 = vshrl.u32 %v2587, 7
    %v2589 = vsub.s32 0, %v2588
    %v2590 = vrot.slane %v2573, %v2589
    %v2591 = vlaneseq
    %v2592 = vshrl.u32 %v2591, 7
    %v2593 = vsub.s32 0, %v2592
    %v2594 = vrot.slane %v2556, %v2593
    %v2595 = vlaneseq
    %v2596 = vshrl.u32 %v2595, 7
    %v2597 = vsub.s32 0, %v2596
    %v2598 = vrot.slane %v2570, %v2597
    %v2599 = vlaneseq
    %v2600 = vshrl.u32 %v2599, 7
    %v2601 = vsub.s32 0, %v2600
    %v2602 = vrot.slane %v2572, %v2601
    %v2603 = vlaneseq
    %v2604 = vshrl.u32 %v2603, 7
    %v2605 = vsub.s32 0, %v2604
    %v2606 = vrot.slane %v2574, %v2605
    %v2615 = vsub.f32 %v2578, %v1671
    %v2616 = vsub.f32 %v2582, %v1671
    %v2617 = vsub.f32 %v2586, %v1671
    %v2618 = vsub.f32 %v2590, %v1671
    %v2619 = vsub.f32 %v2594, %v1671
    %v2620 = vsub.f32 %v2598, %v1671
    %v2621 = vsub.f32 %v2602, %v1671
    %v2622 = vsub.f32 %v2606, %v1671
    %v2623 = vand.u32 2147483647, %v2615
    %v2624 = vand.u32 2147483647, %v2616
    %v2625 = vand.u32 2147483647, %v2617
    %v2626 = vand.u32 2147483647, %v2618
    %v2627 = vand.u32 2147483647, %v2619
    %v2628 = vand.u32 2147483647, %v2620
    %v2629 = vand.u32 2147483647, %v2621
    %v2630 = vand.u32 2147483647, %v2622
    %v2631 = vadd.f32 %v2517, %v2623
    %v2632 = vadd.f32 %v2518, %v2624
    %v2633 = vadd.f32 %v2519, %v2625
    %v2634 = vadd.f32 %v2520, %v2626
    %v2635 = vadd.f32 %v2521, %v2627
    %v2636 = vadd.f32 %v2522, %v2628
    %v2637 = vadd.f32 %v2523, %v2629
    %v2638 = vadd.f32 %v2524, %v2630
    %v2640 = vcombine.high %v1673, %v1673
    %v2642 = vunpack.c.l.s4 1966171168
    %v2643 = vunpack.c.0.s8 %v2642
    %v2644 = vlaneseq
    %v2645 = vshrl.u32 %v2644, 7
    %v2646 = vsub.s32 %v2643, %v2645
    %v2647 = vrot.slane %v1673, %v2646
    %v2649 = vunpack.c.l.s4 1966171168
    %v2650 = vunpack.c.0.s8 %v2649
    %v2651 = vlaneseq
    %v2652 = vshrl.u32 %v2651, 7
    %v2653 = vsub.s32 %v2650, %v2652
    %v2654 = vrot.slane %v2640, %v2653
    %v2655 = vcombine.high %v2647, %v2647
    %v2656 = vcombine.high %v2654, %v2654
    %v2658 = vunpack.c.l.s4 1966171168
    %v2659 = vunpack.c.0.s8 %v2658
    %v2660 = vlaneseq
    %v2661 = vshrl.u32 %v2660, 7
    %v2662 = vsub.s32 %v2659, %v2661
    %v2663 = vrot.slane %v2647, %v2662
    %v2665 = vunpack.c.l.s4 1966171168
    %v2666 = vunpack.c.0.s8 %v2665
    %v2667 = vlaneseq
    %v2668 = vshrl.u32 %v2667, 7
    %v2669 = vsub.s32 %v2666, %v2668
    %v2670 = vrot.slane %v2654, %v2669
    %v2672 = vunpack.c.l.s4 1966171168
    %v2673 = vunpack.c.0.s8 %v2672
    %v2674 = vlaneseq
    %v2675 = vshrl.u32 %v2674, 7
    %v2676 = vsub.s32 %v2673, %v2675
    %v2677 = vrot.slane %v2655, %v2676
    %v2679 = vunpack.c.l.s4 1966171168
    %v2680 = vunpack.c.0.s8 %v2679
    %v2681 = vlaneseq
    %v2682 = vshrl.u32 %v2681, 7
    %v2683 = vsub.s32 %v2680, %v2682
    %v2684 = vrot.slane %v2656, %v2683
    %v2685 = vcombine.high %v2663, %v2663
    %v2686 = vcombine.high %v2670, %v2670
    %v2687 = vcombine.high %v2677, %v2677
    %v2688 = vcombine.high %v2684, %v2684
    %v2689 = vlaneseq
    %v2690 = vshrl.u32 %v2689, 7
    %v2691 = vsub.s32 0, %v2690
    %v2692 = vrot.slane %v2663, %v2691
    %v2693 = vlaneseq
    %v2694 = vshrl.u32 %v2693, 7
    %v2695 = vsub.s32 0, %v2694
    %v2696 = vrot.slane %v2677, %v2695
    %v2697 = vlaneseq
    %v2698 = vshrl.u32 %v2697, 7
    %v2699 = vsub.s32 0, %v2698
    %v2700 = vrot.slane %v2685, %v2699
    %v2701 = vlaneseq
    %v2702 = vshrl.u32 %v2701, 7
    %v2703 = vsub.s32 0, %v2702
    %v2704 = vrot.slane %v2687, %v2703
    %v2705 = vlaneseq
    %v2706 = vshrl.u32 %v2705, 7
    %v2707 = vsub.s32 0, %v2706
    %v2708 = vrot.slane %v2670, %v2707
    %v2709 = vlaneseq
    %v2710 = vshrl.u32 %v2709, 7
    %v2711 = vsub.s32 0, %v2710
    %v2712 = vrot.slane %v2684, %v2711
    %v2713 = vlaneseq
    %v2714 = vshrl.u32 %v2713, 7
    %v2715 = vsub.s32 0, %v2714
    %v2716 = vrot.slane %v2686, %v2715
    %v2717 = vlaneseq
    %v2718 = vshrl.u32 %v2717, 7
    %v2719 = vsub.s32 0, %v2718
    %v2720 = vrot.slane %v2688, %v2719
    %v2729 = vsub.f32 %v2692, %v1673
    %v2730 = vsub.f32 %v2696, %v1673
    %v2731 = vsub.f32 %v2700, %v1673
    %v2732 = vsub.f32 %v2704, %v1673
    %v2733 = vsub.f32 %v2708, %v1673
    %v2734 = vsub.f32 %v2712, %v1673
    %v2735 = vsub.f32 %v2716, %v1673
    %v2736 = vsub.f32 %v2720, %v1673
    %v2737 = vand.u32 2147483647, %v2729
    %v2738 = vand.u32 2147483647, %v2730
    %v2739 = vand.u32 2147483647, %v2731
    %v2740 = vand.u32 2147483647, %v2732
    %v2741 = vand.u32 2147483647, %v2733
    %v2742 = vand.u32 2147483647, %v2734
    %v2743 = vand.u32 2147483647, %v2735
    %v2744 = vand.u32 2147483647, %v2736
    %v2745 = vadd.f32 %v2631, %v2737
    %v2746 = vadd.f32 %v2632, %v2738
    %v2747 = vadd.f32 %v2633, %v2739
    %v2748 = vadd.f32 %v2634, %v2740
    %v2749 = vadd.f32 %v2635, %v2741
    %v2750 = vadd.f32 %v2636, %v2742
    %v2751 = vadd.f32 %v2637, %v2743
    %v2752 = vadd.f32 %v2638, %v2744
    %v2754 = vcombine.high %v1712, %v1712
    %v2756 = vunpack.c.l.s4 1966171168
    %v2757 = vunpack.c.0.s8 %v2756
    %v2758 = vlaneseq
    %v2759 = vshrl.u32 %v2758, 7
    %v2760 = vsub.s32 %v2757, %v2759
    %v2761 = vrot.slane %v1712, %v2760
    %v2763 = vunpack.c.l.s4 1966171168
    %v2764 = vunpack.c.0.s8 %v2763
    %v2765 = vlaneseq
    %v2766 = vshrl.u32 %v2765, 7
    %v2767 = vsub.s32 %v2764, %v2766
    %v2768 = vrot.slane %v2754, %v2767
    %v2769 = vcombine.high %v2761, %v2761
    %v2770 = vcombine.high %v2768, %v2768
    %v2772 = vunpack.c.l.s4 1966171168
    %v2773 = vunpack.c.0.s8 %v2772
    %v2774 = vlaneseq
    %v2775 = vshrl.u32 %v2774, 7
    %v2776 = vsub.s32 %v2773, %v2775
    %v2777 = vrot.slane %v2761, %v2776
    %v2779 = vunpack.c.l.s4 1966171168
    %v2780 = vunpack.c.0.s8 %v2779
    %v2781 = vlaneseq
    %v2782 = vshrl.u32 %v2781, 7
    %v2783 = vsub.s32 %v2780, %v2782
    %v2784 = vrot.slane %v2768, %v2783
    %v2786 = vunpack.c.l.s4 1966171168
    %v2787 = vunpack.c.0.s8 %v2786
    %v2788 = vlaneseq
    %v2789 = vshrl.u32 %v2788, 7
    %v2790 = vsub.s32 %v2787, %v2789
    %v2791 = vrot.slane %v2769, %v2790
    %v2793 = vunpack.c.l.s4 1966171168
    %v2794 = vunpack.c.0.s8 %v2793
    %v2795 = vlaneseq
    %v2796 = vshrl.u32 %v2795, 7
    %v2797 = vsub.s32 %v2794, %v2796
    %v2798 = vrot.slane %v2770, %v2797
    %v2799 = vcombine.high %v2777, %v2777
    %v2800 = vcombine.high %v2784, %v2784
    %v2801 = vcombine.high %v2791, %v2791
    %v2802 = vcombine.high %v2798, %v2798
    %v2803 = vlaneseq
    %v2804 = vshrl.u32 %v2803, 7
    %v2805 = vsub.s32 0, %v2804
    %v2806 = vrot.slane %v2777, %v2805
    %v2807 = vlaneseq
    %v2808 = vshrl.u32 %v2807, 7
    %v2809 = vsub.s32 0, %v2808
    %v2810 = vrot.slane %v2791, %v2809
    %v2811 = vlaneseq
    %v2812 = vshrl.u32 %v2811, 7
    %v2813 = vsub.s32 0, %v2812
    %v2814 = vrot.slane %v2799, %v2813
    %v2815 = vlaneseq
    %v2816 = vshrl.u32 %v2815, 7
    %v2817 = vsub.s32 0, %v2816
    %v2818 = vrot.slane %v2801, %v2817
    %v2819 = vlaneseq
    %v2820 = vshrl.u32 %v2819, 7
    %v2821 = vsub.s32 0, %v2820
    %v2822 = vrot.slane %v2784, %v2821
    %v2823 = vlaneseq
    %v2824 = vshrl.u32 %v2823, 7
    %v2825 = vsub.s32 0, %v2824
    %v2826 = vrot.slane %v2798, %v2825
    %v2827 = vlaneseq
    %v2828 = vshrl.u32 %v2827, 7
    %v2829 = vsub.s32 0, %v2828
    %v2830 = vrot.slane %v2800, %v2829
    %v2831 = vlaneseq
    %v2832 = vshrl.u32 %v2831, 7
    %v2833 = vsub.s32 0, %v2832
    %v2834 = vrot.slane %v2802, %v2833
    %v2843 = vsub.f32 %v2806, %v1712
    %v2844 = vsub.f32 %v2810, %v1712
    %v2845 = vsub.f32 %v2814, %v1712
    %v2846 = vsub.f32 %v2818, %v1712
    %v2847 = vsub.f32 %v2822, %v1712
    %v2848 = vsub.f32 %v2826, %v1712
    %v2849 = vsub.f32 %v2830, %v1712
    %v2850 = vsub.f32 %v2834, %v1712
    %v2851 = vand.u32 2147483647, %v2843
    %v2852 = vand.u32 2147483647, %v2844
    %v2853 = vand.u32 2147483647, %v2845
    %v2854 = vand.u32 2147483647, %v2846
    %v2855 = vand.u32 2147483647, %v2847
    %v2856 = vand.u32 2147483647, %v2848
    %v2857 = vand.u32 2147483647, %v2849
    %v2858 = vand.u32 2147483647, %v2850
    %v2859 = vadd.f32 %v2745, %v2851
    %v2860 = vadd.f32 %v2746, %v2852
    %v2861 = vadd.f32 %v2747, %v2853
    %v2862 = vadd.f32 %v2748, %v2854
    %v2863 = vadd.f32 %v2749, %v2855
    %v2864 = vadd.f32 %v2750, %v2856
    %v2865 = vadd.f32 %v2751, %v2857
    %v2866 = vadd.f32 %v2752, %v2858
    %v2868 = vcombine.high %v1714, %v1714
    %v2870 = vunpack.c.l.s4 1966171168
    %v2871 = vunpack.c.0.s8 %v2870
    %v2872 = vlaneseq
    %v2873 = vshrl.u32 %v2872, 7
    %v2874 = vsub.s32 %v2871, %v2873
    %v2875 = vrot.slane %v1714, %v2874
    %v2877 = vunpack.c.l.s4 1966171168
    %v2878 = vunpack.c.0.s8 %v2877
    %v2879 = vlaneseq
    %v2880 = vshrl.u32 %v2879, 7
    %v2881 = vsub.s32 %v2878, %v2880
    %v2882 = vrot.slane %v2868, %v2881
    %v2883 = vcombine.high %v2875, %v2875
    %v2884 = vcombine.high %v2882, %v2882
    %v2886 = vunpack.c.l.s4 1966171168
    %v2887 = vunpack.c.0.s8 %v2886
    %v2888 = vlaneseq
    %v2889 = vshrl.u32 %v2888, 7
    %v2890 = vsub.s32 %v2887, %v2889
    %v2891 = vrot.slane %v2875, %v2890
    %v2893 = vunpack.c.l.s4 1966171168
    %v2894 = vunpack.c.0.s8 %v2893
    %v2895 = vlaneseq
    %v2896 = vshrl.u32 %v2895, 7
    %v2897 = vsub.s32 %v2894, %v2896
    %v2898 = vrot.slane %v2882, %v2897
    %v2900 = vunpack.c.l.s4 1966171168
    %v2901 = vunpack.c.0.s8 %v2900
    %v2902 = vlaneseq
    %v2903 = vshrl.u32 %v2902, 7
    %v2904 = vsub.s32 %v2901, %v2903
    %v2905 = vrot.slane %v2883, %v2904
    %v2907 = vunpack.c.l.s4 1966171168
    %v2908 = vunpack.c.0.s8 %v2907
    %v2909 = vlaneseq
    %v2910 = vshrl.u32 %v2909, 7
    %v2911 = vsub.s32 %v2908, %v2910
    %v2912 = vrot.slane %v2884, %v2911
    %v2913 = vcombine.high %v2891, %v2891
    %v2914 = vcombine.high %v2898, %v2898
    %v2915 = vcombine.high %v2905, %v2905
    %v2916 = vcombine.high %v2912, %v2912
    %v2917 = vlaneseq
    %v2918 = vshrl.u32 %v2917, 7
    %v2919 = vsub.s32 0, %v2918
    %v2920 = vrot.slane %v2891, %v2919
    %v2921 = vlaneseq
    %v2922 = vshrl.u32 %v2921, 7
    %v2923 = vsub.s32 0, %v2922
    %v2924 = vrot.slane %v2905, %v2923
    %v2925 = vlaneseq
    %v2926 = vshrl.u32 %v2925, 7
    %v2927 = vsub.s32 0, %v2926
    %v2928 = vrot.slane %v2913, %v2927
    %v2929 = vlaneseq
    %v2930 = vshrl.u32 %v2929, 7
    %v2931 = vsub.s32 0, %v2930
    %v2932 = vrot.slane %v2915, %v2931
    %v2933 = vlaneseq
    %v2934 = vshrl.u32 %v2933, 7
    %v2935 = vsub.s32 0, %v2934
    %v2936 = vrot.slane %v2898, %v2935
    %v2937 = vlaneseq
    %v2938 = vshrl.u32 %v2937, 7
    %v2939 = vsub.s32 0, %v2938
    %v2940 = vrot.slane %v2912, %v2939
    %v2941 = vlaneseq
    %v2942 = vshrl.u32 %v2941, 7
    %v2943 = vsub.s32 0, %v2942
    %v2944 = vrot.slane %v2914, %v2943
    %v2945 = vlaneseq
    %v2946 = vshrl.u32 %v2945, 7
    %v2947 = vsub.s32 0, %v2946
    %v2948 = vrot.slane %v2916, %v2947
    %v2957 = vsub.f32 %v2920, %v1714
    %v2958 = vsub.f32 %v2924, %v1714
    %v2959 = vsub.f32 %v2928, %v1714
    %v2960 = vsub.f32 %v2932, %v1714
    %v2961 = vsub.f32 %v2936, %v1714
    %v2962 = vsub.f32 %v2940, %v1714
    %v2963 = vsub.f32 %v2944, %v1714
    %v2964 = vsub.f32 %v2948, %v1714
    %v2965 = vand.u32 2147483647, %v2957
    %v2966 = vand.u32 2147483647, %v2958
    %v2967 = vand.u32 2147483647, %v2959
    %v2968 = vand.u32 2147483647, %v2960
    %v2969 = vand.u32 2147483647, %v2961
    %v2970 = vand.u32 2147483647, %v2962
    %v2971 = vand.u32 2147483647, %v2963
    %v2972 = vand.u32 2147483647, %v2964
    %v2973 = vadd.f32 %v2859, %v2965
    %v2974 = vadd.f32 %v2860, %v2966
    %v2975 = vadd.f32 %v2861, %v2967
    %v2976 = vadd.f32 %v2862, %v2968
    %v2977 = vadd.f32 %v2863, %v2969
    %v2978 = vadd.f32 %v2864, %v2970
    %v2979 = vadd.f32 %v2865, %v2971
    %v2980 = vadd.f32 %v2866, %v2972
    %v2982 = vcombine.high %v1753, %v1753
    %v2984 = vunpack.c.l.s4 1966171168
    %v2985 = vunpack.c.0.s8 %v2984
    %v2986 = vlaneseq
    %v2987 = vshrl.u32 %v2986, 7
    %v2988 = vsub.s32 %v2985, %v2987
    %v2989 = vrot.slane %v1753, %v2988
    %v2991 = vunpack.c.l.s4 1966171168
    %v2992 = vunpack.c.0.s8 %v2991
    %v2993 = vlaneseq
    %v2994 = vshrl.u32 %v2993, 7
    %v2995 = vsub.s32 %v2992, %v2994
    %v2996 = vrot.slane %v2982, %v2995
    %v2997 = vcombine.high %v2989, %v2989
    %v2998 = vcombine.high %v2996, %v2996
    %v3000 = vunpack.c.l.s4 1966171168
    %v3001 = vunpack.c.0.s8 %v3000
    %v3002 = vlaneseq
    %v3003 = vshrl.u32 %v3002, 7
    %v3004 = vsub.s32 %v3001, %v3003
    %v3005 = vrot.slane %v2989, %v3004
    %v3007 = vunpack.c.l.s4 1966171168
    %v3008 = vunpack.c.0.s8 %v3007
    %v3009 = vlaneseq
    %v3010 = vshrl.u32 %v3009, 7
    %v3011 = vsub.s32 %v3008, %v3010
    %v3012 = vrot.slane %v2996, %v3011
    %v3014 = vunpack.c.l.s4 1966171168
    %v3015 = vunpack.c.0.s8 %v3014
    %v3016 = vlaneseq
    %v3017 = vshrl.u32 %v3016, 7
    %v3018 = vsub.s32 %v3015, %v3017
    %v3019 = vrot.slane %v2997, %v3018
    %v3021 = vunpack.c.l.s4 1966171168
    %v3022 = vunpack.c.0.s8 %v3021
    %v3023 = vlaneseq
    %v3024 = vshrl.u32 %v3023, 7
    %v3025 = vsub.s32 %v3022, %v3024
    %v3026 = vrot.slane %v2998, %v3025
    %v3027 = vcombine.high %v3005, %v3005
    %v3028 = vcombine.high %v3012, %v3012
    %v3029 = vcombine.high %v3019, %v3019
    %v3030 = vcombine.high %v3026, %v3026
    %v3031 = vlaneseq
    %v3032 = vshrl.u32 %v3031, 7
    %v3033 = vsub.s32 0, %v3032
    %v3034 = vrot.slane %v3005, %v3033
    %v3035 = vlaneseq
    %v3036 = vshrl.u32 %v3035, 7
    %v3037 = vsub.s32 0, %v3036
    %v3038 = vrot.slane %v3019, %v3037
    %v3039 = vlaneseq
    %v3040 = vshrl.u32 %v3039, 7
    %v3041 = vsub.s32 0, %v3040
    %v3042 = vrot.slane %v3027, %v3041
    %v3043 = vlaneseq
    %v3044 = vshrl.u32 %v3043, 7
    %v3045 = vsub.s32 0, %v3044
    %v3046 = vrot.slane %v3029, %v3045
    %v3047 = vlaneseq
    %v3048 = vshrl.u32 %v3047, 7
    %v3049 = vsub.s32 0, %v3048
    %v3050 = vrot.slane %v3012, %v3049
    %v3051 = vlaneseq
    %v3052 = vshrl.u32 %v3051, 7
    %v3053 = vsub.s32 0, %v3052
    %v3054 = vrot.slane %v3026, %v3053
    %v3055 = vlaneseq
    %v3056 = vshrl.u32 %v3055, 7
    %v3057 = vsub.s32 0, %v3056
    %v3058 = vrot.slane %v3028, %v3057
    %v3059 = vlaneseq
    %v3060 = vshrl.u32 %v3059, 7
    %v3061 = vsub.s32 0, %v3060
    %v3062 = vrot.slane %v3030, %v3061
    %v3071 = vsub.f32 %v3034, %v1753
    %v3072 = vsub.f32 %v3038, %v1753
    %v3073 = vsub.f32 %v3042, %v1753
    %v3074 = vsub.f32 %v3046, %v1753
    %v3075 = vsub.f32 %v3050, %v1753
    %v3076 = vsub.f32 %v3054, %v1753
    %v3077 = vsub.f32 %v3058, %v1753
    %v3078 = vsub.f32 %v3062, %v1753
    %v3079 = vand.u32 2147483647, %v3071
    %v3080 = vand.u32 2147483647, %v3072
    %v3081 = vand.u32 2147483647, %v3073
    %v3082 = vand.u32 2147483647, %v3074
    %v3083 = vand.u32 2147483647, %v3075
    %v3084 = vand.u32 2147483647, %v3076
    %v3085 = vand.u32 2147483647, %v3077
    %v3086 = vand.u32 2147483647, %v3078
    %v3087 = vadd.f32 %v2973, %v3079
    %v3088 = vadd.f32 %v2974, %v3080
    %v3089 = vadd.f32 %v2975, %v3081
    %v3090 = vadd.f32 %v2976, %v3082
    %v3091 = vadd.f32 %v2977, %v3083
    %v3092 = vadd.f32 %v2978, %v3084
    %v3093 = vadd.f32 %v2979, %v3085
    %v3094 = vadd.f32 %v2980, %v3086
    %v3096 = vcombine.high %v1755, %v1755
    %v3098 = vunpack.c.l.s4 1966171168
    %v3099 = vunpack.c.0.s8 %v3098
    %v3100 = vlaneseq
    %v3101 = vshrl.u32 %v3100, 7
    %v3102 = vsub.s32 %v3099, %v3101
    %v3103 = vrot.slane %v1755, %v3102
    %v3105 = vunpack.c.l.s4 1966171168
    %v3106 = vunpack.c.0.s8 %v3105
    %v3107 = vlaneseq
    %v3108 = vshrl.u32 %v3107, 7
    %v3109 = vsub.s32 %v3106, %v3108
    %v3110 = vrot.slane %v3096, %v3109
    %v3111 = vcombine.high %v3103, %v3103
    %v3112 = vcombine.high %v3110, %v3110
    %v3114 = vunpack.c.l.s4 1966171168
    %v3115 = vunpack.c.0.s8 %v3114
    %v3116 = vlaneseq
    %v3117 = vshrl.u32 %v3116, 7
    %v3118 = vsub.s32 %v3115, %v3117
    %v3119 = vrot.slane %v3103, %v3118
    %v3121 = vunpack.c.l.s4 1966171168
    %v3122 = vunpack.c.0.s8 %v3121
    %v3123 = vlaneseq
    %v3124 = vshrl.u32 %v3123, 7
    %v3125 = vsub.s32 %v3122, %v3124
    %v3126 = vrot.slane %v3110, %v3125
    %v3128 = vunpack.c.l.s4 1966171168
    %v3129 = vunpack.c.0.s8 %v3128
    %v3130 = vlaneseq
    %v3131 = vshrl.u32 %v3130, 7
    %v3132 = vsub.s32 %v3129, %v3131
    %v3133 = vrot.slane %v3111, %v3132
    %v3135 = vunpack.c.l.s4 1966171168
    %v3136 = vunpack.c.0.s8 %v3135
    %v3137 = vlaneseq
    %v3138 = vshrl.u32 %v3137, 7
    %v3139 = vsub.s32 %v3136, %v3138
    %v3140 = vrot.slane %v3112, %v3139
    %v3141 = vcombine.high %v3119, %v3119
    %v3142 = vcombine.high %v3126, %v3126
    %v3143 = vcombine.high %v3133, %v3133
    %v3144 = vcombine.high %v3140, %v3140
    %v3145 = vlaneseq
    %v3146 = vshrl.u32 %v3145, 7
    %v3147 = vsub.s32 0, %v3146
    %v3148 = vrot.slane %v3119, %v3147
    %v3149 = vlaneseq
    %v3150 = vshrl.u32 %v3149, 7
    %v3151 = vsub.s32 0, %v3150
    %v3152 = vrot.slane %v3133, %v3151
    %v3153 = vlaneseq
    %v3154 = vshrl.u32 %v3153, 7
    %v3155 = vsub.s32 0, %v3154
    %v3156 = vrot.slane %v3141, %v3155
    %v3157 = vlaneseq
    %v3158 = vshrl.u32 %v3157, 7
    %v3159 = vsub.s32 0, %v3158
    %v3160 = vrot.slane %v3143, %v3159
    %v3161 = vlaneseq
    %v3162 = vshrl.u32 %v3161, 7
    %v3163 = vsub.s32 0, %v3162
    %v3164 = vrot.slane %v3126, %v3163
    %v3165 = vlaneseq
    %v3166 = vshrl.u32 %v3165, 7
    %v3167 = vsub.s32 0, %v3166
    %v3168 = vrot.slane %v3140, %v3167
    %v3169 = vlaneseq
    %v3170 = vshrl.u32 %v3169, 7
    %v3171 = vsub.s32 0, %v3170
    %v3172 = vrot.slane %v3142, %v3171
    %v3173 = vlaneseq
    %v3174 = vshrl.u32 %v3173, 7
    %v3175 = vsub.s32 0, %v3174
    %v3176 = vrot.slane %v3144, %v3175
    %v3185 = vsub.f32 %v3148, %v1755
    %v3186 = vsub.f32 %v3152, %v1755
    %v3187 = vsub.f32 %v3156, %v1755
    %v3188 = vsub.f32 %v3160, %v1755
    %v3189 = vsub.f32 %v3164, %v1755
    %v3190 = vsub.f32 %v3168, %v1755
    %v3191 = vsub.f32 %v3172, %v1755
    %v3192 = vsub.f32 %v3176, %v1755
    %v3193 = vand.u32 2147483647, %v3185
    %v3194 = vand.u32 2147483647, %v3186
    %v3195 = vand.u32 2147483647, %v3187
    %v3196 = vand.u32 2147483647, %v3188
    %v3197 = vand.u32 2147483647, %v3189
    %v3198 = vand.u32 2147483647, %v3190
    %v3199 = vand.u32 2147483647, %v3191
    %v3200 = vand.u32 2147483647, %v3192
    %v3201 = vadd.f32 %v3087, %v3193
    %v3202 = vadd.f32 %v3088, %v3194
    %v3203 = vadd.f32 %v3089, %v3195
    %v3204 = vadd.f32 %v3090, %v3196
    %v3205 = vadd.f32 %v3091, %v3197
    %v3206 = vadd.f32 %v3092, %v3198
    %v3207 = vadd.f32 %v3093, %v3199
    %v3208 = vadd.f32 %v3094, %v3200
    %v3210 = vcombine.high %v1794, %v1794
    %v3212 = vunpack.c.l.s4 1966171168
    %v3213 = vunpack.c.0.s8 %v3212
    %v3214 = vlaneseq
    %v3215 = vshrl.u32 %v3214, 7
    %v3216 = vsub.s32 %v3213, %v3215
    %v3217 = vrot.slane %v1794, %v3216
    %v3219 = vunpack.c.l.s4 1966171168
    %v3220 = vunpack.c.0.s8 %v3219
    %v3221 = vlaneseq
    %v3222 = vshrl.u32 %v3221, 7
    %v3223 = vsub.s32 %v3220, %v3222
    %v3224 = vrot.slane %v3210, %v3223
    %v3225 = vcombine.high %v3217, %v3217
    %v3226 = vcombine.high %v3224, %v3224
    %v3228 = vunpack.c.l.s4 1966171168
    %v3229 = vunpack.c.0.s8 %v3228
    %v3230 = vlaneseq
    %v3231 = vshrl.u32 %v3230, 7
    %v3232 = vsub.s32 %v3229, %v3231
    %v3233 = vrot.slane %v3217, %v3232
    %v3235 = vunpack.c.l.s4 1966171168
    %v3236 = vunpack.c.0.s8 %v3235
    %v3237 = vlaneseq
    %v3238 = vshrl.u32 %v3237, 7
    %v3239 = vsub.s32 %v3236, %v3238
    %v3240 = vrot.slane %v3224, %v3239
    %v3242 = vunpack.c.l.s4 1966171168
    %v3243 = vunpack.c.0.s8 %v3242
    %v3244 = vlaneseq
    %v3245 = vshrl.u32 %v3244, 7
    %v3246 = vsub.s32 %v3243, %v3245
    %v3247 = vrot.slane %v3225, %v3246
    %v3249 = vunpack.c.l.s4 1966171168
    %v3250 = vunpack.c.0.s8 %v3249
    %v3251 = vlaneseq
    %v3252 = vshrl.u32 %v3251, 7
    %v3253 = vsub.s32 %v3250, %v3252
    %v3254 = vrot.slane %v3226, %v3253
    %v3255 = vcombine.high %v3233, %v3233
    %v3256 = vcombine.high %v3240, %v3240
    %v3257 = vcombine.high %v3247, %v3247
    %v3258 = vcombine.high %v3254, %v3254
    %v3259 = vlaneseq
    %v3260 = vshrl.u32 %v3259, 7
    %v3261 = vsub.s32 0, %v3260
    %v3262 = vrot.slane %v3233, %v3261
    %v3263 = vlaneseq
    %v3264 = vshrl.u32 %v3263, 7
    %v3265 = vsub.s32 0, %v3264
    %v3266 = vrot.slane %v3247, %v3265
    %v3267 = vlaneseq
    %v3268 = vshrl.u32 %v3267, 7
    %v3269 = vsub.s32 0, %v3268
    %v3270 = vrot.slane %v3255, %v3269
    %v3271 = vlaneseq
    %v3272 = vshrl.u32 %v3271, 7
    %v3273 = vsub.s32 0, %v3272
    %v3274 = vrot.slane %v3257, %v3273
    %v3275 = vlaneseq
    %v3276 = vshrl.u32 %v3275, 7
    %v3277 = vsub.s32 0, %v3276
    %v3278 = vrot.slane %v3240, %v3277
    %v3279 = vlaneseq
    %v3280 = vshrl.u32 %v3279, 7
    %v3281 = vsub.s32 0, %v3280
    %v3282 = vrot.slane %v3254, %v3281
    %v3283 = vlaneseq
    %v3284 = vshrl.u32 %v3283, 7
    %v3285 = vsub.s32 0, %v3284
    %v3286 = vrot.slane %v3256, %v3285
    %v3287 = vlaneseq
    %v3288 = vshrl.u32 %v3287, 7
    %v3289 = vsub.s32 0, %v3288
    %v3290 = vrot.slane %v3258, %v3289
    %v3299 = vsub.f32 %v3262, %v1794
    %v3300 = vsub.f32 %v3266, %v1794
    %v3301 = vsub.f32 %v3270, %v1794
    %v3302 = vsub.f32 %v3274, %v1794
    %v3303 = vsub.f32 %v3278, %v1794
    %v3304 = vsub.f32 %v3282, %v1794
    %v3305 = vsub.f32 %v3286, %v1794
    %v3306 = vsub.f32 %v3290, %v1794
    %v3307 = vand.u32 2147483647, %v3299
    %v3308 = vand.u32 2147483647, %v3300
    %v3309 = vand.u32 2147483647, %v3301
    %v3310 = vand.u32 2147483647, %v3302
    %v3311 = vand.u32 2147483647, %v3303
    %v3312 = vand.u32 2147483647, %v3304
    %v3313 = vand.u32 2147483647, %v3305
    %v3314 = vand.u32 2147483647, %v3306
    %v3315 = vadd.f32 %v3201, %v3307
    %v3316 = vadd.f32 %v3202, %v3308
    %v3317 = vadd.f32 %v3203, %v3309
    %v3318 = vadd.f32 %v3204, %v3310
    %v3319 = vadd.f32 %v3205, %v3311
    %v3320 = vadd.f32 %v3206, %v3312
    %v3321 = vadd.f32 %v3207, %v3313
    %v3322 = vadd.f32 %v3208, %v3314
    %v3324 = vcombine.high %v1796, %v1796
    %v3326 = vunpack.c.l.s4 1966171168
    %v3327 = vunpack.c.0.s8 %v3326
    %v3328 = vlaneseq
    %v3329 = vshrl.u32 %v3328, 7
    %v3330 = vsub.s32 %v3327, %v3329
    %v3331 = vrot.slane %v1796, %v3330
    %v3333 = vunpack.c.l.s4 1966171168
    %v3334 = vunpack.c.0.s8 %v3333
    %v3335 = vlaneseq
    %v3336 = vshrl.u32 %v3335, 7
    %v3337 = vsub.s32 %v3334, %v3336
    %v3338 = vrot.slane %v3324, %v3337
    %v3339 = vcombine.high %v3331, %v3331
    %v3340 = vcombine.high %v3338, %v3338
    %v3342 = vunpack.c.l.s4 1966171168
    %v3343 = vunpack.c.0.s8 %v3342
    %v3344 = vlaneseq
    %v3345 = vshrl.u32 %v3344, 7
    %v3346 = vsub.s32 %v3343, %v3345
    %v3347 = vrot.slane %v3331, %v3346
    %v3349 = vunpack.c.l.s4 1966171168
    %v3350 = vunpack.c.0.s8 %v3349
    %v3351 = vlaneseq
    %v3352 = vshrl.u32 %v3351, 7
    %v3353 = vsub.s32 %v3350, %v3352
    %v3354 = vrot.slane %v3338, %v3353
    %v3356 = vunpack.c.l.s4 1966171168
    %v3357 = vunpack.c.0.s8 %v3356
    %v3358 = vlaneseq
    %v3359 = vshrl.u32 %v3358, 7
    %v3360 = vsub.s32 %v3357, %v3359
    %v3361 = vrot.slane %v3339, %v3360
    %v3363 = vunpack.c.l.s4 1966171168
    %v3364 = vunpack.c.0.s8 %v3363
    %v3365 = vlaneseq
    %v3366 = vshrl.u32 %v3365, 7
    %v3367 = vsub.s32 %v3364, %v3366
    %v3368 = vrot.slane %v3340, %v3367
    %v3369 = vcombine.high %v3347, %v3347
    %v3370 = vcombine.high %v3354, %v3354
    %v3371 = vcombine.high %v3361, %v3361
    %v3372 = vcombine.high %v3368, %v3368
    %v3373 = vlaneseq
    %v3374 = vshrl.u32 %v3373, 7
    %v3375 = vsub.s32 0, %v3374
    %v3376 = vrot.slane %v3347, %v3375
    %v3377 = vlaneseq
    %v3378 = vshrl.u32 %v3377, 7
    %v3379 = vsub.s32 0, %v3378
    %v3380 = vrot.slane %v3361, %v3379
    %v3381 = vlaneseq
    %v3382 = vshrl.u32 %v3381, 7
    %v3383 = vsub.s32 0, %v3382
    %v3384 = vrot.slane %v3369, %v3383
    %v3385 = vlaneseq
    %v3386 = vshrl.u32 %v3385, 7
    %v3387 = vsub.s32 0, %v3386
    %v3388 = vrot.slane %v3371, %v3387
    %v3389 = vlaneseq
    %v3390 = vshrl.u32 %v3389, 7
    %v3391 = vsub.s32 0, %v3390
    %v3392 = vrot.slane %v3354, %v3391
    %v3393 = vlaneseq
    %v3394 = vshrl.u32 %v3393, 7
    %v3395 = vsub.s32 0, %v3394
    %v3396 = vrot.slane %v3368, %v3395
    %v3397 = vlaneseq
    %v3398 = vshrl.u32 %v3397, 7
    %v3399 = vsub.s32 0, %v3398
    %v3400 = vrot.slane %v3370, %v3399
    %v3401 = vlaneseq
    %v3402 = vshrl.u32 %v3401, 7
    %v3403 = vsub.s32 0, %v3402
    %v3404 = vrot.slane %v3372, %v3403
    %v3413 = vsub.f32 %v3376, %v1796
    %v3414 = vsub.f32 %v3380, %v1796
    %v3415 = vsub.f32 %v3384, %v1796
    %v3416 = vsub.f32 %v3388, %v1796
    %v3417 = vsub.f32 %v3392, %v1796
    %v3418 = vsub.f32 %v3396, %v1796
    %v3419 = vsub.f32 %v3400, %v1796
    %v3420 = vsub.f32 %v3404, %v1796
    %v3421 = vand.u32 2147483647, %v3413
    %v3422 = vand.u32 2147483647, %v3414
    %v3423 = vand.u32 2147483647, %v3415
    %v3424 = vand.u32 2147483647, %v3416
    %v3425 = vand.u32 2147483647, %v3417
    %v3426 = vand.u32 2147483647, %v3418
    %v3427 = vand.u32 2147483647, %v3419
    %v3428 = vand.u32 2147483647, %v3420
    %v3429 = vadd.f32 %v3315, %v3421
    %v3430 = vadd.f32 %v3316, %v3422
    %v3431 = vadd.f32 %v3317, %v3423
    %v3432 = vadd.f32 %v3318, %v3424
    %v3433 = vadd.f32 %v3319, %v3425
    %v3434 = vadd.f32 %v3320, %v3426
    %v3435 = vadd.f32 %v3321, %v3427
    %v3436 = vadd.f32 %v3322, %v3428
    %v3438 = vcombine.high %v1835, %v1835
    %v3440 = vunpack.c.l.s4 1966171168
    %v3441 = vunpack.c.0.s8 %v3440
    %v3442 = vlaneseq
    %v3443 = vshrl.u32 %v3442, 7
    %v3444 = vsub.s32 %v3441, %v3443
    %v3445 = vrot.slane %v1835, %v3444
    %v3447 = vunpack.c.l.s4 1966171168
    %v3448 = vunpack.c.0.s8 %v3447
    %v3449 = vlaneseq
    %v3450 = vshrl.u32 %v3449, 7
    %v3451 = vsub.s32 %v3448, %v3450
    %v3452 = vrot.slane %v3438, %v3451
    %v3453 = vcombine.high %v3445, %v3445
    %v3454 = vcombine.high %v3452, %v3452
    %v3456 = vunpack.c.l.s4 1966171168
    %v3457 = vunpack.c.0.s8 %v3456
    %v3458 = vlaneseq
    %v3459 = vshrl.u32 %v3458, 7
    %v3460 = vsub.s32 %v3457, %v3459
    %v3461 = vrot.slane %v3445, %v3460
    %v3463 = vunpack.c.l.s4 1966171168
    %v3464 = vunpack.c.0.s8 %v3463
    %v3465 = vlaneseq
    %v3466 = vshrl.u32 %v3465, 7
    %v3467 = vsub.s32 %v3464, %v3466
    %v3468 = vrot.slane %v3452, %v3467
    %v3470 = vunpack.c.l.s4 1966171168
    %v3471 = vunpack.c.0.s8 %v3470
    %v3472 = vlaneseq
    %v3473 = vshrl.u32 %v3472, 7
    %v3474 = vsub.s32 %v3471, %v3473
    %v3475 = vrot.slane %v3453, %v3474
    %v3477 = vunpack.c.l.s4 1966171168
    %v3478 = vunpack.c.0.s8 %v3477
    %v3479 = vlaneseq
    %v3480 = vshrl.u32 %v3479, 7
    %v3481 = vsub.s32 %v3478, %v3480
    %v3482 = vrot.slane %v3454, %v3481
    %v3483 = vcombine.high %v3461, %v3461
    %v3484 = vcombine.high %v3468, %v3468
    %v3485 = vcombine.high %v3475, %v3475
    %v3486 = vcombine.high %v3482, %v3482
    %v3487 = vlaneseq
    %v3488 = vshrl.u32 %v3487, 7
    %v3489 = vsub.s32 0, %v3488
    %v3490 = vrot.slane %v3461, %v3489
    %v3491 = vlaneseq
    %v3492 = vshrl.u32 %v3491, 7
    %v3493 = vsub.s32 0, %v3492
    %v3494 = vrot.slane %v3475, %v3493
    %v3495 = vlaneseq
    %v3496 = vshrl.u32 %v3495, 7
    %v3497 = vsub.s32 0, %v3496
    %v3498 = vrot.slane %v3483, %v3497
    %v3499 = vlaneseq
    %v3500 = vshrl.u32 %v3499, 7
    %v3501 = vsub.s32 0, %v3500
    %v3502 = vrot.slane %v3485, %v3501
    %v3503 = vlaneseq
    %v3504 = vshrl.u32 %v3503, 7
    %v3505 = vsub.s32 0, %v3504
    %v3506 = vrot.slane %v3468, %v3505
    %v3507 = vlaneseq
    %v3508 = vshrl.u32 %v3507, 7
    %v3509 = vsub.s32 0, %v3508
    %v3510 = vrot.slane %v3482, %v3509
    %v3511 = vlaneseq
    %v3512 = vshrl.u32 %v3511, 7
    %v3513 = vsub.s32 0, %v3512
    %v3514 = vrot.slane %v3484, %v3513
    %v3515 = vlaneseq
    %v3516 = vshrl.u32 %v3515, 7
    %v3517 = vsub.s32 0, %v3516
    %v3518 = vrot.slane %v3486, %v3517
    %v3527 = vsub.f32 %v3490, %v1835
    %v3528 = vsub.f32 %v3494, %v1835
    %v3529 = vsub.f32 %v3498, %v1835
    %v3530 = vsub.f32 %v3502, %v1835
    %v3531 = vsub.f32 %v3506, %v1835
    %v3532 = vsub.f32 %v3510, %v1835
    %v3533 = vsub.f32 %v3514, %v1835
    %v3534 = vsub.f32 %v3518, %v1835
    %v3535 = vand.u32 2147483647, %v3527
    %v3536 = vand.u32 2147483647, %v3528
    %v3537 = vand.u32 2147483647, %v3529
    %v3538 = vand.u32 2147483647, %v3530
    %v3539 = vand.u32 2147483647, %v3531
    %v3540 = vand.u32 2147483647, %v3532
    %v3541 = vand.u32 2147483647, %v3533
    %v3542 = vand.u32 2147483647, %v3534
    %v3543 = vadd.f32 %v3429, %v3535
    %v3544 = vadd.f32 %v3430, %v3536
    %v3545 = vadd.f32 %v3431, %v3537
    %v3546 = vadd.f32 %v3432, %v3538
    %v3547 = vadd.f32 %v3433, %v3539
    %v3548 = vadd.f32 %v3434, %v3540
    %v3549 = vadd.f32 %v3435, %v3541
    %v3550 = vadd.f32 %v3436, %v3542
    %v3552 = vcombine.high %v1837, %v1837
    %v3554 = vunpack.c.l.s4 1966171168
    %v3555 = vunpack.c.0.s8 %v3554
    %v3556 = vlaneseq
    %v3557 = vshrl.u32 %v3556, 7
    %v3558 = vsub.s32 %v3555, %v3557
    %v3559 = vrot.slane %v1837, %v3558
    %v3561 = vunpack.c.l.s4 1966171168
    %v3562 = vunpack.c.0.s8 %v3561
    %v3563 = vlaneseq
    %v3564 = vshrl.u32 %v3563, 7
    %v3565 = vsub.s32 %v3562, %v3564
    %v3566 = vrot.slane %v3552, %v3565
    %v3567 = vcombine.high %v3559, %v3559
    %v3568 = vcombine.high %v3566, %v3566
    %v3570 = vunpack.c.l.s4 1966171168
    %v3571 = vunpack.c.0.s8 %v3570
    %v3572 = vlaneseq
    %v3573 = vshrl.u32 %v3572, 7
    %v3574 = vsub.s32 %v3571, %v3573
    %v3575 = vrot.slane %v3559, %v3574
    %v3577 = vunpack.c.l.s4 1966171168
    %v3578 = vunpack.c.0.s8 %v3577
    %v3579 = vlaneseq
    %v3580 = vshrl.u32 %v3579, 7
    %v3581 = vsub.s32 %v3578, %v3580
    %v3582 = vrot.slane %v3566, %v3581
    %v3584 = vunpack.c.l.s4 1966171168
    %v3585 = vunpack.c.0.s8 %v3584
    %v3586 = vlaneseq
    %v3587 = vshrl.u32 %v3586, 7
    %v3588 = vsub.s32 %v3585, %v3587
    %v3589 = vrot.slane %v3567, %v3588
    %v3591 = vunpack.c.l.s4 1966171168
    %v3592 = vunpack.c.0.s8 %v3591
    %v3593 = vlaneseq
    %v3594 = vshrl.u32 %v3593, 7
    %v3595 = vsub.s32 %v3592, %v3594
    %v3596 = vrot.slane %v3568, %v3595
    %v3597 = vcombine.high %v3575, %v3575
    %v3598 = vcombine.high %v3582, %v3582
    %v3599 = vcombine.high %v3589, %v3589
    %v3600 = vcombine.high %v3596, %v3596
    %v3601 = vlaneseq
    %v3602 = vshrl.u32 %v3601, 7
    %v3603 = vsub.s32 0, %v3602
    %v3604 = vrot.slane %v3575, %v3603
    %v3605 = vlaneseq
    %v3606 = vshrl.u32 %v3605, 7
    %v3607 = vsub.s32 0, %v3606
    %v3608 = vrot.slane %v3589, %v3607
    %v3609 = vlaneseq
    %v3610 = vshrl.u32 %v3609, 7
    %v3611 = vsub.s32 0, %v3610
    %v3612 = vrot.slane %v3597, %v3611
    %v3613 = vlaneseq
    %v3614 = vshrl.u32 %v3613, 7
    %v3615 = vsub.s32 0, %v3614
    %v3616 = vrot.slane %v3599, %v3615
    %v3617 = vlaneseq
    %v3618 = vshrl.u32 %v3617, 7
    %v3619 = vsub.s32 0, %v3618
    %v3620 = vrot.slane %v3582, %v3619
    %v3621 = vlaneseq
    %v3622 = vshrl.u32 %v3621, 7
    %v3623 = vsub.s32 0, %v3622
    %v3624 = vrot.slane %v3596, %v3623
    %v3625 = vlaneseq
    %v3626 = vshrl.u32 %v3625, 7
    %v3627 = vsub.s32 0, %v3626
    %v3628 = vrot.slane %v3598, %v3627
    %v3629 = vlaneseq
    %v3630 = vshrl.u32 %v3629, 7
    %v3631 = vsub.s32 0, %v3630
    %v3632 = vrot.slane %v3600, %v3631
    %v3641 = vsub.f32 %v3604, %v1837
    %v3642 = vsub.f32 %v3608, %v1837
    %v3643 = vsub.f32 %v3612, %v1837
    %v3644 = vsub.f32 %v3616, %v1837
    %v3645 = vsub.f32 %v3620, %v1837
    %v3646 = vsub.f32 %v3624, %v1837
    %v3647 = vsub.f32 %v3628, %v1837
    %v3648 = vsub.f32 %v3632, %v1837
    %v3649 = vand.u32 2147483647, %v3641
    %v3650 = vand.u32 2147483647, %v3642
    %v3651 = vand.u32 2147483647, %v3643
    %v3652 = vand.u32 2147483647, %v3644
    %v3653 = vand.u32 2147483647, %v3645
    %v3654 = vand.u32 2147483647, %v3646
    %v3655 = vand.u32 2147483647, %v3647
    %v3656 = vand.u32 2147483647, %v3648
    %v3657 = vadd.f32 %v3543, %v3649
    %v3658 = vadd.f32 %v3544, %v3650
    %v3659 = vadd.f32 %v3545, %v3651
    %v3660 = vadd.f32 %v3546, %v3652
    %v3661 = vadd.f32 %v3547, %v3653
    %v3662 = vadd.f32 %v3548, %v3654
    %v3663 = vadd.f32 %v3549, %v3655
    %v3664 = vadd.f32 %v3550, %v3656
    %v3665 = vsub.f32 0.0, %v3657
    %v3666 = vsub.f32 0.0, %v3658
    %v3667 = vsub.f32 0.0, %v3659
    %v3668 = vsub.f32 0.0, %v3660
    %v3669 = vsub.f32 0.0, %v3661
    %v3670 = vsub.f32 0.0, %v3662
    %v3671 = vsub.f32 0.0, %v3663
    %v3672 = vsub.f32 0.0, %v3664
    %v3673 = vmul.f32 %v3665, 1.442695
    %v3674 = vpow.pop %v3673
    %v3675 = vmul.f32 %v3666, 1.442695
    %v3676 = vpow.pop %v3675
    %v3677 = vmul.f32 %v3667, 1.442695
    %v3678 = vpow.pop %v3677
    %v3679 = vmul.f32 %v3668, 1.442695
    %v3680 = vpow.pop %v3679
    %v3681 = vmul.f32 %v3669, 1.442695
    %v3682 = vpow.pop %v3681
    %v3683 = vmul.f32 %v3670, 1.442695
    %v3684 = vpow.pop %v3683
    %v3685 = vmul.f32 %v3671, 1.442695
    %v3686 = vpow.pop %v3685
    %v3687 = vmul.f32 %v3672, 1.442695
    %v3688 = vpow.pop %v3687
    %v3689 = vrot.slane %v3674, 4
    %v3690 = vadd.f32 %v3674, %v3689
    %v3691 = vrot.slane %v3690, 2
    %v3692 = vadd.f32 %v3690, %v3691
    %v3693 = vrot.slane %v3692, 1
    %v3694 = vadd.f32 %v3692, %v3693
    %v3695 = vrot.slane %v3676, 4
    %v3696 = vadd.f32 %v3676, %v3695
    %v3697 = vrot.slane %v3696, 2
    %v3698 = vadd.f32 %v3696, %v3697
    %v3699 = vrot.slane %v3698, 1
    %v3700 = vadd.f32 %v3698, %v3699
    %v3701 = vrot.slane %v3678, 4
    %v3702 = vadd.f32 %v3678, %v3701
    %v3703 = vrot.slane %v3702, 2
    %v3704 = vadd.f32 %v3702, %v3703
    %v3705 = vrot.slane %v3704, 1
    %v3706 = vadd.f32 %v3704, %v3705
    %v3707 = vrot.slane %v3680, 4
    %v3708 = vadd.f32 %v3680, %v3707
    %v3709 = vrot.slane %v3708, 2
    %v3710 = vadd.f32 %v3708, %v3709
    %v3711 = vrot.slane %v3710, 1
    %v3712 = vadd.f32 %v3710, %v3711
    %v3713 = vrot.slane %v3682, 4
    %v3714 = vadd.f32 %v3682, %v3713
    %v3715 = vrot.slane %v3714, 2
    %v3716 = vadd.f32 %v3714, %v3715
    %v3717 = vrot.slane %v3716, 1
    %v3718 = vadd.f32 %v3716, %v3717
    %v3719 = vrot.slane %v3684, 4
    %v3720 = vadd.f32 %v3684, %v3719
    %v3721 = vrot.slane %v3720, 2
    %v3722 = vadd.f32 %v3720, %v3721
    %v3723 = vrot.slane %v3722, 1
    %v3724 = vadd.f32 %v3722, %v3723
    %v3725 = vrot.slane %v3686, 4
    %v3726 = vadd.f32 %v3686, %v3725
    %v3727 = vrot.slane %v3726, 2
    %v3728 = vadd.f32 %v3726, %v3727
    %v3729 = vrot.slane %v3728, 1
    %v3730 = vadd.f32 %v3728, %v3729
    %v3731 = vrot.slane %v3688, 4
    %v3732 = vadd.f32 %v3688, %v3731
    %v3733 = vrot.slane %v3732, 2
    %v3734 = vadd.f32 %v3732, %v3733
    %v3735 = vrot.slane %v3734, 1
    %v3736 = vadd.f32 %v3734, %v3735
    %v3737 = vld [vmem:[#allocation16] sm:$0x1]
    %v3739 = vlaneseq
    %v3740 = vshrl.u32 %v3739, 7
    %v3741 = vsub.s32 0, %v3740
    %v3742 = vrot.slane %v3737, %v3741
    %v3744 = vmul.f32 %v743, %v3742
    %3745 = vadd.xlane.f32.xlu0 %v3744
    %v3746 = vpop.xlane.xlu0 %3745
    %v3747 = vld [vmem:[#allocation17] sm:$0x1]
    %v3749 = vlaneseq
    %v3750 = vshrl.u32 %v3749, 7
    %v3751 = vsub.s32 0, %v3750
    %v3752 = vrot.slane %v3747, %v3751
    %v3754 = vmul.f32 %v3694, %v3752
    %v3755 = vmul.f32 %v3700, %v3752
    %v3756 = vmul.f32 %v3706, %v3752
    %v3757 = vmul.f32 %v3712, %v3752
    %v3758 = vmul.f32 %v3718, %v3752
    %v3759 = vmul.f32 %v3724, %v3752
    %v3760 = vmul.f32 %v3730, %v3752
    %v3761 = vmul.f32 %v3736, %v3752
    %v3770 = vrot.slane %v3755, 7
    %vm3771 = vcmask 1041409
    %v3772 = vsel %vm3771, %v3770, %v3754
    %v3773 = vrot.slane %v3756, 6
    %vm3774 = vcmask 1042434
    %v3775 = vsel %vm3774, %v3773, %v3772
    %v3776 = vrot.slane %v3757, 5
    %vm3777 = vcmask 1043459
    %v3778 = vsel %vm3777, %v3776, %v3775
    %v3779 = vrot.slane %v3758, 4
    %vm3780 = vcmask 1044484
    %v3781 = vsel %vm3780, %v3779, %v3778
    %v3782 = vrot.slane %v3759, 3
    %vm3783 = vcmask 1045509
    %v3784 = vsel %vm3783, %v3782, %v3781
    %v3785 = vrot.slane %v3760, 2
    %vm3786 = vcmask 1046534
    %v3787 = vsel %vm3786, %v3785, %v3784
    %v3788 = vrot.slane %v3761, 1
    %vm3789 = vcmask 1047559
    %v3790 = vsel %vm3789, %v3788, %v3787
    %3792 = vadd.xlane.f32.xlu0 %v3790
    %v3793 = vpop.xlane.xlu0 %3792
    %v3794 = vadd.f32 %v3746, %v3793
    %s3795 = sld [smem:[#allocation2]]
    %v3796 = vstv %s3795
    %v3797 = vadd.f32 %v3794, %v3796
    %v3798 = vxor.u32 %v3797, 2147483648
    %v3799 = vmul.f32 %v3798, 1.442695
    %v3800 = vpow.pop %v3799
    %v3801 = vadd.f32 %v3800, 1.0
    %v3802 = vrcp.pop %v3801
    %v3803 = vmul.f32 1.0, %v3802
    %3804 = vst [vmem:[%s15] sm:$0xff] %v3803
    // Predicated region
    $region102: #{discriminator_forward.1} parent=1 // pred_check
      _
    $region103: #{discriminator_forward.1} parent=1 // pred_check_branch
      %3806 = sbr.rel (0) target = $region105
    $region104: #{discriminator_forward.1} parent=1 // pred_region
      _
    $region105: #{discriminator_forward.1} parent=1 // pred_fallthru
      _
    // Predicated region
    $region106: #{discriminator_forward.1} parent=1 // pred_check
      _
    $region107: #{discriminator_forward.1} parent=1 // pred_check_branch
      %3808 = sbr.rel (0) target = $region109
    $region108: #{discriminator_forward.1} parent=1 // pred_region
      _
    $region109: #{discriminator_forward.1} parent=1 // pred_fallthru
      _
    %3809 = vsyncpa [#allocation4], 1
    %3810 = vsyncpa [#allocation6], 1
    %3811 = vsyncpa [#allocation9], 1
    %3812 = vsyncpa [#allocation12], 1
    %3813 = vsyncpa [#allocation15], 1
    %3814 = vsyncpa [#allocation18], 1

</llo_original>
